<compile_context>
chip_gen: v6e
topology: v6e:2x2x1
jax: 0.10.0
libtpu: 0.0.40
codegen_flags: <defaults>
</compile_context>

<pallas_src>
import functools

import jax
import jax.numpy as jnp
import numpy as np
from jax.experimental import pallas as pl
from jax.experimental.pallas import tpu as pltpu

W0_SINE = 30.0            # w0 of the Sine / FirstSine nonlinearity
NUM_HEADS = 4             # num_hidden_layers(=3) + 1 multiscale outputs


def _mlp_kernel(coords_ref,
                w0_ref, b0_ref, w1_ref, b1_ref, w2_ref, b2_ref, w3_ref, b3_ref,
                l_last_ref, bl_last_ref, o_ref, *, in_f, hidden, out_f):
    """One row-tile through the whole SIREN trunk; all 4 heads into one fused store.

    Trunk weights/biases arrive pre-scaled by w0 (sin(w0*(x@W+b)) == sin(x@(w0 W)+(w0 b))).
    Layers 1..3 arrive widened to (H, H + 4*out_f): columns [H+(k-1)*out_f : H+k*out_f]
    hold head_{k-1}'s weights (zeros elsewhere) and the matching bias lanes hold the head
    bias, so three of the four heads ride for free inside the MXU matmuls.
    """
    H = hidden
    x = coords_ref[...]                                           # (tile_n, in_f)

    # ---- layer 0: K = in_f (=2) is tiny -> VPU outer product, skip a degenerate MXU pass.
    # TODO(synk): on v6e/v7x (VALU-bound) routing this through jnp.dot would free a few
    # hundred VALU ops/step; kept on the VPU (zero-risk lowering, preferred on v5e).
    if in_f <= 8:
        pre = x[:, 0:1] * w0_ref[0:1, :]
        for f in range(1, in_f):
            pre = pre + x[:, f:f + 1] * w0_ref[f:f + 1, :]
        pre = pre + b0_ref[...]
    else:
        pre = jnp.dot(x, w0_ref[...], preferred_element_type=jnp.float32) + b0_ref[...]
    h = jnp.sin(pre)                                              # h1 (tile_n, H)

    # ---- layers 1..3: widened matmuls; lanes [:H] feed sin, lanes [H:] are head outputs.
    z1 = jnp.dot(h, w1_ref[...], preferred_element_type=jnp.float32) + b1_ref[...]
    h = jnp.sin(z1[:, :H])                                        # h2  (slice is lane-aligned)
    z2 = jnp.dot(h, w2_ref[...], preferred_element_type=jnp.float32) + b2_ref[...]
    h = jnp.sin(z2[:, :H])                                        # h3
    z3 = jnp.dot(h, w3_ref[...], preferred_element_type=jnp.float32) + b3_ref[...]
    h = jnp.sin(z3[:, :H])                                        # h4

    # Heads 0..2 occupy disjoint lanes of the head slices (zeros elsewhere); H is a
    # multiple of 128 so z*[:, H:] starts at a vreg-column boundary (no relayout).
    heads012 = z1[:, H:] + z2[:, H:] + z3[:, H:]                  # (tile_n, 4*out_f)

    # ---- head 3: no later trunk matmul to fold into.
    if out_f == 1:
        # VPU multiply + cross-lane (XLU) reduce instead of a (tile_n,H)@(H,1) MXU pass.
        red3 = jnp.sum(h * l_last_ref[...], axis=-1, keepdims=True) + bl_last_ref[...]
        lane = jax.lax.broadcasted_iota(jnp.int32, heads012.shape, 1)
        # Single fused (tile_n, 4*out_f) store: one write / writeback per grid step.
        o_ref[...] = jnp.where(lane == (NUM_HEADS - 1) * out_f, red3, heads012)
    else:
        # l_last stored (H, out_f): plain MXU dot, no implicit RHS transpose.
        red3 = jnp.dot(h, l_last_ref[...],
                       preferred_element_type=jnp.float32) + bl_last_ref[...]
        o_ref[:, :(NUM_HEADS - 1) * out_f] = heads012[:, :(NUM_HEADS - 1) * out_f]
        o_ref[:, (NUM_HEADS - 1) * out_f:] = red3


def _pick_tiling(n, max_tile=1024):
    """Row tile + grid steps.

    * tile as large as comfortable (per-grid-step overhead ~0.35us gets amortized;
      per-step VMEM even at tile_n=1024 is only a few MiB),
    * always an EVEN number of grid steps >= 2 so the 'parallel' axis shards evenly
      across v7x's two TensorCores.
    """
    def r8(v):
        return max(8, ((v + 7) // 8) * 8)
    steps = max(2, -(-n // max_tile))
    if steps % 2:
        steps += 1
    tile_n = min(max_tile, r8(-(-n // steps)))
    return tile_n, steps


def init_params(key, in_features, hidden_features, out_features, num_hidden_layers,
                w0=W0_SINE):
    """Deterministic parameter init mirroring FCBlock's sine init (shapes matter).
    Trunk weights stored as (fan_in, fan_out); heads as (fan_in, out_features)."""
    keys = jax.random.split(key, 2 * (num_hidden_layers + 1) + 2 * num_hidden_layers)
    ki = iter(range(len(keys)))
    params = {}
    # first layer: uniform(-1/fan_in, 1/fan_in)  (first_layer_sine_init)
    params["W0"] = jax.random.uniform(keys[next(ki)], (in_features, hidden_features),
                                      jnp.float32, -1.0 / in_features, 1.0 / in_features)
    params["b0"] = jax.random.uniform(keys[next(ki)], (1, hidden_features),
                                      jnp.float32, -1.0 / np.sqrt(in_features),
                                      1.0 / np.sqrt(in_features))
    # hidden layers: uniform(+-sqrt(6/fan_in)/w0)  (sine_init)
    bnd = np.sqrt(6.0 / hidden_features) / w0
    for i in range(1, num_hidden_layers + 1):
        params[f"W{i}"] = jax.random.uniform(keys[next(ki)],
                                             (hidden_features, hidden_features),
                                             jnp.float32, -bnd, bnd)
        params[f"b{i}"] = jax.random.uniform(keys[next(ki)], (1, hidden_features),
                                             jnp.float32, -bnd, bnd)
    # output_linear heads: uniform(+-1/sqrt(fan_in))
    hb = 1.0 / np.sqrt(hidden_features)
    for i in range(num_hidden_layers):
        params[f"L{i}"] = jax.random.uniform(keys[next(ki)],
                                             (hidden_features, out_features),
                                             jnp.float32, -hb, hb)
        params[f"bl{i}"] = jax.random.uniform(keys[next(ki)], (1, out_features),
                                              jnp.float32, -hb, hb)
    return params


@functools.partial(jax.jit, static_argnames=("tile_n", "n_pad", "w0"))
def _run_pallas(coords_flat, params, *, tile_n, n_pad, w0):
    N, in_f = coords_flat.shape
    H = params["W0"].shape[1]
    out_f = params["L0"].shape[1]
    nh = NUM_HEADS * out_f
    w0f = jnp.float32(w0)

    # Heads consumed by trunk layers 1..3 are output_linear[0], [0], [1] (module quirk).
    head_w = [params["L0"], params["L0"], params["L1"]]
    head_b = [params["bl0"], params["bl0"], params["bl1"]]

    # Layer 0: plain w0-folded weights (exact: sin(w0*(x@W+b)) == sin(x@(w0 W)+w0 b)).
    weight_args = [params["W0"] * w0f, params["b0"] * w0f]
    # Layers 1..3: widen to (H, H+4*out_f) with head_{k-1} at lanes H+(k-1)*out_f.
    for k in range(1, NUM_HEADS):
        wpad = jnp.zeros((H, nh), jnp.float32)
        wpad = wpad.at[:, (k - 1) * out_f:k * out_f].set(head_w[k - 1])
        bpad = jnp.zeros((1, nh), jnp.float32)
        bpad = bpad.at[:, (k - 1) * out_f:k * out_f].set(head_b[k - 1])
        weight_args.append(jnp.concatenate([params[f"W{k}"] * w0f, wpad], axis=1))
        weight_args.append(jnp.concatenate([params[f"b{k}"] * w0f, bpad], axis=1))
    # Head 3 (output_linear[2]) weights: lane-dense row for the VPU reduce (out_f==1),
    # or (H, out_f) for a plain MXU dot otherwise.
    if out_f == 1:
        weight_args.append(params["L2"].T)          # (1, H)
    else:
        weight_args.append(params["L2"])            # (H, out_f)
    weight_args.append(params["bl2"])               # (1, out_f)

    # Zero-pad the row dimension (rows are independent; pad rows are sliced off later).
    coords_p = coords_flat
    if n_pad > N:
        coords_p = jnp.pad(coords_flat, ((0, n_pad - N), (0, 0)))

    kernel = functools.partial(_mlp_kernel, in_f=in_f, hidden=H, out_f=out_f)

    fused = pl.pallas_call(
        kernel,
        out_shape=jax.ShapeDtypeStruct((n_pad, nh), jnp.float32),
        grid_spec=pltpu.PrefetchScalarGridSpec(
            num_scalar_prefetch=0,
            grid=(n_pad // tile_n,),
            in_specs=[pl.BlockSpec((tile_n, in_f), lambda i: (i, 0))]
                     + [pl.BlockSpec(a.shape, lambda i: (0, 0)) for a in weight_args],
            out_specs=pl.BlockSpec((tile_n, nh), lambda i: (i, 0)),
        ),
        compiler_params=pltpu.CompilerParams(dimension_semantics=("parallel",)),
        # VMEM per step (coords/output blocks lane-pad to 128, weights ~0.6 MiB) is a
        # few MiB even at tile_n=1024 -> comfortably under every generation's limit.
    )(coords_p, *weight_args)
    return fused


def multiscale_coordinate_net_pallas(coords_flat, params, *, w0=W0_SINE, max_tile=1024):
    """coords_flat: (N, in_features) f32. Returns list of 4 (N, out_features) arrays."""
    N = coords_flat.shape[0]
    out_f = params["L0"].shape[1]
    tile_n, steps = _pick_tiling(N, max_tile)
    n_pad = tile_n * steps
    fused = _run_pallas(coords_flat, params, tile_n=tile_n, n_pad=n_pad, w0=float(w0))
    return [fused[:N, i * out_f:(i + 1) * out_f] for i in range(NUM_HEADS)]


def multiscale_coordinate_net_forward(model_input, params, *, w0=W0_SINE, max_tile=1024):
    """Mirrors MultiscaleCoordinateNet.forward: dict in -> dict out."""
    coords = model_input["coords"]                      # (..., in_features)
    lead_shape = coords.shape[:-1]
    in_f = coords.shape[-1]
    out_f = params["L0"].shape[1]
    coords_flat = coords.reshape(-1, in_f)
    outs_flat = multiscale_coordinate_net_pallas(coords_flat, params,
                                                 w0=w0, max_tile=max_tile)
    outputs = [o.reshape(*lead_shape, out_f) for o in outs_flat]
    return {"model_in": model_input, "model_out": {"output": outputs}}


def _reference_forward(coords_flat, params, w0=W0_SINE):
    """Pure-JAX reference of the same forward pass."""
    h = jnp.sin(w0 * (coords_flat @ params["W0"] + params["b0"]))
    outs = [h @ params["L0"] + params["bl0"]]
    h = jnp.sin(w0 * (h @ params["W1"] + params["b1"]))
    outs.append(h @ params["L0"] + params["bl0"])
    h = jnp.sin(w0 * (h @ params["W2"] + params["b2"]))
    outs.append(h @ params["L1"] + params["bl1"])
    h = jnp.sin(w0 * (h @ params["W3"] + params["b3"]))
    outs.append(h @ params["L2"] + params["bl2"])
    return outs


if __name__ == "__main__":
    # Small config consistent with the module: in_features=2, hidden=128,
    # num_hidden_layers=3, out_features=1, nl='sine', w0=30.
    in_features, hidden_features, out_features, num_hidden_layers = 2, 128, 1, 3

    key = jax.random.PRNGKey(0)
    kp, kc1, kc2 = jax.random.split(key, 3)
    params = init_params(kp, in_features, hidden_features, out_features, num_hidden_layers)

    # Case 1: N divisible by the chosen tile (batch=2, 64 points -> N=128, grid=2).
    coords = jax.random.uniform(kc1, (2, 64, in_features), jnp.float32, -1.0, 1.0)
    result = multiscale_coordinate_net_forward({"coords": coords}, params)
    outputs = result["model_out"]["output"]
    jax.block_until_ready(outputs)

    ref = _reference_forward(coords.reshape(-1, in_features), params)
    for got, want in zip(outputs, ref):
        np.testing.assert_allclose(np.asarray(got).reshape(-1, out_features),
                                   np.asarray(want), rtol=2e-3, atol=2e-3)
    assert len(outputs) == num_hidden_layers + 1
    assert all(o.shape == (2, 64, out_features) for o in outputs)

    # Case 2: ragged N (batch=2, 50 points -> N=100) exercises the zero-pad remainder path.
    coords2 = jax.random.uniform(kc2, (2, 50, in_features), jnp.float32, -1.0, 1.0)
    result2 = multiscale_coordinate_net_forward({"coords": coords2}, params)
    outputs2 = result2["model_out"]["output"]
    jax.block_until_ready(outputs2)

    ref2 = _reference_forward(coords2.reshape(-1, in_features), params)
    for got, want in zip(outputs2, ref2):
        np.testing.assert_allclose(np.asarray(got).reshape(-1, out_features),
                                   np.asarray(want), rtol=2e-3, atol=2e-3)
    assert all(o.shape == (2, 50, out_features) for o in outputs2)

    print("KERNEL_OK")
</pallas_src>

<mosaic_0001>
module attributes {stable_mosaic.version = 11 : i64} {
  func.func @_mlp_kernel(%arg0: i32, %arg1: memref<64x2xf32, #tpu.memory_space<vmem>>, %arg2: memref<2x128xf32, #tpu.memory_space<vmem>>, %arg3: memref<1x128xf32, #tpu.memory_space<vmem>>, %arg4: memref<128x132xf32, #tpu.memory_space<vmem>>, %arg5: memref<1x132xf32, #tpu.memory_space<vmem>>, %arg6: memref<128x132xf32, #tpu.memory_space<vmem>>, %arg7: memref<1x132xf32, #tpu.memory_space<vmem>>, %arg8: memref<128x132xf32, #tpu.memory_space<vmem>>, %arg9: memref<1x132xf32, #tpu.memory_space<vmem>>, %arg10: memref<1x128xf32, #tpu.memory_space<vmem>>, %arg11: memref<1x1xf32, #tpu.memory_space<vmem>>, %arg12: memref<64x4xf32, #tpu.memory_space<vmem>>) attributes {dimension_semantics = [#tpu.dimension_semantics<parallel>], iteration_bounds = array<i64: 2>, scalar_prefetch = 0 : i64, scratch_operands = 0 : i64, tpu.core_type = #tpu.core_type<tc>, window_params = [{transform_indices = @transform_0, window_bounds = array<i64: 64, 2>}, {pipeline_mode = #tpu.pipeline_mode<synchronous>, transform_indices = @transform_1, window_bounds = array<i64: 2, 128>}, {pipeline_mode = #tpu.pipeline_mode<synchronous>, transform_indices = @transform_2, window_bounds = array<i64: 1, 128>}, {pipeline_mode = #tpu.pipeline_mode<synchronous>, transform_indices = @transform_3, window_bounds = array<i64: 128, 132>}, {pipeline_mode = #tpu.pipeline_mode<synchronous>, transform_indices = @transform_4, window_bounds = array<i64: 1, 132>}, {pipeline_mode = #tpu.pipeline_mode<synchronous>, transform_indices = @transform_5, window_bounds = array<i64: 128, 132>}, {pipeline_mode = #tpu.pipeline_mode<synchronous>, transform_indices = @transform_6, window_bounds = array<i64: 1, 132>}, {pipeline_mode = #tpu.pipeline_mode<synchronous>, transform_indices = @transform_7, window_bounds = array<i64: 128, 132>}, {pipeline_mode = #tpu.pipeline_mode<synchronous>, transform_indices = @transform_8, window_bounds = array<i64: 1, 132>}, {pipeline_mode = #tpu.pipeline_mode<synchronous>, transform_indices = @transform_9, window_bounds = array<i64: 1, 128>}, {pipeline_mode = #tpu.pipeline_mode<synchronous>, transform_indices = @transform_10, window_bounds = array<i64: 1, 1>}, {transform_indices = @transform_11, window_bounds = array<i64: 64, 4>}]} {
    %c0 = arith.constant 0 : index
    %c0_0 = arith.constant 0 : index
    %0 = vector.load %arg1[%c0, %c0_0] : memref<64x2xf32, #tpu.memory_space<vmem>>, vector<64x2xf32>
    %1 = vector.extract_strided_slice %0 {offsets = [0, 0], sizes = [64, 1], strides = [1, 1]} : vector<64x2xf32> to vector<64x1xf32>
    %c0_1 = arith.constant 0 : index
    %c0_2 = arith.constant 0 : index
    %2 = vector.load %arg2[%c0_1, %c0_2] : memref<2x128xf32, #tpu.memory_space<vmem>>, vector<1x128xf32>
    %3 = vector.broadcast %1 : vector<64x1xf32> to vector<64x128xf32>
    %4 = vector.broadcast %2 : vector<1x128xf32> to vector<64x128xf32>
    %5 = arith.mulf %3, %4 : vector<64x128xf32>
    %6 = vector.extract_strided_slice %0 {offsets = [0, 1], sizes = [64, 1], strides = [1, 1]} : vector<64x2xf32> to vector<64x1xf32>
    %c1 = arith.constant 1 : index
    %c0_3 = arith.constant 0 : index
    %7 = vector.load %arg2[%c1, %c0_3] : memref<2x128xf32, #tpu.memory_space<vmem>>, vector<1x128xf32>
    %8 = vector.broadcast %6 : vector<64x1xf32> to vector<64x128xf32>
    %9 = vector.broadcast %7 : vector<1x128xf32> to vector<64x128xf32>
    %10 = arith.mulf %8, %9 : vector<64x128xf32>
    %11 = arith.addf %5, %10 : vector<64x128xf32>
    %c0_4 = arith.constant 0 : index
    %c0_5 = arith.constant 0 : index
    %12 = vector.load %arg3[%c0_4, %c0_5] : memref<1x128xf32, #tpu.memory_space<vmem>>, vector<1x128xf32>
    %13 = vector.broadcast %12 : vector<1x128xf32> to vector<64x128xf32>
    %14 = arith.addf %11, %13 : vector<64x128xf32>
    %15 = math.sin %14 : vector<64x128xf32>
    %c0_6 = arith.constant 0 : index
    %c0_7 = arith.constant 0 : index
    %16 = vector.load %arg4[%c0_6, %c0_7] : memref<128x132xf32, #tpu.memory_space<vmem>>, vector<128x132xf32>
    %cst = arith.constant dense<0.000000e+00> : vector<64x132xf32>
    %17 = tpu.matmul %15, %16, %cst {dimension_numbers = #tpu.dot_dimension_numbers<[1], [0], [0], [1], [0, 0, 1, 1], [], []>} : vector<64x128xf32>, vector<128x132xf32>, vector<64x132xf32> -> vector<64x132xf32>
    %c0_8 = arith.constant 0 : index
    %c0_9 = arith.constant 0 : index
    %18 = vector.load %arg5[%c0_8, %c0_9] : memref<1x132xf32, #tpu.memory_space<vmem>>, vector<1x132xf32>
    %19 = vector.broadcast %18 : vector<1x132xf32> to vector<64x132xf32>
    %20 = arith.addf %17, %19 : vector<64x132xf32>
    %21 = vector.extract_strided_slice %20 {offsets = [0, 0], sizes = [64, 128], strides = [1, 1]} : vector<64x132xf32> to vector<64x128xf32>
    %22 = math.sin %21 : vector<64x128xf32>
    %c0_10 = arith.constant 0 : index
    %c0_11 = arith.constant 0 : index
    %23 = vector.load %arg6[%c0_10, %c0_11] : memref<128x132xf32, #tpu.memory_space<vmem>>, vector<128x132xf32>
    %cst_12 = arith.constant dense<0.000000e+00> : vector<64x132xf32>
    %24 = tpu.matmul %22, %23, %cst_12 {dimension_numbers = #tpu.dot_dimension_numbers<[1], [0], [0], [1], [0, 0, 1, 1], [], []>} : vector<64x128xf32>, vector<128x132xf32>, vector<64x132xf32> -> vector<64x132xf32>
    %c0_13 = arith.constant 0 : index
    %c0_14 = arith.constant 0 : index
    %25 = vector.load %arg7[%c0_13, %c0_14] : memref<1x132xf32, #tpu.memory_space<vmem>>, vector<1x132xf32>
    %26 = vector.broadcast %25 : vector<1x132xf32> to vector<64x132xf32>
    %27 = arith.addf %24, %26 : vector<64x132xf32>
    %28 = vector.extract_strided_slice %27 {offsets = [0, 0], sizes = [64, 128], strides = [1, 1]} : vector<64x132xf32> to vector<64x128xf32>
    %29 = math.sin %28 : vector<64x128xf32>
    %c0_15 = arith.constant 0 : index
    %c0_16 = arith.constant 0 : index
    %30 = vector.load %arg8[%c0_15, %c0_16] : memref<128x132xf32, #tpu.memory_space<vmem>>, vector<128x132xf32>
    %cst_17 = arith.constant dense<0.000000e+00> : vector<64x132xf32>
    %31 = tpu.matmul %29, %30, %cst_17 {dimension_numbers = #tpu.dot_dimension_numbers<[1], [0], [0], [1], [0, 0, 1, 1], [], []>} : vector<64x128xf32>, vector<128x132xf32>, vector<64x132xf32> -> vector<64x132xf32>
    %c0_18 = arith.constant 0 : index
    %c0_19 = arith.constant 0 : index
    %32 = vector.load %arg9[%c0_18, %c0_19] : memref<1x132xf32, #tpu.memory_space<vmem>>, vector<1x132xf32>
    %33 = vector.broadcast %32 : vector<1x132xf32> to vector<64x132xf32>
    %34 = arith.addf %31, %33 : vector<64x132xf32>
    %35 = vector.extract_strided_slice %34 {offsets = [0, 0], sizes = [64, 128], strides = [1, 1]} : vector<64x132xf32> to vector<64x128xf32>
    %36 = math.sin %35 : vector<64x128xf32>
    %37 = vector.extract_strided_slice %20 {offsets = [0, 128], sizes = [64, 4], strides = [1, 1]} : vector<64x132xf32> to vector<64x4xf32>
    %38 = vector.extract_strided_slice %27 {offsets = [0, 128], sizes = [64, 4], strides = [1, 1]} : vector<64x132xf32> to vector<64x4xf32>
    %39 = arith.addf %37, %38 : vector<64x4xf32>
    %40 = vector.extract_strided_slice %34 {offsets = [0, 128], sizes = [64, 4], strides = [1, 1]} : vector<64x132xf32> to vector<64x4xf32>
    %41 = arith.addf %39, %40 : vector<64x4xf32>
    %c0_20 = arith.constant 0 : index
    %c0_21 = arith.constant 0 : index
    %42 = vector.load %arg10[%c0_20, %c0_21] : memref<1x128xf32, #tpu.memory_space<vmem>>, vector<1x128xf32>
    %43 = vector.broadcast %42 : vector<1x128xf32> to vector<64x128xf32>
    %44 = arith.mulf %36, %43 : vector<64x128xf32>
    %cst_22 = arith.constant dense<0.000000e+00> : vector<64xf32>
    %45 = vector.multi_reduction <add>, %44, %cst_22 [1] : vector<64x128xf32> to vector<64xf32>
    %46 = vector.shape_cast %45 : vector<64xf32> to vector<64x1xf32>
    %c0_23 = arith.constant 0 : index
    %c0_24 = arith.constant 0 : index
    %47 = vector.load %arg11[%c0_23, %c0_24] : memref<1x1xf32, #tpu.memory_space<vmem>>, vector<1x1xf32>
    %48 = vector.broadcast %47 : vector<1x1xf32> to vector<64x1xf32>
    %49 = arith.addf %46, %48 : vector<64x1xf32>
    %50 = tpu.iota {dimensions = array<i32: 1>} : vector<64x4xi32>
    %c3_i32 = arith.constant 3 : i32
    %51 = vector.broadcast %c3_i32 : i32 to vector<64x4xi32>
    %52 = arith.cmpi eq, %50, %51 : vector<64x4xi32>
    %53 = vector.shape_cast %49 : vector<64x1xf32> to vector<64x1xf32>
    %54 = vector.broadcast %53 : vector<64x1xf32> to vector<64x4xf32>
    %55 = arith.select %52, %54, %41 : vector<64x4xi1>, vector<64x4xf32>
    %c0_25 = arith.constant 0 : index
    %c0_26 = arith.constant 0 : index
    %56 = vector.load %arg12[%c0_25, %c0_26] : memref<64x4xf32, #tpu.memory_space<vmem>>, vector<64x4xf32>
    tpu.vector_store %arg12[%c0_25, %c0_26], %55 {strides = array<i32>} : memref<64x4xf32, #tpu.memory_space<vmem>>, vector<64x4xf32>,
    return
  }
  func.func @transform_0(%arg0: i32) -> (i32, i32) {
    %c0_i32 = arith.constant 0 : i32
    %c0_i32_0 = arith.constant 0 : i32
    return %arg0, %c0_i32 : i32, i32
  }
  func.func @transform_1(%arg0: i32) -> (i32, i32) {
    %c0_i32 = arith.constant 0 : i32
    %c0_i32_0 = arith.constant 0 : i32
    %c0_i32_1 = arith.constant 0 : i32
    return %c0_i32, %c0_i32_0 : i32, i32
  }
  func.func @transform_2(%arg0: i32) -> (i32, i32) {
    %c0_i32 = arith.constant 0 : i32
    %c0_i32_0 = arith.constant 0 : i32
    %c0_i32_1 = arith.constant 0 : i32
    return %c0_i32, %c0_i32_0 : i32, i32
  }
  func.func @transform_3(%arg0: i32) -> (i32, i32) {
    %c0_i32 = arith.constant 0 : i32
    %c0_i32_0 = arith.constant 0 : i32
    %c0_i32_1 = arith.constant 0 : i32
    return %c0_i32, %c0_i32_0 : i32, i32
  }
  func.func @transform_4(%arg0: i32) -> (i32, i32) {
    %c0_i32 = arith.constant 0 : i32
    %c0_i32_0 = arith.constant 0 : i32
    %c0_i32_1 = arith.constant 0 : i32
    return %c0_i32, %c0_i32_0 : i32, i32
  }
  func.func @transform_5(%arg0: i32) -> (i32, i32) {
    %c0_i32 = arith.constant 0 : i32
    %c0_i32_0 = arith.constant 0 : i32
    %c0_i32_1 = arith.constant 0 : i32
    return %c0_i32, %c0_i32_0 : i32, i32
  }
  func.func @transform_6(%arg0: i32) -> (i32, i32) {
    %c0_i32 = arith.constant 0 : i32
    %c0_i32_0 = arith.constant 0 : i32
    %c0_i32_1 = arith.constant 0 : i32
    return %c0_i32, %c0_i32_0 : i32, i32
  }
  func.func @transform_7(%arg0: i32) -> (i32, i32) {
    %c0_i32 = arith.constant 0 : i32
    %c0_i32_0 = arith.constant 0 : i32
    %c0_i32_1 = arith.constant 0 : i32
    return %c0_i32, %c0_i32_0 : i32, i32
  }
  func.func @transform_8(%arg0: i32) -> (i32, i32) {
    %c0_i32 = arith.constant 0 : i32
    %c0_i32_0 = arith.constant 0 : i32
    %c0_i32_1 = arith.constant 0 : i32
    return %c0_i32, %c0_i32_0 : i32, i32
  }
  func.func @transform_9(%arg0: i32) -> (i32, i32) {
    %c0_i32 = arith.constant 0 : i32
    %c0_i32_0 = arith.constant 0 : i32
    %c0_i32_1 = arith.constant 0 : i32
    return %c0_i32, %c0_i32_0 : i32, i32
  }
  func.func @transform_10(%arg0: i32) -> (i32, i32) {
    %c0_i32 = arith.constant 0 : i32
    %c0_i32_0 = arith.constant 0 : i32
    %c0_i32_1 = arith.constant 0 : i32
    return %c0_i32, %c0_i32_0 : i32, i32
  }
  func.func @transform_11(%arg0: i32) -> (i32, i32) {
    %c0_i32 = arith.constant 0 : i32
    %c0_i32_0 = arith.constant 0 : i32
    return %arg0, %c0_i32 : i32, i32
  }
}

</mosaic_0001>

<llo_original>
// kernel: _run_pallas.1
$region0: #{_run_pallas.1}
  #allocation0 [shape = 'u32[]', space=smem, size = 0x4, offset = 0x4, fixed_abs, tag = 'smem constant byte address 0x4 - core index']
  #allocation1 [shape = 'u32[144,128]{1,0:T(1,128)}', space=vmem, size = 0x12000, scoped, tag = 'internal scratch']
  #allocation2 [shape = 'f32[1,1]{1,0:T(1,128)S(1)}', space=vmem, size = 0x200, scoped, tag = 'scoped memory for _run_pallas.1']
  %s0 = inlined_call_operand.vmem [shape: f32[128,2], index: 0, kind: input, shape index: {}]
  %s1 = inlined_call_operand.vmem [shape: f32[2,128], index: 1, kind: input, shape index: {}]
  %s2 = inlined_call_operand.vmem [shape: f32[1,128], index: 2, kind: input, shape index: {}]
  %s3 = inlined_call_operand.vmem [shape: f32[128,132], index: 3, kind: input, shape index: {}]
  %s4 = inlined_call_operand.vmem [shape: f32[1,132], index: 4, kind: input, shape index: {}]
  %s5 = inlined_call_operand.vmem [shape: f32[128,132], index: 5, kind: input, shape index: {}]
  %s6 = inlined_call_operand.vmem [shape: f32[1,132], index: 6, kind: input, shape index: {}]
  %s7 = inlined_call_operand.vmem [shape: f32[128,132], index: 7, kind: input, shape index: {}]
  %s8 = inlined_call_operand.vmem [shape: f32[1,132], index: 8, kind: input, shape index: {}]
  %s9 = inlined_call_operand.vmem [shape: f32[1,128], index: 9, kind: input, shape index: {}]
  %s10 = inlined_call_operand.<no memory space> [shape: f32[1,1], index: 10, kind: input, shape index: {}]
  %s11 = inlined_call_operand.vmem [shape: f32[128,4], index: 11, kind: output, shape index: {}]
  %s12 = sld [smem:[#allocation0]]
  $region77: #{_run_pallas.1} parent=0
    _
  %s14 = ssub.s32 1, %s12
  %s15 = scalar_select 0, %s14, %s12
  %v16 = vstv %s10
  %17 = vst [vmem:[#allocation2] sm:$0x1] %v16
  loop: start=0, step=1, limit=4
  $region2: #{_run_pallas.1} parent=0 // loop_pre_header
    _
  $region3: #{_run_pallas.1} parent=0 // loop_header
    %s19 = sphi 0, %s23
    %p20 = scmp.ge.s32.totalorder %s19, 4
    %s29 = sphi 0, %s31
    %s32 = sphi 0, %s29
    %s33 = sphi 0, %s32
    %s49 = sphi 0, %s33
    %s53 = sphi 0, %s53
    %s55 = sphi 0, %s53
    %s56 = sphi 0, %s55
    %s70 = sphi 0, %s56
    %s74 = sphi 0, %s74
    %s76 = sphi 0, %s74
    %s77 = sphi 0, %s76
    %s91 = sphi 0, %s77
    %s95 = sphi 0, %s95
    %s97 = sphi 0, %s95
    %s98 = sphi 0, %s97
    %s112 = sphi 0, %s98
    %s116 = sphi 0, %s116
    %s118 = sphi 0, %s116
    %s119 = sphi 0, %s118
    %s133 = sphi 0, %s119
    %s137 = sphi 0, %s137
    %s139 = sphi 0, %s137
    %s140 = sphi 0, %s139
    %s154 = sphi 0, %s140
    %s158 = sphi 0, %s158
    %s160 = sphi 0, %s158
    %s161 = sphi 0, %s160
    %s175 = sphi 0, %s161
    %s179 = sphi 0, %s179
    %s181 = sphi 0, %s179
    %s182 = sphi 0, %s181
    %s196 = sphi 0, %s182
    %s200 = sphi 0, %s200
    %s202 = sphi 0, %s200
    %s203 = sphi 0, %s202
    %s217 = sphi 0, %s203
    %s221 = sphi 0, %s221
    %s223 = sphi 0, %s221
    %s224 = sphi 0, %s223
    %s238 = sphi 0, %s224
    %s242 = sphi 0, %s242
    %s244 = sphi 0, %s242
    %s245 = sphi 0, %s244
    %s259 = sphi 0, %s245
    %s265 = sphi 0, %s267
    %s268 = sphi 0, %s265
    %s269 = sphi 0, %s268
    %s285 = sphi 0, %s269
  $region4: #{_run_pallas.1} parent=0 // loop_header_branch
    %22 = sbr.rel (%p20) target = $region8
  $region5: #{_run_pallas.1} parent=0 // loop_body
    %s24 = ssub.s32 %s19, 1
    %s25 = ssub.s32 %s19, 2
    %s26 = sadd.s32 %s19, 1
    %s27 = ssub.s32 %s19, %s26
    %p28 = scmp.eq.s32.totalorder %s27, 0
    %s30 = sadd.s32 %s29, 1
    %s31 = scalar_select %p28, %s29, %s30
    %p34 = pneg %p28
    %p35 = scmp.eq.s32.totalorder %s19, 1
    %p36 = por %p34, %p35
    %p37 = scmp.ne.s32.totalorder %s29, %s32
    %p38 = scmp.eq.s32.totalorder %s19, 0
    %p39 = por %p37, %p38
    %p40 = scmp.ne.s32.totalorder %s29, %s32
    %p41 = scmp.eq.s32.totalorder %s24, 1
    %p42 = por %p40, %p41
    %p43 = scmp.ne.s32.totalorder %s32, %s33
    %p44 = scmp.eq.s32.totalorder %s24, 0
    %p45 = por %p43, %p44
    %p46 = scmp.ne.s32.totalorder %s32, %s33
    %p47 = scmp.eq.s32.totalorder %s25, 1
    %p48 = por %p46, %p47
    %p50 = scmp.ne.s32.totalorder %s33, %s49
    %p51 = scmp.eq.s32.totalorder %s25, 0
    %p52 = por %p50, %p51
    %s54 = sadd.s32 %s53, 1
    %p57 = scmp.eq.s32.totalorder %s19, 1
    %p58 = scmp.ne.s32.totalorder %s53, %s55
    %p59 = scmp.eq.s32.totalorder %s19, 0
    %p60 = por %p58, %p59
    %p61 = scmp.ne.s32.totalorder %s53, %s55
    %p62 = scmp.eq.s32.totalorder %s24, 1
    %p63 = por %p61, %p62
    %p64 = scmp.ne.s32.totalorder %s55, %s56
    %p65 = scmp.eq.s32.totalorder %s24, 0
    %p66 = por %p64, %p65
    %p67 = scmp.ne.s32.totalorder %s55, %s56
    %p68 = scmp.eq.s32.totalorder %s25, 1
    %p69 = por %p67, %p68
    %p71 = scmp.ne.s32.totalorder %s56, %s70
    %p72 = scmp.eq.s32.totalorder %s25, 0
    %p73 = por %p71, %p72
    %s75 = sadd.s32 %s74, 1
    %p78 = scmp.eq.s32.totalorder %s19, 1
    %p79 = scmp.ne.s32.totalorder %s74, %s76
    %p80 = scmp.eq.s32.totalorder %s19, 0
    %p81 = por %p79, %p80
    %p82 = scmp.ne.s32.totalorder %s74, %s76
    %p83 = scmp.eq.s32.totalorder %s24, 1
    %p84 = por %p82, %p83
    %p85 = scmp.ne.s32.totalorder %s76, %s77
    %p86 = scmp.eq.s32.totalorder %s24, 0
    %p87 = por %p85, %p86
    %p88 = scmp.ne.s32.totalorder %s76, %s77
    %p89 = scmp.eq.s32.totalorder %s25, 1
    %p90 = por %p88, %p89
    %p92 = scmp.ne.s32.totalorder %s77, %s91
    %p93 = scmp.eq.s32.totalorder %s25, 0
    %p94 = por %p92, %p93
    %s96 = sadd.s32 %s95, 1
    %p99 = scmp.eq.s32.totalorder %s19, 1
    %p100 = scmp.ne.s32.totalorder %s95, %s97
    %p101 = scmp.eq.s32.totalorder %s19, 0
    %p102 = por %p100, %p101
    %p103 = scmp.ne.s32.totalorder %s95, %s97
    %p104 = scmp.eq.s32.totalorder %s24, 1
    %p105 = por %p103, %p104
    %p106 = scmp.ne.s32.totalorder %s97, %s98
    %p107 = scmp.eq.s32.totalorder %s24, 0
    %p108 = por %p106, %p107
    %p109 = scmp.ne.s32.totalorder %s97, %s98
    %p110 = scmp.eq.s32.totalorder %s25, 1
    %p111 = por %p109, %p110
    %p113 = scmp.ne.s32.totalorder %s98, %s112
    %p114 = scmp.eq.s32.totalorder %s25, 0
    %p115 = por %p113, %p114
    %s117 = sadd.s32 %s116, 1
    %p120 = scmp.eq.s32.totalorder %s19, 1
    %p121 = scmp.ne.s32.totalorder %s116, %s118
    %p122 = scmp.eq.s32.totalorder %s19, 0
    %p123 = por %p121, %p122
    %p124 = scmp.ne.s32.totalorder %s116, %s118
    %p125 = scmp.eq.s32.totalorder %s24, 1
    %p126 = por %p124, %p125
    %p127 = scmp.ne.s32.totalorder %s118, %s119
    %p128 = scmp.eq.s32.totalorder %s24, 0
    %p129 = por %p127, %p128
    %p130 = scmp.ne.s32.totalorder %s118, %s119
    %p131 = scmp.eq.s32.totalorder %s25, 1
    %p132 = por %p130, %p131
    %p134 = scmp.ne.s32.totalorder %s119, %s133
    %p135 = scmp.eq.s32.totalorder %s25, 0
    %p136 = por %p134, %p135
    %s138 = sadd.s32 %s137, 1
    %p141 = scmp.eq.s32.totalorder %s19, 1
    %p142 = scmp.ne.s32.totalorder %s137, %s139
    %p143 = scmp.eq.s32.totalorder %s19, 0
    %p144 = por %p142, %p143
    %p145 = scmp.ne.s32.totalorder %s137, %s139
    %p146 = scmp.eq.s32.totalorder %s24, 1
    %p147 = por %p145, %p146
    %p148 = scmp.ne.s32.totalorder %s139, %s140
    %p149 = scmp.eq.s32.totalorder %s24, 0
    %p150 = por %p148, %p149
    %p151 = scmp.ne.s32.totalorder %s139, %s140
    %p152 = scmp.eq.s32.totalorder %s25, 1
    %p153 = por %p151, %p152
    %p155 = scmp.ne.s32.totalorder %s140, %s154
    %p156 = scmp.eq.s32.totalorder %s25, 0
    %p157 = por %p155, %p156
    %s159 = sadd.s32 %s158, 1
    %p162 = scmp.eq.s32.totalorder %s19, 1
    %p163 = scmp.ne.s32.totalorder %s158, %s160
    %p164 = scmp.eq.s32.totalorder %s19, 0
    %p165 = por %p163, %p164
    %p166 = scmp.ne.s32.totalorder %s158, %s160
    %p167 = scmp.eq.s32.totalorder %s24, 1
    %p168 = por %p166, %p167
    %p169 = scmp.ne.s32.totalorder %s160, %s161
    %p170 = scmp.eq.s32.totalorder %s24, 0
    %p171 = por %p169, %p170
    %p172 = scmp.ne.s32.totalorder %s160, %s161
    %p173 = scmp.eq.s32.totalorder %s25, 1
    %p174 = por %p172, %p173
    %p176 = scmp.ne.s32.totalorder %s161, %s175
    %p177 = scmp.eq.s32.totalorder %s25, 0
    %p178 = por %p176, %p177
    %s180 = sadd.s32 %s179, 1
    %p183 = scmp.eq.s32.totalorder %s19, 1
    %p184 = scmp.ne.s32.totalorder %s179, %s181
    %p185 = scmp.eq.s32.totalorder %s19, 0
    %p186 = por %p184, %p185
    %p187 = scmp.ne.s32.totalorder %s179, %s181
    %p188 = scmp.eq.s32.totalorder %s24, 1
    %p189 = por %p187, %p188
    %p190 = scmp.ne.s32.totalorder %s181, %s182
    %p191 = scmp.eq.s32.totalorder %s24, 0
    %p192 = por %p190, %p191
    %p193 = scmp.ne.s32.totalorder %s181, %s182
    %p194 = scmp.eq.s32.totalorder %s25, 1
    %p195 = por %p193, %p194
    %p197 = scmp.ne.s32.totalorder %s182, %s196
    %p198 = scmp.eq.s32.totalorder %s25, 0
    %p199 = por %p197, %p198
    %s201 = sadd.s32 %s200, 1
    %p204 = scmp.eq.s32.totalorder %s19, 1
    %p205 = scmp.ne.s32.totalorder %s200, %s202
    %p206 = scmp.eq.s32.totalorder %s19, 0
    %p207 = por %p205, %p206
    %p208 = scmp.ne.s32.totalorder %s200, %s202
    %p209 = scmp.eq.s32.totalorder %s24, 1
    %p210 = por %p208, %p209
    %p211 = scmp.ne.s32.totalorder %s202, %s203
    %p212 = scmp.eq.s32.totalorder %s24, 0
    %p213 = por %p211, %p212
    %p214 = scmp.ne.s32.totalorder %s202, %s203
    %p215 = scmp.eq.s32.totalorder %s25, 1
    %p216 = por %p214, %p215
    %p218 = scmp.ne.s32.totalorder %s203, %s217
    %p219 = scmp.eq.s32.totalorder %s25, 0
    %p220 = por %p218, %p219
    %s222 = sadd.s32 %s221, 1
    %p225 = scmp.eq.s32.totalorder %s19, 1
    %p226 = scmp.ne.s32.totalorder %s221, %s223
    %p227 = scmp.eq.s32.totalorder %s19, 0
    %p228 = por %p226, %p227
    %p229 = scmp.ne.s32.totalorder %s221, %s223
    %p230 = scmp.eq.s32.totalorder %s24, 1
    %p231 = por %p229, %p230
    %p232 = scmp.ne.s32.totalorder %s223, %s224
    %p233 = scmp.eq.s32.totalorder %s24, 0
    %p234 = por %p232, %p233
    %p235 = scmp.ne.s32.totalorder %s223, %s224
    %p236 = scmp.eq.s32.totalorder %s25, 1
    %p237 = por %p235, %p236
    %p239 = scmp.ne.s32.totalorder %s224, %s238
    %p240 = scmp.eq.s32.totalorder %s25, 0
    %p241 = por %p239, %p240
    %s243 = sadd.s32 %s242, 1
    %p246 = scmp.eq.s32.totalorder %s19, 1
    %p247 = scmp.ne.s32.totalorder %s242, %s244
    %p248 = scmp.eq.s32.totalorder %s19, 0
    %p249 = por %p247, %p248
    %p250 = scmp.ne.s32.totalorder %s242, %s244
    %p251 = scmp.eq.s32.totalorder %s24, 1
    %p252 = por %p250, %p251
    %p253 = scmp.ne.s32.totalorder %s244, %s245
    %p254 = scmp.eq.s32.totalorder %s24, 0
    %p255 = por %p253, %p254
    %p256 = scmp.ne.s32.totalorder %s244, %s245
    %p257 = scmp.eq.s32.totalorder %s25, 1
    %p258 = por %p256, %p257
    %p260 = scmp.ne.s32.totalorder %s245, %s259
    %p261 = scmp.eq.s32.totalorder %s25, 0
    %p262 = por %p260, %p261
    %s263 = ssub.s32 %s19, %s26
    %p264 = scmp.eq.s32.totalorder %s263, 0
    %s266 = sadd.s32 %s265, 1
    %s267 = scalar_select %p264, %s265, %s266
    %p270 = pneg %p264
    %p271 = scmp.eq.s32.totalorder %s19, 1
    %p272 = por %p270, %p271
    %p273 = scmp.ne.s32.totalorder %s265, %s268
    %p274 = scmp.eq.s32.totalorder %s19, 0
    %p275 = por %p273, %p274
    %p276 = scmp.ne.s32.totalorder %s265, %s268
    %p277 = scmp.eq.s32.totalorder %s24, 1
    %p278 = por %p276, %p277
    %p279 = scmp.ne.s32.totalorder %s268, %s269
    %p280 = scmp.eq.s32.totalorder %s24, 0
    %p281 = por %p279, %p280
    %p282 = scmp.ne.s32.totalorder %s268, %s269
    %p283 = scmp.eq.s32.totalorder %s25, 1
    %p284 = por %p282, %p283
    %p286 = scmp.ne.s32.totalorder %s269, %s285
    %p287 = scmp.eq.s32.totalorder %s25, 0
    %p288 = por %p286, %p287
    %p289 = scmp.le.s32.totalorder 1, %s19
    %p290 = scmp.lt.s32.totalorder %s19, 3
    %p291 = pnand %p289, %p290
    %p292 = pneg %p291
    // Predicated region
    $region9: #{_run_pallas.1} parent=5 // pred_check
      _
    $region10: #{_run_pallas.1} parent=5 // pred_check_branch
      %294 = sbr.rel (%p291) target = $region12
    $region11: #{_run_pallas.1} parent=5 // pred_region
      %s295 = ssub.s32 %s19, 1
      // Predicated region
      $region13: #{_run_pallas.1} parent=11 // pred_check
        %p296 = pneg %p66
      $region14: #{_run_pallas.1} parent=11 // pred_check_branch
        %298 = sbr.rel (%p296) target = $region16
      $region15: #{_run_pallas.1} parent=11 // pred_region
        _
      $region16: #{_run_pallas.1} parent=11 // pred_fallthru
        _
      // Predicated region
      $region17: #{_run_pallas.1} parent=11 // pred_check
        %p299 = pneg %p87
      $region18: #{_run_pallas.1} parent=11 // pred_check_branch
        %301 = sbr.rel (%p299) target = $region20
      $region19: #{_run_pallas.1} parent=11 // pred_region
        _
      $region20: #{_run_pallas.1} parent=11 // pred_fallthru
        _
      // Predicated region
      $region21: #{_run_pallas.1} parent=11 // pred_check
        %p302 = pneg %p108
      $region22: #{_run_pallas.1} parent=11 // pred_check_branch
        %304 = sbr.rel (%p302) target = $region24
      $region23: #{_run_pallas.1} parent=11 // pred_region
        _
      $region24: #{_run_pallas.1} parent=11 // pred_fallthru
        _
      // Predicated region
      $region25: #{_run_pallas.1} parent=11 // pred_check
        %p305 = pneg %p129
      $region26: #{_run_pallas.1} parent=11 // pred_check_branch
        %307 = sbr.rel (%p305) target = $region28
      $region27: #{_run_pallas.1} parent=11 // pred_region
        _
      $region28: #{_run_pallas.1} parent=11 // pred_fallthru
        _
      // Predicated region
      $region29: #{_run_pallas.1} parent=11 // pred_check
        %p308 = pneg %p150
      $region30: #{_run_pallas.1} parent=11 // pred_check_branch
        %310 = sbr.rel (%p308) target = $region32
      $region31: #{_run_pallas.1} parent=11 // pred_region
        _
      $region32: #{_run_pallas.1} parent=11 // pred_fallthru
        _
      // Predicated region
      $region33: #{_run_pallas.1} parent=11 // pred_check
        %p311 = pneg %p171
      $region34: #{_run_pallas.1} parent=11 // pred_check_branch
        %313 = sbr.rel (%p311) target = $region36
      $region35: #{_run_pallas.1} parent=11 // pred_region
        _
      $region36: #{_run_pallas.1} parent=11 // pred_fallthru
        _
      // Predicated region
      $region37: #{_run_pallas.1} parent=11 // pred_check
        %p314 = pneg %p192
      $region38: #{_run_pallas.1} parent=11 // pred_check_branch
        %316 = sbr.rel (%p314) target = $region40
      $region39: #{_run_pallas.1} parent=11 // pred_region
        _
      $region40: #{_run_pallas.1} parent=11 // pred_fallthru
        _
      // Predicated region
      $region41: #{_run_pallas.1} parent=11 // pred_check
        %p317 = pneg %p213
      $region42: #{_run_pallas.1} parent=11 // pred_check_branch
        %319 = sbr.rel (%p317) target = $region44
      $region43: #{_run_pallas.1} parent=11 // pred_region
        _
      $region44: #{_run_pallas.1} parent=11 // pred_fallthru
        _
      // Predicated region
      $region45: #{_run_pallas.1} parent=11 // pred_check
        %p320 = pneg %p234
      $region46: #{_run_pallas.1} parent=11 // pred_check_branch
        %322 = sbr.rel (%p320) target = $region48
      $region47: #{_run_pallas.1} parent=11 // pred_region
        _
      $region48: #{_run_pallas.1} parent=11 // pred_fallthru
        _
      // Predicated region
      $region49: #{_run_pallas.1} parent=11 // pred_check
        %p323 = pneg %p255
      $region50: #{_run_pallas.1} parent=11 // pred_check_branch
        %325 = sbr.rel (%p323) target = $region52
      $region51: #{_run_pallas.1} parent=11 // pred_region
        _
      $region52: #{_run_pallas.1} parent=11 // pred_fallthru
        _
    $region12: #{_run_pallas.1} parent=5 // pred_fallthru
      _
    %p326 = scmp.lt.s32.totalorder %s19, 2
    // Predicated region
    $region53: #{_run_pallas.1} parent=5 // pred_check
      %p327 = pneg %p326
    $region54: #{_run_pallas.1} parent=5 // pred_check_branch
      %329 = sbr.rel (%p327) target = $region56
    $region55: #{_run_pallas.1} parent=5 // pred_region
      // Predicated region
      $region57: #{_run_pallas.1} parent=55 // pred_check
        %p330 = pneg %p39
      $region58: #{_run_pallas.1} parent=55 // pred_check_branch
        %332 = sbr.rel (%p330) target = $region60
      $region59: #{_run_pallas.1} parent=55 // pred_region
        %s333 = smul.u32 8, %s19
        %p334 = scmp.lt.s32.totalorder %s333, 15
        %s335 = scalar_select %p334, %s333, 15
        %s336 = smul.addr %s335, 8
        %s337 = scalar_lea.vmem %s0, %s336
        %s338 = smul.u32 8, %s19
      $region60: #{_run_pallas.1} parent=55 // pred_fallthru
        _
    $region56: #{_run_pallas.1} parent=5 // pred_fallthru
      _
    %p339 = scmp.le.s32.totalorder 1, %s19
    %p340 = scmp.lt.s32.totalorder %s19, 3
    %p341 = pnand %p339, %p340
    %p342 = pneg %p341
    // Predicated region
    $region61: #{_run_pallas.1} parent=5 // pred_check
      _
    $region62: #{_run_pallas.1} parent=5 // pred_check_branch
      %344 = sbr.rel (%p341) target = $region64
    $region63: #{_run_pallas.1} parent=5 // pred_region
      %s345 = ssub.s32 %s19, 1
      %s346 = smul.u32 8, %s24
      %p347 = scmp.lt.s32.totalorder %s346, 15
      %s348 = scalar_select %p347, %s346, 15
      %s349 = smul.addr %s348, 8
      %s350 = scalar_lea.vmem %s0, %s349
      %p351 = pneg %p45
      %p352 = pneg %p42
      %p353 = pneg %p66
      %p354 = pneg %p63
      %p355 = pneg %p87
      %p356 = pneg %p84
      %p357 = pneg %p108
      %p358 = pneg %p105
      %p359 = pneg %p129
      %p360 = pneg %p126
      %p361 = pneg %p150
      %p362 = pneg %p147
      %p363 = pneg %p171
      %p364 = pneg %p168
      %p365 = pneg %p192
      %p366 = pneg %p189
      %p367 = pneg %p213
      %p368 = pneg %p210
      %p369 = pneg %p234
      %p370 = pneg %p231
      %p371 = pneg %p255
      %p372 = pneg %p252
      %p373 = pneg %p281
      %p374 = pneg %p278
      %s375 = smul.u32 8, %s24
      %p376 = scmp.lt.s32.totalorder %s375, 15
      %s377 = scalar_select %p376, %s375, 15
      %s378 = smul.addr %s377, 8
      %s379 = scalar_lea.vmem %s11, %s378
      %s380 = smul.u32 8, %s24
      %p381 = scmp.lt.s32.totalorder %s380, 15
      %s382 = scalar_select %p381, %s380, 15
      %s383 = smul.addr %s382, 8
      %s384 = scalar_lea.vmem %s0, %s383
      %s385 = smul.u32 8, %s24
      %s386 = smul.u32 8, %s24
      %p387 = scmp.lt.s32.totalorder %s386, 15
      %s388 = scalar_select %p387, %s386, 15
      %s389 = smul.addr %s388, 8
      %s390 = scalar_lea.vmem %s11, %s389
      %s391 = smul.u32 8, %s24
      %v392 = vld [vmem:[%s384] sm:$0xff]
      %v393 = vld [vmem:[%s384 + $0x8] sm:$0xff]
      %v394 = vld [vmem:[%s384 + $0x10] sm:$0xff]
      %v395 = vld [vmem:[%s384 + $0x18] sm:$0xff]
      %v396 = vld [vmem:[%s384 + $0x20] sm:$0xff]
      %v397 = vld [vmem:[%s384 + $0x28] sm:$0xff]
      %v398 = vld [vmem:[%s384 + $0x30] sm:$0xff]
      %v399 = vld [vmem:[%s384 + $0x38] sm:$0xff]
      %v400 = vld [vmem:[%s1] sm:$0x1]
      %402 = vset.pattern.permute.xlu0 0
      %403 = vperm.xlu0 %402, %v392
      %v404 = vpop.permute.xlu0 %403
      %407 = vset.pattern.permute.xlu0 0
      %408 = vperm.xlu0 %407, %v393
      %v409 = vpop.permute.xlu0 %408
      %412 = vset.pattern.permute.xlu0 0
      %413 = vperm.xlu0 %412, %v394
      %v414 = vpop.permute.xlu0 %413
      %417 = vset.pattern.permute.xlu0 0
      %418 = vperm.xlu0 %417, %v395
      %v419 = vpop.permute.xlu0 %418
      %422 = vset.pattern.permute.xlu0 0
      %423 = vperm.xlu0 %422, %v396
      %v424 = vpop.permute.xlu0 %423
      %427 = vset.pattern.permute.xlu0 0
      %428 = vperm.xlu0 %427, %v397
      %v429 = vpop.permute.xlu0 %428
      %432 = vset.pattern.permute.xlu0 0
      %433 = vperm.xlu0 %432, %v398
      %v434 = vpop.permute.xlu0 %433
      %437 = vset.pattern.permute.xlu0 0
      %438 = vperm.xlu0 %437, %v399
      %v439 = vpop.permute.xlu0 %438
      %v441 = vlaneseq
      %v442 = vshrl.u32 %v441, 7
      %v443 = vsub.s32 0, %v442
      %v444 = vrot.slane %v400, %v443
      %v445 = vmul.f32 %v404, %v444
      %v446 = vmul.f32 %v409, %v444
      %v447 = vmul.f32 %v414, %v444
      %v448 = vmul.f32 %v419, %v444
      %v449 = vmul.f32 %v424, %v444
      %v450 = vmul.f32 %v429, %v444
      %v451 = vmul.f32 %v434, %v444
      %v452 = vmul.f32 %v439, %v444
      %v453 = vld [vmem:[%s1 + $0x1] sm:$0x1]
      %454 = vset.pattern.permute.xlu0 1
      %455 = vperm.xlu0 %454, %v392
      %v456 = vpop.permute.xlu0 %455
      %458 = vset.pattern.permute.xlu0 1
      %459 = vperm.xlu0 %458, %v393
      %v460 = vpop.permute.xlu0 %459
      %462 = vset.pattern.permute.xlu0 1
      %463 = vperm.xlu0 %462, %v394
      %v464 = vpop.permute.xlu0 %463
      %466 = vset.pattern.permute.xlu0 1
      %467 = vperm.xlu0 %466, %v395
      %v468 = vpop.permute.xlu0 %467
      %470 = vset.pattern.permute.xlu0 1
      %471 = vperm.xlu0 %470, %v396
      %v472 = vpop.permute.xlu0 %471
      %474 = vset.pattern.permute.xlu0 1
      %475 = vperm.xlu0 %474, %v397
      %v476 = vpop.permute.xlu0 %475
      %478 = vset.pattern.permute.xlu0 1
      %479 = vperm.xlu0 %478, %v398
      %v480 = vpop.permute.xlu0 %479
      %482 = vset.pattern.permute.xlu0 1
      %483 = vperm.xlu0 %482, %v399
      %v484 = vpop.permute.xlu0 %483
      %v486 = vlaneseq
      %v487 = vshrl.u32 %v486, 7
      %v488 = vsub.s32 0, %v487
      %v489 = vrot.slane %v453, %v488
      %v490 = vmul.f32 %v456, %v489
      %v491 = vmul.f32 %v460, %v489
      %v492 = vmul.f32 %v464, %v489
      %v493 = vmul.f32 %v468, %v489
      %v494 = vmul.f32 %v472, %v489
      %v495 = vmul.f32 %v476, %v489
      %v496 = vmul.f32 %v480, %v489
      %v497 = vmul.f32 %v484, %v489
      %v498 = vadd.f32 %v445, %v490
      %v499 = vadd.f32 %v446, %v491
      %v500 = vadd.f32 %v447, %v492
      %v501 = vadd.f32 %v448, %v493
      %v502 = vadd.f32 %v449, %v494
      %v503 = vadd.f32 %v450, %v495
      %v504 = vadd.f32 %v451, %v496
      %v505 = vadd.f32 %v452, %v497
      %v506 = vld [vmem:[%s2] sm:$0x1]
      %v508 = vlaneseq
      %v509 = vshrl.u32 %v508, 7
      %v510 = vsub.s32 0, %v509
      %v511 = vrot.slane %v506, %v510
      %v513 = vadd.f32 %v498, %v511
      %v514 = vadd.f32 %v499, %v511
      %v515 = vadd.f32 %v500, %v511
      %v516 = vadd.f32 %v501, %v511
      %v517 = vadd.f32 %v502, %v511
      %v518 = vadd.f32 %v503, %v511
      %v519 = vadd.f32 %v504, %v511
      %v520 = vadd.f32 %v505, %v511
      %v521 = vand.u32 2147483647, %v513
      %vm522 = vcmp.le.f32.partialorder %v521, 0.7853982
      %vm523 = vcmp.lt.s32.totalorder %v513, 0
      %v524 = vand.u32 %v513, 2139095040
      %v525 = vshrl.u32 %v524, 23
      %v526 = vsub.s32 %v525, 127
      %v527 = vand.u32 2147483647, %v513
      %v528 = vand.u32 %v527, 8388607
      %v529 = vor.u32 %v528, 8388608
      %v530 = vsub.s32 0, %v529
      %v531 = vadd.s32 %v526, 1
      %vm532 = vcmp.gt.s32.totalorder %v531, 0
      %v533 = vsel %vm532, %v531, 0
      %v534 = vshrl.u32 %v533, 5
      %v535 = vand.u32 %v533, 31
      %v536 = vsub.s32 32, %v535
      %v537 = vshrl.u32 683565275, %v536
      %v538 = vshll.u32 683565275, %v535
      %v539 = vshrl.u32 2475754826, %v536
      %v540 = vor.u32 %v538, %v539
      %v541 = vshll.u32 2475754826, %v535
      %v542 = vshrl.u32 2131351028, %v536
      %v543 = vor.u32 %v541, %v542
      %v544 = vshll.u32 2131351028, %v535
      %v545 = vshrl.u32 2102212464, %v536
      %v546 = vor.u32 %v544, %v545
      %v547 = vshll.u32 2102212464, %v535
      %v548 = vshrl.u32 920167782, %v536
      %v549 = vor.u32 %v547, %v548
      %v550 = vshll.u32 920167782, %v535
      %v551 = vshrl.u32 1326507024, %v536
      %v552 = vor.u32 %v550, %v551
      %vm553 = vcmp.lt.s32.totalorder %v534, 1
      %vm554 = vcmp.lt.s32.totalorder %v534, 2
      %vm555 = vcmp.lt.s32.totalorder %v534, 3
      %vm556 = vcmp.lt.s32.totalorder %v534, 4
      %v557 = vsel %vm553, %v537, %v540
      %v558 = vsel %vm556, %v546, 2102212464
      %v559 = vsel %vm555, %v543, %v558
      %v560 = vsel %vm554, %v557, %v559
      %v561 = vsel %vm553, %v540, %v543
      %v562 = vsel %vm556, %v549, 920167782
      %v563 = vsel %vm555, %v546, %v562
      %v564 = vsel %vm554, %v561, %v563
      %v565 = vsel %vm553, %v543, %v546
      %v566 = vsel %vm556, %v552, 1326507024
      %v567 = vsel %vm555, %v549, %v566
      %v568 = vsel %vm554, %v565, %v567
      %v569 = vshll.u32 %v529, 8
      %v570 = vmul.u32.u64.compose %v569, %v568
      %v571 = vextract.low.u32 %v570
      %v572 = vextract.high.u32 %v570
      %v573 = vmul.u32.u64.compose %v569, %v564
      %v574 = vextract.low.u32 %v573
      %v575 = vextract.high.u32 %v573
      %v576 = vmul.u32 %v569, %v560
      %v577 = vadd.s32 %v572, %v574
      %vm578 = vc.u32 %v572, %v574
      %v579 = vadd.s32 %v575, 1
      %v580 = vsel %vm578, %v579, %v575
      %v581 = vadd.s32 %v576, %v580
      %v582 = vadd.s32 %v581, 536870912
      %v583 = vshrl.u32 %v582, 30
      %v584 = vshll.u32 %v583, 30
      %v585 = vsub.s32 %v581, %v584
      %vm586 = vcmp.lt.s32.totalorder %v585, 0
      %v587 = vsub.s32 0, %v585
      %v588 = vsel %vm586, %v587, %v585
      %v589 = vclz %v588
      %v590 = vsub.s32 %v589, 2
      %vm591 = vcmp.gt.s32.totalorder 0, %v590
      %v592 = vsel %vm591, 0, %v590
      %v593 = vsub.s32 32, %v592
      %v594 = vshll.u32 %v585, %v592
      %v595 = vshrl.u32 %v577, %v593
      %v596 = vor.u32 %v594, %v595
      %v597 = vsub.s32 4294967266, %v592
      %v598 = vadd.s32 %v597, 127
      %v599 = vshll.u32 %v598, 23
      %v600 = vor.u32 4788187, %v599
      %v601 = vand.u32 2147483647, %v600
      %v603 = vcvt.s32.f32 %v596
      %v604 = vmul.f32 %v603, %v601
      %v605 = vxor.u32 %v604, 2147483648
      %v606 = vsel %vm523, %v605, %v604
      %v607 = vsub.s32 4, %v583
      %v608 = vsel %vm523, %v607, %v583
      %v609 = vsel %vm522, %v513, %v606
      %v610 = vsel %vm522, 0, %v608
      %v611 = vcosq.f32.pop %v609
      %v612 = vsinq.f32.pop %v609
      %vm613 = vweird.f32 %v513
      %v614 = vadd.s32 %v610, 3
      %v615 = vand.u32 %v614, 3
      %vm616 = vcmp.lt.s32.totalorder %v615, 2
      %vm617 = vcmp.eq.s32.totalorder %v615, 0
      %v618 = vxor.u32 %v612, 2147483648
      %v619 = vsel %vm617, %v611, %v618
      %vm620 = vcmp.eq.s32.totalorder %v615, 2
      %v621 = vxor.u32 %v611, 2147483648
      %v622 = vsel %vm620, %v621, %v612
      %v623 = vsel %vm616, %v619, %v622
      %v624 = vsel %vm613, nan, %v623
      %v625 = vand.u32 2147483647, %v514
      %vm626 = vcmp.le.f32.partialorder %v625, 0.7853982
      %vm627 = vcmp.lt.s32.totalorder %v514, 0
      %v628 = vand.u32 %v514, 2139095040
      %v629 = vshrl.u32 %v628, 23
      %v630 = vsub.s32 %v629, 127
      %v631 = vand.u32 2147483647, %v514
      %v632 = vand.u32 %v631, 8388607
      %v633 = vor.u32 %v632, 8388608
      %v634 = vsub.s32 0, %v633
      %v635 = vadd.s32 %v630, 1
      %vm636 = vcmp.gt.s32.totalorder %v635, 0
      %v637 = vsel %vm636, %v635, 0
      %v638 = vshrl.u32 %v637, 5
      %v639 = vand.u32 %v637, 31
      %v640 = vsub.s32 32, %v639
      %v641 = vshrl.u32 683565275, %v640
      %v642 = vshll.u32 683565275, %v639
      %v643 = vshrl.u32 2475754826, %v640
      %v644 = vor.u32 %v642, %v643
      %v645 = vshll.u32 2475754826, %v639
      %v646 = vshrl.u32 2131351028, %v640
      %v647 = vor.u32 %v645, %v646
      %v648 = vshll.u32 2131351028, %v639
      %v649 = vshrl.u32 2102212464, %v640
      %v650 = vor.u32 %v648, %v649
      %v651 = vshll.u32 2102212464, %v639
      %v652 = vshrl.u32 920167782, %v640
      %v653 = vor.u32 %v651, %v652
      %v654 = vshll.u32 920167782, %v639
      %v655 = vshrl.u32 1326507024, %v640
      %v656 = vor.u32 %v654, %v655
      %vm657 = vcmp.lt.s32.totalorder %v638, 1
      %vm658 = vcmp.lt.s32.totalorder %v638, 2
      %vm659 = vcmp.lt.s32.totalorder %v638, 3
      %vm660 = vcmp.lt.s32.totalorder %v638, 4
      %v661 = vsel %vm657, %v641, %v644
      %v662 = vsel %vm660, %v650, 2102212464
      %v663 = vsel %vm659, %v647, %v662
      %v664 = vsel %vm658, %v661, %v663
      %v665 = vsel %vm657, %v644, %v647
      %v666 = vsel %vm660, %v653, 920167782
      %v667 = vsel %vm659, %v650, %v666
      %v668 = vsel %vm658, %v665, %v667
      %v669 = vsel %vm657, %v647, %v650
      %v670 = vsel %vm660, %v656, 1326507024
      %v671 = vsel %vm659, %v653, %v670
      %v672 = vsel %vm658, %v669, %v671
      %v673 = vshll.u32 %v633, 8
      %v674 = vmul.u32.u64.compose %v673, %v672
      %v675 = vextract.low.u32 %v674
      %v676 = vextract.high.u32 %v674
      %v677 = vmul.u32.u64.compose %v673, %v668
      %v678 = vextract.low.u32 %v677
      %v679 = vextract.high.u32 %v677
      %v680 = vmul.u32 %v673, %v664
      %v681 = vadd.s32 %v676, %v678
      %vm682 = vc.u32 %v676, %v678
      %v683 = vadd.s32 %v679, 1
      %v684 = vsel %vm682, %v683, %v679
      %v685 = vadd.s32 %v680, %v684
      %v686 = vadd.s32 %v685, 536870912
      %v687 = vshrl.u32 %v686, 30
      %v688 = vshll.u32 %v687, 30
      %v689 = vsub.s32 %v685, %v688
      %vm690 = vcmp.lt.s32.totalorder %v689, 0
      %v691 = vsub.s32 0, %v689
      %v692 = vsel %vm690, %v691, %v689
      %v693 = vclz %v692
      %v694 = vsub.s32 %v693, 2
      %vm695 = vcmp.gt.s32.totalorder 0, %v694
      %v696 = vsel %vm695, 0, %v694
      %v697 = vsub.s32 32, %v696
      %v698 = vshll.u32 %v689, %v696
      %v699 = vshrl.u32 %v681, %v697
      %v700 = vor.u32 %v698, %v699
      %v701 = vsub.s32 4294967266, %v696
      %v702 = vadd.s32 %v701, 127
      %v703 = vshll.u32 %v702, 23
      %v704 = vor.u32 4788187, %v703
      %v705 = vand.u32 2147483647, %v704
      %v707 = vcvt.s32.f32 %v700
      %v708 = vmul.f32 %v707, %v705
      %v709 = vxor.u32 %v708, 2147483648
      %v710 = vsel %vm627, %v709, %v708
      %v711 = vsub.s32 4, %v687
      %v712 = vsel %vm627, %v711, %v687
      %v713 = vsel %vm626, %v514, %v710
      %v714 = vsel %vm626, 0, %v712
      %v715 = vcosq.f32.pop %v713
      %v716 = vsinq.f32.pop %v713
      %vm717 = vweird.f32 %v514
      %v718 = vadd.s32 %v714, 3
      %v719 = vand.u32 %v718, 3
      %vm720 = vcmp.lt.s32.totalorder %v719, 2
      %vm721 = vcmp.eq.s32.totalorder %v719, 0
      %v722 = vxor.u32 %v716, 2147483648
      %v723 = vsel %vm721, %v715, %v722
      %vm724 = vcmp.eq.s32.totalorder %v719, 2
      %v725 = vxor.u32 %v715, 2147483648
      %v726 = vsel %vm724, %v725, %v716
      %v727 = vsel %vm720, %v723, %v726
      %v728 = vsel %vm717, nan, %v727
      %v729 = vand.u32 2147483647, %v515
      %vm730 = vcmp.le.f32.partialorder %v729, 0.7853982
      %vm731 = vcmp.lt.s32.totalorder %v515, 0
      %v732 = vand.u32 %v515, 2139095040
      %v733 = vshrl.u32 %v732, 23
      %v734 = vsub.s32 %v733, 127
      %v735 = vand.u32 2147483647, %v515
      %v736 = vand.u32 %v735, 8388607
      %v737 = vor.u32 %v736, 8388608
      %v738 = vsub.s32 0, %v737
      %v739 = vadd.s32 %v734, 1
      %vm740 = vcmp.gt.s32.totalorder %v739, 0
      %v741 = vsel %vm740, %v739, 0
      %v742 = vshrl.u32 %v741, 5
      %v743 = vand.u32 %v741, 31
      %v744 = vsub.s32 32, %v743
      %v745 = vshrl.u32 683565275, %v744
      %v746 = vshll.u32 683565275, %v743
      %v747 = vshrl.u32 2475754826, %v744
      %v748 = vor.u32 %v746, %v747
      %v749 = vshll.u32 2475754826, %v743
      %v750 = vshrl.u32 2131351028, %v744
      %v751 = vor.u32 %v749, %v750
      %v752 = vshll.u32 2131351028, %v743
      %v753 = vshrl.u32 2102212464, %v744
      %v754 = vor.u32 %v752, %v753
      %v755 = vshll.u32 2102212464, %v743
      %v756 = vshrl.u32 920167782, %v744
      %v757 = vor.u32 %v755, %v756
      %v758 = vshll.u32 920167782, %v743
      %v759 = vshrl.u32 1326507024, %v744
      %v760 = vor.u32 %v758, %v759
      %vm761 = vcmp.lt.s32.totalorder %v742, 1
      %vm762 = vcmp.lt.s32.totalorder %v742, 2
      %vm763 = vcmp.lt.s32.totalorder %v742, 3
      %vm764 = vcmp.lt.s32.totalorder %v742, 4
      %v765 = vsel %vm761, %v745, %v748
      %v766 = vsel %vm764, %v754, 2102212464
      %v767 = vsel %vm763, %v751, %v766
      %v768 = vsel %vm762, %v765, %v767
      %v769 = vsel %vm761, %v748, %v751
      %v770 = vsel %vm764, %v757, 920167782
      %v771 = vsel %vm763, %v754, %v770
      %v772 = vsel %vm762, %v769, %v771
      %v773 = vsel %vm761, %v751, %v754
      %v774 = vsel %vm764, %v760, 1326507024
      %v775 = vsel %vm763, %v757, %v774
      %v776 = vsel %vm762, %v773, %v775
      %v777 = vshll.u32 %v737, 8
      %v778 = vmul.u32.u64.compose %v777, %v776
      %v779 = vextract.low.u32 %v778
      %v780 = vextract.high.u32 %v778
      %v781 = vmul.u32.u64.compose %v777, %v772
      %v782 = vextract.low.u32 %v781
      %v783 = vextract.high.u32 %v781
      %v784 = vmul.u32 %v777, %v768
      %v785 = vadd.s32 %v780, %v782
      %vm786 = vc.u32 %v780, %v782
      %v787 = vadd.s32 %v783, 1
      %v788 = vsel %vm786, %v787, %v783
      %v789 = vadd.s32 %v784, %v788
      %v790 = vadd.s32 %v789, 536870912
      %v791 = vshrl.u32 %v790, 30
      %v792 = vshll.u32 %v791, 30
      %v793 = vsub.s32 %v789, %v792
      %vm794 = vcmp.lt.s32.totalorder %v793, 0
      %v795 = vsub.s32 0, %v793
      %v796 = vsel %vm794, %v795, %v793
      %v797 = vclz %v796
      %v798 = vsub.s32 %v797, 2
      %vm799 = vcmp.gt.s32.totalorder 0, %v798
      %v800 = vsel %vm799, 0, %v798
      %v801 = vsub.s32 32, %v800
      %v802 = vshll.u32 %v793, %v800
      %v803 = vshrl.u32 %v785, %v801
      %v804 = vor.u32 %v802, %v803
      %v805 = vsub.s32 4294967266, %v800
      %v806 = vadd.s32 %v805, 127
      %v807 = vshll.u32 %v806, 23
      %v808 = vor.u32 4788187, %v807
      %v809 = vand.u32 2147483647, %v808
      %v811 = vcvt.s32.f32 %v804
      %v812 = vmul.f32 %v811, %v809
      %v813 = vxor.u32 %v812, 2147483648
      %v814 = vsel %vm731, %v813, %v812
      %v815 = vsub.s32 4, %v791
      %v816 = vsel %vm731, %v815, %v791
      %v817 = vsel %vm730, %v515, %v814
      %v818 = vsel %vm730, 0, %v816
      %v819 = vcosq.f32.pop %v817
      %v820 = vsinq.f32.pop %v817
      %vm821 = vweird.f32 %v515
      %v822 = vadd.s32 %v818, 3
      %v823 = vand.u32 %v822, 3
      %vm824 = vcmp.lt.s32.totalorder %v823, 2
      %vm825 = vcmp.eq.s32.totalorder %v823, 0
      %v826 = vxor.u32 %v820, 2147483648
      %v827 = vsel %vm825, %v819, %v826
      %vm828 = vcmp.eq.s32.totalorder %v823, 2
      %v829 = vxor.u32 %v819, 2147483648
      %v830 = vsel %vm828, %v829, %v820
      %v831 = vsel %vm824, %v827, %v830
      %v832 = vsel %vm821, nan, %v831
      %v833 = vand.u32 2147483647, %v516
      %vm834 = vcmp.le.f32.partialorder %v833, 0.7853982
      %vm835 = vcmp.lt.s32.totalorder %v516, 0
      %v836 = vand.u32 %v516, 2139095040
      %v837 = vshrl.u32 %v836, 23
      %v838 = vsub.s32 %v837, 127
      %v839 = vand.u32 2147483647, %v516
      %v840 = vand.u32 %v839, 8388607
      %v841 = vor.u32 %v840, 8388608
      %v842 = vsub.s32 0, %v841
      %v843 = vadd.s32 %v838, 1
      %vm844 = vcmp.gt.s32.totalorder %v843, 0
      %v845 = vsel %vm844, %v843, 0
      %v846 = vshrl.u32 %v845, 5
      %v847 = vand.u32 %v845, 31
      %v848 = vsub.s32 32, %v847
      %v849 = vshrl.u32 683565275, %v848
      %v850 = vshll.u32 683565275, %v847
      %v851 = vshrl.u32 2475754826, %v848
      %v852 = vor.u32 %v850, %v851
      %v853 = vshll.u32 2475754826, %v847
      %v854 = vshrl.u32 2131351028, %v848
      %v855 = vor.u32 %v853, %v854
      %v856 = vshll.u32 2131351028, %v847
      %v857 = vshrl.u32 2102212464, %v848
      %v858 = vor.u32 %v856, %v857
      %v859 = vshll.u32 2102212464, %v847
      %v860 = vshrl.u32 920167782, %v848
      %v861 = vor.u32 %v859, %v860
      %v862 = vshll.u32 920167782, %v847
      %v863 = vshrl.u32 1326507024, %v848
      %v864 = vor.u32 %v862, %v863
      %vm865 = vcmp.lt.s32.totalorder %v846, 1
      %vm866 = vcmp.lt.s32.totalorder %v846, 2
      %vm867 = vcmp.lt.s32.totalorder %v846, 3
      %vm868 = vcmp.lt.s32.totalorder %v846, 4
      %v869 = vsel %vm865, %v849, %v852
      %v870 = vsel %vm868, %v858, 2102212464
      %v871 = vsel %vm867, %v855, %v870
      %v872 = vsel %vm866, %v869, %v871
      %v873 = vsel %vm865, %v852, %v855
      %v874 = vsel %vm868, %v861, 920167782
      %v875 = vsel %vm867, %v858, %v874
      %v876 = vsel %vm866, %v873, %v875
      %v877 = vsel %vm865, %v855, %v858
      %v878 = vsel %vm868, %v864, 1326507024
      %v879 = vsel %vm867, %v861, %v878
      %v880 = vsel %vm866, %v877, %v879
      %v881 = vshll.u32 %v841, 8
      %v882 = vmul.u32.u64.compose %v881, %v880
      %v883 = vextract.low.u32 %v882
      %v884 = vextract.high.u32 %v882
      %v885 = vmul.u32.u64.compose %v881, %v876
      %v886 = vextract.low.u32 %v885
      %v887 = vextract.high.u32 %v885
      %v888 = vmul.u32 %v881, %v872
      %v889 = vadd.s32 %v884, %v886
      %vm890 = vc.u32 %v884, %v886
      %v891 = vadd.s32 %v887, 1
      %v892 = vsel %vm890, %v891, %v887
      %v893 = vadd.s32 %v888, %v892
      %v894 = vadd.s32 %v893, 536870912
      %v895 = vshrl.u32 %v894, 30
      %v896 = vshll.u32 %v895, 30
      %v897 = vsub.s32 %v893, %v896
      %vm898 = vcmp.lt.s32.totalorder %v897, 0
      %v899 = vsub.s32 0, %v897
      %v900 = vsel %vm898, %v899, %v897
      %v901 = vclz %v900
      %v902 = vsub.s32 %v901, 2
      %vm903 = vcmp.gt.s32.totalorder 0, %v902
      %v904 = vsel %vm903, 0, %v902
      %v905 = vsub.s32 32, %v904
      %v906 = vshll.u32 %v897, %v904
      %v907 = vshrl.u32 %v889, %v905
      %v908 = vor.u32 %v906, %v907
      %v909 = vsub.s32 4294967266, %v904
      %v910 = vadd.s32 %v909, 127
      %v911 = vshll.u32 %v910, 23
      %v912 = vor.u32 4788187, %v911
      %v913 = vand.u32 2147483647, %v912
      %v915 = vcvt.s32.f32 %v908
      %v916 = vmul.f32 %v915, %v913
      %v917 = vxor.u32 %v916, 2147483648
      %v918 = vsel %vm835, %v917, %v916
      %v919 = vsub.s32 4, %v895
      %v920 = vsel %vm835, %v919, %v895
      %v921 = vsel %vm834, %v516, %v918
      %v922 = vsel %vm834, 0, %v920
      %v923 = vcosq.f32.pop %v921
      %v924 = vsinq.f32.pop %v921
      %vm925 = vweird.f32 %v516
      %v926 = vadd.s32 %v922, 3
      %v927 = vand.u32 %v926, 3
      %vm928 = vcmp.lt.s32.totalorder %v927, 2
      %vm929 = vcmp.eq.s32.totalorder %v927, 0
      %v930 = vxor.u32 %v924, 2147483648
      %v931 = vsel %vm929, %v923, %v930
      %vm932 = vcmp.eq.s32.totalorder %v927, 2
      %v933 = vxor.u32 %v923, 2147483648
      %v934 = vsel %vm932, %v933, %v924
      %v935 = vsel %vm928, %v931, %v934
      %v936 = vsel %vm925, nan, %v935
      %v937 = vand.u32 2147483647, %v517
      %vm938 = vcmp.le.f32.partialorder %v937, 0.7853982
      %vm939 = vcmp.lt.s32.totalorder %v517, 0
      %v940 = vand.u32 %v517, 2139095040
      %v941 = vshrl.u32 %v940, 23
      %v942 = vsub.s32 %v941, 127
      %v943 = vand.u32 2147483647, %v517
      %v944 = vand.u32 %v943, 8388607
      %v945 = vor.u32 %v944, 8388608
      %v946 = vsub.s32 0, %v945
      %v947 = vadd.s32 %v942, 1
      %vm948 = vcmp.gt.s32.totalorder %v947, 0
      %v949 = vsel %vm948, %v947, 0
      %v950 = vshrl.u32 %v949, 5
      %v951 = vand.u32 %v949, 31
      %v952 = vsub.s32 32, %v951
      %v953 = vshrl.u32 683565275, %v952
      %v954 = vshll.u32 683565275, %v951
      %v955 = vshrl.u32 2475754826, %v952
      %v956 = vor.u32 %v954, %v955
      %v957 = vshll.u32 2475754826, %v951
      %v958 = vshrl.u32 2131351028, %v952
      %v959 = vor.u32 %v957, %v958
      %v960 = vshll.u32 2131351028, %v951
      %v961 = vshrl.u32 2102212464, %v952
      %v962 = vor.u32 %v960, %v961
      %v963 = vshll.u32 2102212464, %v951
      %v964 = vshrl.u32 920167782, %v952
      %v965 = vor.u32 %v963, %v964
      %v966 = vshll.u32 920167782, %v951
      %v967 = vshrl.u32 1326507024, %v952
      %v968 = vor.u32 %v966, %v967
      %vm969 = vcmp.lt.s32.totalorder %v950, 1
      %vm970 = vcmp.lt.s32.totalorder %v950, 2
      %vm971 = vcmp.lt.s32.totalorder %v950, 3
      %vm972 = vcmp.lt.s32.totalorder %v950, 4
      %v973 = vsel %vm969, %v953, %v956
      %v974 = vsel %vm972, %v962, 2102212464
      %v975 = vsel %vm971, %v959, %v974
      %v976 = vsel %vm970, %v973, %v975
      %v977 = vsel %vm969, %v956, %v959
      %v978 = vsel %vm972, %v965, 920167782
      %v979 = vsel %vm971, %v962, %v978
      %v980 = vsel %vm970, %v977, %v979
      %v981 = vsel %vm969, %v959, %v962
      %v982 = vsel %vm972, %v968, 1326507024
      %v983 = vsel %vm971, %v965, %v982
      %v984 = vsel %vm970, %v981, %v983
      %v985 = vshll.u32 %v945, 8
      %v986 = vmul.u32.u64.compose %v985, %v984
      %v987 = vextract.low.u32 %v986
      %v988 = vextract.high.u32 %v986
      %v989 = vmul.u32.u64.compose %v985, %v980
      %v990 = vextract.low.u32 %v989
      %v991 = vextract.high.u32 %v989
      %v992 = vmul.u32 %v985, %v976
      %v993 = vadd.s32 %v988, %v990
      %vm994 = vc.u32 %v988, %v990
      %v995 = vadd.s32 %v991, 1
      %v996 = vsel %vm994, %v995, %v991
      %v997 = vadd.s32 %v992, %v996
      %v998 = vadd.s32 %v997, 536870912
      %v999 = vshrl.u32 %v998, 30
      %v1000 = vshll.u32 %v999, 30
      %v1001 = vsub.s32 %v997, %v1000
      %vm1002 = vcmp.lt.s32.totalorder %v1001, 0
      %v1003 = vsub.s32 0, %v1001
      %v1004 = vsel %vm1002, %v1003, %v1001
      %v1005 = vclz %v1004
      %v1006 = vsub.s32 %v1005, 2
      %vm1007 = vcmp.gt.s32.totalorder 0, %v1006
      %v1008 = vsel %vm1007, 0, %v1006
      %v1009 = vsub.s32 32, %v1008
      %v1010 = vshll.u32 %v1001, %v1008
      %v1011 = vshrl.u32 %v993, %v1009
      %v1012 = vor.u32 %v1010, %v1011
      %v1013 = vsub.s32 4294967266, %v1008
      %v1014 = vadd.s32 %v1013, 127
      %v1015 = vshll.u32 %v1014, 23
      %v1016 = vor.u32 4788187, %v1015
      %v1017 = vand.u32 2147483647, %v1016
      %v1019 = vcvt.s32.f32 %v1012
      %v1020 = vmul.f32 %v1019, %v1017
      %v1021 = vxor.u32 %v1020, 2147483648
      %v1022 = vsel %vm939, %v1021, %v1020
      %v1023 = vsub.s32 4, %v999
      %v1024 = vsel %vm939, %v1023, %v999
      %v1025 = vsel %vm938, %v517, %v1022
      %v1026 = vsel %vm938, 0, %v1024
      %v1027 = vcosq.f32.pop %v1025
      %v1028 = vsinq.f32.pop %v1025
      %vm1029 = vweird.f32 %v517
      %v1030 = vadd.s32 %v1026, 3
      %v1031 = vand.u32 %v1030, 3
      %vm1032 = vcmp.lt.s32.totalorder %v1031, 2
      %vm1033 = vcmp.eq.s32.totalorder %v1031, 0
      %v1034 = vxor.u32 %v1028, 2147483648
      %v1035 = vsel %vm1033, %v1027, %v1034
      %vm1036 = vcmp.eq.s32.totalorder %v1031, 2
      %v1037 = vxor.u32 %v1027, 2147483648
      %v1038 = vsel %vm1036, %v1037, %v1028
      %v1039 = vsel %vm1032, %v1035, %v1038
      %v1040 = vsel %vm1029, nan, %v1039
      %v1041 = vand.u32 2147483647, %v518
      %vm1042 = vcmp.le.f32.partialorder %v1041, 0.7853982
      %vm1043 = vcmp.lt.s32.totalorder %v518, 0
      %v1044 = vand.u32 %v518, 2139095040
      %v1045 = vshrl.u32 %v1044, 23
      %v1046 = vsub.s32 %v1045, 127
      %v1047 = vand.u32 2147483647, %v518
      %v1048 = vand.u32 %v1047, 8388607
      %v1049 = vor.u32 %v1048, 8388608
      %v1050 = vsub.s32 0, %v1049
      %v1051 = vadd.s32 %v1046, 1
      %vm1052 = vcmp.gt.s32.totalorder %v1051, 0
      %v1053 = vsel %vm1052, %v1051, 0
      %v1054 = vshrl.u32 %v1053, 5
      %v1055 = vand.u32 %v1053, 31
      %v1056 = vsub.s32 32, %v1055
      %v1057 = vshrl.u32 683565275, %v1056
      %v1058 = vshll.u32 683565275, %v1055
      %v1059 = vshrl.u32 2475754826, %v1056
      %v1060 = vor.u32 %v1058, %v1059
      %v1061 = vshll.u32 2475754826, %v1055
      %v1062 = vshrl.u32 2131351028, %v1056
      %v1063 = vor.u32 %v1061, %v1062
      %v1064 = vshll.u32 2131351028, %v1055
      %v1065 = vshrl.u32 2102212464, %v1056
      %v1066 = vor.u32 %v1064, %v1065
      %v1067 = vshll.u32 2102212464, %v1055
      %v1068 = vshrl.u32 920167782, %v1056
      %v1069 = vor.u32 %v1067, %v1068
      %v1070 = vshll.u32 920167782, %v1055
      %v1071 = vshrl.u32 1326507024, %v1056
      %v1072 = vor.u32 %v1070, %v1071
      %vm1073 = vcmp.lt.s32.totalorder %v1054, 1
      %vm1074 = vcmp.lt.s32.totalorder %v1054, 2
      %vm1075 = vcmp.lt.s32.totalorder %v1054, 3
      %vm1076 = vcmp.lt.s32.totalorder %v1054, 4
      %v1077 = vsel %vm1073, %v1057, %v1060
      %v1078 = vsel %vm1076, %v1066, 2102212464
      %v1079 = vsel %vm1075, %v1063, %v1078
      %v1080 = vsel %vm1074, %v1077, %v1079
      %v1081 = vsel %vm1073, %v1060, %v1063
      %v1082 = vsel %vm1076, %v1069, 920167782
      %v1083 = vsel %vm1075, %v1066, %v1082
      %v1084 = vsel %vm1074, %v1081, %v1083
      %v1085 = vsel %vm1073, %v1063, %v1066
      %v1086 = vsel %vm1076, %v1072, 1326507024
      %v1087 = vsel %vm1075, %v1069, %v1086
      %v1088 = vsel %vm1074, %v1085, %v1087
      %v1089 = vshll.u32 %v1049, 8
      %v1090 = vmul.u32.u64.compose %v1089, %v1088
      %v1091 = vextract.low.u32 %v1090
      %v1092 = vextract.high.u32 %v1090
      %v1093 = vmul.u32.u64.compose %v1089, %v1084
      %v1094 = vextract.low.u32 %v1093
      %v1095 = vextract.high.u32 %v1093
      %v1096 = vmul.u32 %v1089, %v1080
      %v1097 = vadd.s32 %v1092, %v1094
      %vm1098 = vc.u32 %v1092, %v1094
      %v1099 = vadd.s32 %v1095, 1
      %v1100 = vsel %vm1098, %v1099, %v1095
      %v1101 = vadd.s32 %v1096, %v1100
      %v1102 = vadd.s32 %v1101, 536870912
      %v1103 = vshrl.u32 %v1102, 30
      %v1104 = vshll.u32 %v1103, 30
      %v1105 = vsub.s32 %v1101, %v1104
      %vm1106 = vcmp.lt.s32.totalorder %v1105, 0
      %v1107 = vsub.s32 0, %v1105
      %v1108 = vsel %vm1106, %v1107, %v1105
      %v1109 = vclz %v1108
      %v1110 = vsub.s32 %v1109, 2
      %vm1111 = vcmp.gt.s32.totalorder 0, %v1110
      %v1112 = vsel %vm1111, 0, %v1110
      %v1113 = vsub.s32 32, %v1112
      %v1114 = vshll.u32 %v1105, %v1112
      %v1115 = vshrl.u32 %v1097, %v1113
      %v1116 = vor.u32 %v1114, %v1115
      %v1117 = vsub.s32 4294967266, %v1112
      %v1118 = vadd.s32 %v1117, 127
      %v1119 = vshll.u32 %v1118, 23
      %v1120 = vor.u32 4788187, %v1119
      %v1121 = vand.u32 2147483647, %v1120
      %v1123 = vcvt.s32.f32 %v1116
      %v1124 = vmul.f32 %v1123, %v1121
      %v1125 = vxor.u32 %v1124, 2147483648
      %v1126 = vsel %vm1043, %v1125, %v1124
      %v1127 = vsub.s32 4, %v1103
      %v1128 = vsel %vm1043, %v1127, %v1103
      %v1129 = vsel %vm1042, %v518, %v1126
      %v1130 = vsel %vm1042, 0, %v1128
      %v1131 = vcosq.f32.pop %v1129
      %v1132 = vsinq.f32.pop %v1129
      %vm1133 = vweird.f32 %v518
      %v1134 = vadd.s32 %v1130, 3
      %v1135 = vand.u32 %v1134, 3
      %vm1136 = vcmp.lt.s32.totalorder %v1135, 2
      %vm1137 = vcmp.eq.s32.totalorder %v1135, 0
      %v1138 = vxor.u32 %v1132, 2147483648
      %v1139 = vsel %vm1137, %v1131, %v1138
      %vm1140 = vcmp.eq.s32.totalorder %v1135, 2
      %v1141 = vxor.u32 %v1131, 2147483648
      %v1142 = vsel %vm1140, %v1141, %v1132
      %v1143 = vsel %vm1136, %v1139, %v1142
      %v1144 = vsel %vm1133, nan, %v1143
      %v1145 = vand.u32 2147483647, %v519
      %vm1146 = vcmp.le.f32.partialorder %v1145, 0.7853982
      %vm1147 = vcmp.lt.s32.totalorder %v519, 0
      %v1148 = vand.u32 %v519, 2139095040
      %v1149 = vshrl.u32 %v1148, 23
      %v1150 = vsub.s32 %v1149, 127
      %v1151 = vand.u32 2147483647, %v519
      %v1152 = vand.u32 %v1151, 8388607
      %v1153 = vor.u32 %v1152, 8388608
      %v1154 = vsub.s32 0, %v1153
      %v1155 = vadd.s32 %v1150, 1
      %vm1156 = vcmp.gt.s32.totalorder %v1155, 0
      %v1157 = vsel %vm1156, %v1155, 0
      %v1158 = vshrl.u32 %v1157, 5
      %v1159 = vand.u32 %v1157, 31
      %v1160 = vsub.s32 32, %v1159
      %v1161 = vshrl.u32 683565275, %v1160
      %v1162 = vshll.u32 683565275, %v1159
      %v1163 = vshrl.u32 2475754826, %v1160
      %v1164 = vor.u32 %v1162, %v1163
      %v1165 = vshll.u32 2475754826, %v1159
      %v1166 = vshrl.u32 2131351028, %v1160
      %v1167 = vor.u32 %v1165, %v1166
      %v1168 = vshll.u32 2131351028, %v1159
      %v1169 = vshrl.u32 2102212464, %v1160
      %v1170 = vor.u32 %v1168, %v1169
      %v1171 = vshll.u32 2102212464, %v1159
      %v1172 = vshrl.u32 920167782, %v1160
      %v1173 = vor.u32 %v1171, %v1172
      %v1174 = vshll.u32 920167782, %v1159
      %v1175 = vshrl.u32 1326507024, %v1160
      %v1176 = vor.u32 %v1174, %v1175
      %vm1177 = vcmp.lt.s32.totalorder %v1158, 1
      %vm1178 = vcmp.lt.s32.totalorder %v1158, 2
      %vm1179 = vcmp.lt.s32.totalorder %v1158, 3
      %vm1180 = vcmp.lt.s32.totalorder %v1158, 4
      %v1181 = vsel %vm1177, %v1161, %v1164
      %v1182 = vsel %vm1180, %v1170, 2102212464
      %v1183 = vsel %vm1179, %v1167, %v1182
      %v1184 = vsel %vm1178, %v1181, %v1183
      %v1185 = vsel %vm1177, %v1164, %v1167
      %v1186 = vsel %vm1180, %v1173, 920167782
      %v1187 = vsel %vm1179, %v1170, %v1186
      %v1188 = vsel %vm1178, %v1185, %v1187
      %v1189 = vsel %vm1177, %v1167, %v1170
      %v1190 = vsel %vm1180, %v1176, 1326507024
      %v1191 = vsel %vm1179, %v1173, %v1190
      %v1192 = vsel %vm1178, %v1189, %v1191
      %v1193 = vshll.u32 %v1153, 8
      %v1194 = vmul.u32.u64.compose %v1193, %v1192
      %v1195 = vextract.low.u32 %v1194
      %v1196 = vextract.high.u32 %v1194
      %v1197 = vmul.u32.u64.compose %v1193, %v1188
      %v1198 = vextract.low.u32 %v1197
      %v1199 = vextract.high.u32 %v1197
      %v1200 = vmul.u32 %v1193, %v1184
      %v1201 = vadd.s32 %v1196, %v1198
      %vm1202 = vc.u32 %v1196, %v1198
      %v1203 = vadd.s32 %v1199, 1
      %v1204 = vsel %vm1202, %v1203, %v1199
      %v1205 = vadd.s32 %v1200, %v1204
      %v1206 = vadd.s32 %v1205, 536870912
      %v1207 = vshrl.u32 %v1206, 30
      %v1208 = vshll.u32 %v1207, 30
      %v1209 = vsub.s32 %v1205, %v1208
      %vm1210 = vcmp.lt.s32.totalorder %v1209, 0
      %v1211 = vsub.s32 0, %v1209
      %v1212 = vsel %vm1210, %v1211, %v1209
      %v1213 = vclz %v1212
      %v1214 = vsub.s32 %v1213, 2
      %vm1215 = vcmp.gt.s32.totalorder 0, %v1214
      %v1216 = vsel %vm1215, 0, %v1214
      %v1217 = vsub.s32 32, %v1216
      %v1218 = vshll.u32 %v1209, %v1216
      %v1219 = vshrl.u32 %v1201, %v1217
      %v1220 = vor.u32 %v1218, %v1219
      %v1221 = vsub.s32 4294967266, %v1216
      %v1222 = vadd.s32 %v1221, 127
      %v1223 = vshll.u32 %v1222, 23
      %v1224 = vor.u32 4788187, %v1223
      %v1225 = vand.u32 2147483647, %v1224
      %v1227 = vcvt.s32.f32 %v1220
      %v1228 = vmul.f32 %v1227, %v1225
      %v1229 = vxor.u32 %v1228, 2147483648
      %v1230 = vsel %vm1147, %v1229, %v1228
      %v1231 = vsub.s32 4, %v1207
      %v1232 = vsel %vm1147, %v1231, %v1207
      %v1233 = vsel %vm1146, %v519, %v1230
      %v1234 = vsel %vm1146, 0, %v1232
      %v1235 = vcosq.f32.pop %v1233
      %v1236 = vsinq.f32.pop %v1233
      %vm1237 = vweird.f32 %v519
      %v1238 = vadd.s32 %v1234, 3
      %v1239 = vand.u32 %v1238, 3
      %vm1240 = vcmp.lt.s32.totalorder %v1239, 2
      %vm1241 = vcmp.eq.s32.totalorder %v1239, 0
      %v1242 = vxor.u32 %v1236, 2147483648
      %v1243 = vsel %vm1241, %v1235, %v1242
      %vm1244 = vcmp.eq.s32.totalorder %v1239, 2
      %v1245 = vxor.u32 %v1235, 2147483648
      %v1246 = vsel %vm1244, %v1245, %v1236
      %v1247 = vsel %vm1240, %v1243, %v1246
      %v1248 = vsel %vm1237, nan, %v1247
      %v1249 = vand.u32 2147483647, %v520
      %vm1250 = vcmp.le.f32.partialorder %v1249, 0.7853982
      %vm1251 = vcmp.lt.s32.totalorder %v520, 0
      %v1252 = vand.u32 %v520, 2139095040
      %v1253 = vshrl.u32 %v1252, 23
      %v1254 = vsub.s32 %v1253, 127
      %v1255 = vand.u32 2147483647, %v520
      %v1256 = vand.u32 %v1255, 8388607
      %v1257 = vor.u32 %v1256, 8388608
      %v1258 = vsub.s32 0, %v1257
      %v1259 = vadd.s32 %v1254, 1
      %vm1260 = vcmp.gt.s32.totalorder %v1259, 0
      %v1261 = vsel %vm1260, %v1259, 0
      %v1262 = vshrl.u32 %v1261, 5
      %v1263 = vand.u32 %v1261, 31
      %v1264 = vsub.s32 32, %v1263
      %v1265 = vshrl.u32 683565275, %v1264
      %v1266 = vshll.u32 683565275, %v1263
      %v1267 = vshrl.u32 2475754826, %v1264
      %v1268 = vor.u32 %v1266, %v1267
      %v1269 = vshll.u32 2475754826, %v1263
      %v1270 = vshrl.u32 2131351028, %v1264
      %v1271 = vor.u32 %v1269, %v1270
      %v1272 = vshll.u32 2131351028, %v1263
      %v1273 = vshrl.u32 2102212464, %v1264
      %v1274 = vor.u32 %v1272, %v1273
      %v1275 = vshll.u32 2102212464, %v1263
      %v1276 = vshrl.u32 920167782, %v1264
      %v1277 = vor.u32 %v1275, %v1276
      %v1278 = vshll.u32 920167782, %v1263
      %v1279 = vshrl.u32 1326507024, %v1264
      %v1280 = vor.u32 %v1278, %v1279
      %vm1281 = vcmp.lt.s32.totalorder %v1262, 1
      %vm1282 = vcmp.lt.s32.totalorder %v1262, 2
      %vm1283 = vcmp.lt.s32.totalorder %v1262, 3
      %vm1284 = vcmp.lt.s32.totalorder %v1262, 4
      %v1285 = vsel %vm1281, %v1265, %v1268
      %v1286 = vsel %vm1284, %v1274, 2102212464
      %v1287 = vsel %vm1283, %v1271, %v1286
      %v1288 = vsel %vm1282, %v1285, %v1287
      %v1289 = vsel %vm1281, %v1268, %v1271
      %v1290 = vsel %vm1284, %v1277, 920167782
      %v1291 = vsel %vm1283, %v1274, %v1290
      %v1292 = vsel %vm1282, %v1289, %v1291
      %v1293 = vsel %vm1281, %v1271, %v1274
      %v1294 = vsel %vm1284, %v1280, 1326507024
      %v1295 = vsel %vm1283, %v1277, %v1294
      %v1296 = vsel %vm1282, %v1293, %v1295
      %v1297 = vshll.u32 %v1257, 8
      %v1298 = vmul.u32.u64.compose %v1297, %v1296
      %v1299 = vextract.low.u32 %v1298
      %v1300 = vextract.high.u32 %v1298
      %v1301 = vmul.u32.u64.compose %v1297, %v1292
      %v1302 = vextract.low.u32 %v1301
      %v1303 = vextract.high.u32 %v1301
      %v1304 = vmul.u32 %v1297, %v1288
      %v1305 = vadd.s32 %v1300, %v1302
      %vm1306 = vc.u32 %v1300, %v1302
      %v1307 = vadd.s32 %v1303, 1
      %v1308 = vsel %vm1306, %v1307, %v1303
      %v1309 = vadd.s32 %v1304, %v1308
      %v1310 = vadd.s32 %v1309, 536870912
      %v1311 = vshrl.u32 %v1310, 30
      %v1312 = vshll.u32 %v1311, 30
      %v1313 = vsub.s32 %v1309, %v1312
      %vm1314 = vcmp.lt.s32.totalorder %v1313, 0
      %v1315 = vsub.s32 0, %v1313
      %v1316 = vsel %vm1314, %v1315, %v1313
      %v1317 = vclz %v1316
      %v1318 = vsub.s32 %v1317, 2
      %vm1319 = vcmp.gt.s32.totalorder 0, %v1318
      %v1320 = vsel %vm1319, 0, %v1318
      %v1321 = vsub.s32 32, %v1320
      %v1322 = vshll.u32 %v1313, %v1320
      %v1323 = vshrl.u32 %v1305, %v1321
      %v1324 = vor.u32 %v1322, %v1323
      %v1325 = vsub.s32 4294967266, %v1320
      %v1326 = vadd.s32 %v1325, 127
      %v1327 = vshll.u32 %v1326, 23
      %v1328 = vor.u32 4788187, %v1327
      %v1329 = vand.u32 2147483647, %v1328
      %v1331 = vcvt.s32.f32 %v1324
      %v1332 = vmul.f32 %v1331, %v1329
      %v1333 = vxor.u32 %v1332, 2147483648
      %v1334 = vsel %vm1251, %v1333, %v1332
      %v1335 = vsub.s32 4, %v1311
      %v1336 = vsel %vm1251, %v1335, %v1311
      %v1337 = vsel %vm1250, %v520, %v1334
      %v1338 = vsel %vm1250, 0, %v1336
      %v1339 = vcosq.f32.pop %v1337
      %v1340 = vsinq.f32.pop %v1337
      %vm1341 = vweird.f32 %v520
      %v1342 = vadd.s32 %v1338, 3
      %v1343 = vand.u32 %v1342, 3
      %vm1344 = vcmp.lt.s32.totalorder %v1343, 2
      %vm1345 = vcmp.eq.s32.totalorder %v1343, 0
      %v1346 = vxor.u32 %v1340, 2147483648
      %v1347 = vsel %vm1345, %v1339, %v1346
      %vm1348 = vcmp.eq.s32.totalorder %v1343, 2
      %v1349 = vxor.u32 %v1339, 2147483648
      %v1350 = vsel %vm1348, %v1349, %v1340
      %v1351 = vsel %vm1344, %v1347, %v1350
      %v1352 = vsel %vm1341, nan, %v1351
      %v1353 = vld [vmem:[%s3] sm:$0xff]
      %v1354 = vld [vmem:[%s3 + $0x8] sm:$0xff]
      %v1355 = vld [vmem:[%s3 + $0x10] sm:$0xff]
      %v1356 = vld [vmem:[%s3 + $0x18] sm:$0xff]
      %v1357 = vld [vmem:[%s3 + $0x20] sm:$0xff]
      %v1358 = vld [vmem:[%s3 + $0x28] sm:$0xff]
      %v1359 = vld [vmem:[%s3 + $0x30] sm:$0xff]
      %v1360 = vld [vmem:[%s3 + $0x38] sm:$0xff]
      %v1361 = vld [vmem:[%s3 + $0x40] sm:$0xff]
      %v1362 = vld [vmem:[%s3 + $0x48] sm:$0xff]
      %v1363 = vld [vmem:[%s3 + $0x50] sm:$0xff]
      %v1364 = vld [vmem:[%s3 + $0x58] sm:$0xff]
      %v1365 = vld [vmem:[%s3 + $0x60] sm:$0xff]
      %v1366 = vld [vmem:[%s3 + $0x68] sm:$0xff]
      %v1367 = vld [vmem:[%s3 + $0x70] sm:$0xff]
      %v1368 = vld [vmem:[%s3 + $0x78] sm:$0xff]
      %v1369 = vld [vmem:[%s3 + $0x80] sm:$0xff]
      %v1370 = vld [vmem:[%s3 + $0x88] sm:$0xff]
      %v1371 = vld [vmem:[%s3 + $0x90] sm:$0xff]
      %v1372 = vld [vmem:[%s3 + $0x98] sm:$0xff]
      %v1373 = vld [vmem:[%s3 + $0xa0] sm:$0xff]
      %v1374 = vld [vmem:[%s3 + $0xa8] sm:$0xff]
      %v1375 = vld [vmem:[%s3 + $0xb0] sm:$0xff]
      %v1376 = vld [vmem:[%s3 + $0xb8] sm:$0xff]
      %v1377 = vld [vmem:[%s3 + $0xc0] sm:$0xff]
      %v1378 = vld [vmem:[%s3 + $0xc8] sm:$0xff]
      %v1379 = vld [vmem:[%s3 + $0xd0] sm:$0xff]
      %v1380 = vld [vmem:[%s3 + $0xd8] sm:$0xff]
      %v1381 = vld [vmem:[%s3 + $0xe0] sm:$0xff]
      %v1382 = vld [vmem:[%s3 + $0xe8] sm:$0xff]
      %v1383 = vld [vmem:[%s3 + $0xf0] sm:$0xff]
      %v1384 = vld [vmem:[%s3 + $0xf8] sm:$0xff]
      %v1385 = vld [vmem:[%s4] sm:$0x3]
      %v1387 = vlaneseq
      %v1388 = vshrl.u32 %v1387, 7
      %v1389 = vsub.s32 0, %v1388
      %v1390 = vrot.slane %v1385, %v1389
      %v1391 = vlaneseq
      %v1392 = vshrl.u32 %v1391, 7
      %v1393 = vsub.s32 1, %v1392
      %v1394 = vrot.slane %v1385, %v1393
      %1397 = vmatprep.subr.mxu0 %v1384
      %1398 = vmatpush1.msra.mxu0 %v1383
      %1399 = vmatprep.subr.mxu0 %v1382
      %1400 = vmatpush1.msra.mxu0 %v1381
      %1401 = vmatprep.subr.mxu0 %v1380
      %1402 = vmatpush1.msra.mxu0 %v1379
      %1403 = vmatprep.subr.mxu0 %v1378
      %1404 = vmatpush1.msra.mxu0 %v1377
      %1405 = vmatprep.subr.mxu0 %v1376
      %1406 = vmatpush1.msra.mxu0 %v1375
      %1407 = vmatprep.subr.mxu0 %v1374
      %1408 = vmatpush1.msra.mxu0 %v1373
      %1409 = vmatprep.subr.mxu0 %v1372
      %1410 = vmatpush1.msra.mxu0 %v1371
      %1411 = vmatprep.subr.mxu0 %v1370
      %1412 = vmatpush1.msra.mxu0 %v1369
      %1413 = vmatprep.subr.mxu0 %v1368
      %1414 = vmatpush1.msra.mxu0 %v1367
      %1415 = vmatprep.subr.mxu0 %v1366
      %1416 = vmatpush1.msra.mxu0 %v1365
      %1417 = vmatprep.subr.mxu0 %v1364
      %1418 = vmatpush1.msra.mxu0 %v1363
      %1419 = vmatprep.subr.mxu0 %v1362
      %1420 = vmatpush1.msra.mxu0 %v1361
      %1421 = vmatprep.subr.mxu0 %v1360
      %1422 = vmatpush1.msra.mxu0 %v1359
      %1423 = vmatprep.subr.mxu0 %v1358
      %1424 = vmatpush1.msra.mxu0 %v1357
      %1425 = vmatprep.subr.mxu0 %v1356
      %1426 = vmatpush1.msra.mxu0 %v1355
      %1427 = vmatprep.subr.mxu0 %v1354
      %1428 = vmatpush1.msra.mxu0 %v1353
      %1429 = vmatprep.subr.mxu0 0.0
      %1430 = vmatpush2.msra.mxu0 0.0
      %1431 = vmatprep.subr.mxu0 0.0
      %1432 = vmatpush2.msra.mxu0 0.0
      %1433 = vmatprep.subr.mxu0 0.0
      %1434 = vmatpush2.msra.mxu0 0.0
      %1435 = vmatprep.subr.mxu0 0.0
      %1436 = vmatpush2.msra.mxu0 0.0
      %1437 = vmatprep.subr.mxu0 0.0
      %1438 = vmatpush2.msra.mxu0 0.0
      %1439 = vmatprep.subr.mxu0 0.0
      %1440 = vmatpush2.msra.mxu0 0.0
      %1441 = vmatprep.subr.mxu0 0.0
      %1442 = vmatpush2.msra.mxu0 0.0
      %1443 = vmatprep.subr.mxu0 0.0
      %1444 = vmatpush2.msra.mxu0 0.0
      %1445 = vmatprep.subr.mxu0 0.0
      %1446 = vmatpush2.msra.mxu0 0.0
      %1447 = vmatprep.subr.mxu0 0.0
      %1448 = vmatpush2.msra.mxu0 0.0
      %1449 = vmatprep.subr.mxu0 0.0
      %1450 = vmatpush2.msra.mxu0 0.0
      %1451 = vmatprep.subr.mxu0 0.0
      %1452 = vmatpush2.msra.mxu0 0.0
      %1453 = vmatprep.subr.mxu0 0.0
      %1454 = vmatpush2.msra.mxu0 0.0
      %1455 = vmatprep.subr.mxu0 0.0
      %1456 = vmatpush2.msra.mxu0 0.0
      %1457 = vmatprep.subr.mxu0 0.0
      %1458 = vmatpush2.msra.mxu0 0.0
      %1459 = vmatprep.subr.mxu0 0.0
      %1460 = vmatpush2.msra.mxu0 0.0
      %1461 = vmatprep.mubr.f32.mxu0 0.0
      %1462 = vmatmul.mubr.f32.gmra.mxu0 %v624
      %v1463 = vpop.f32.mrf.mxu0
      %v1464 = vadd.f32 %v1390, %v1463
      %v1465 = vpop.f32.mrf.mxu0
      %v1466 = vadd.f32 %v1394, %v1465
      %1467 = vmatprep.mubr.f32.mxu0 0.0
      %1468 = vmatmul.mubr.f32.gmra.mxu0 %v728
      %v1469 = vpop.f32.mrf.mxu0
      %v1470 = vadd.f32 %v1390, %v1469
      %v1471 = vpop.f32.mrf.mxu0
      %v1472 = vadd.f32 %v1394, %v1471
      %1473 = vmatprep.mubr.f32.mxu0 0.0
      %1474 = vmatmul.mubr.f32.gmra.mxu0 %v832
      %v1475 = vpop.f32.mrf.mxu0
      %v1476 = vadd.f32 %v1390, %v1475
      %v1477 = vpop.f32.mrf.mxu0
      %v1478 = vadd.f32 %v1394, %v1477
      %1479 = vmatprep.mubr.f32.mxu0 0.0
      %1480 = vmatmul.mubr.f32.gmra.mxu0 %v936
      %v1481 = vpop.f32.mrf.mxu0
      %v1482 = vadd.f32 %v1390, %v1481
      %v1483 = vpop.f32.mrf.mxu0
      %v1484 = vadd.f32 %v1394, %v1483
      %1485 = vmatprep.mubr.f32.mxu0 0.0
      %1486 = vmatmul.mubr.f32.gmra.mxu0 %v1040
      %v1487 = vpop.f32.mrf.mxu0
      %v1488 = vadd.f32 %v1390, %v1487
      %v1489 = vpop.f32.mrf.mxu0
      %v1490 = vadd.f32 %v1394, %v1489
      %1491 = vmatprep.mubr.f32.mxu0 0.0
      %1492 = vmatmul.mubr.f32.gmra.mxu0 %v1144
      %v1493 = vpop.f32.mrf.mxu0
      %v1494 = vadd.f32 %v1390, %v1493
      %v1495 = vpop.f32.mrf.mxu0
      %v1496 = vadd.f32 %v1394, %v1495
      %1497 = vmatprep.mubr.f32.mxu0 0.0
      %1498 = vmatmul.mubr.f32.gmra.mxu0 %v1248
      %v1499 = vpop.f32.mrf.mxu0
      %v1500 = vadd.f32 %v1390, %v1499
      %v1501 = vpop.f32.mrf.mxu0
      %v1502 = vadd.f32 %v1394, %v1501
      %1503 = vmatprep.mubr.f32.mxu0 0.0
      %1504 = vmatmul.mubr.f32.gmra.mxu0 %v1352
      %v1505 = vpop.f32.mrf.mxu0
      %v1506 = vadd.f32 %v1390, %v1505
      %v1507 = vpop.f32.mrf.mxu0
      %v1508 = vadd.f32 %v1394, %v1507
      %1509 = vdwg.mxu0
      %v1510 = vand.u32 2147483647, %v1464
      %vm1511 = vcmp.le.f32.partialorder %v1510, 0.7853982
      %vm1512 = vcmp.lt.s32.totalorder %v1464, 0
      %v1513 = vand.u32 %v1464, 2139095040
      %v1514 = vshrl.u32 %v1513, 23
      %v1515 = vsub.s32 %v1514, 127
      %v1516 = vand.u32 2147483647, %v1464
      %v1517 = vand.u32 %v1516, 8388607
      %v1518 = vor.u32 %v1517, 8388608
      %v1519 = vsub.s32 0, %v1518
      %v1520 = vadd.s32 %v1515, 1
      %vm1521 = vcmp.gt.s32.totalorder %v1520, 0
      %v1522 = vsel %vm1521, %v1520, 0
      %v1523 = vshrl.u32 %v1522, 5
      %v1524 = vand.u32 %v1522, 31
      %v1525 = vsub.s32 32, %v1524
      %v1526 = vshrl.u32 683565275, %v1525
      %v1527 = vshll.u32 683565275, %v1524
      %v1528 = vshrl.u32 2475754826, %v1525
      %v1529 = vor.u32 %v1527, %v1528
      %v1530 = vshll.u32 2475754826, %v1524
      %v1531 = vshrl.u32 2131351028, %v1525
      %v1532 = vor.u32 %v1530, %v1531
      %v1533 = vshll.u32 2131351028, %v1524
      %v1534 = vshrl.u32 2102212464, %v1525
      %v1535 = vor.u32 %v1533, %v1534
      %v1536 = vshll.u32 2102212464, %v1524
      %v1537 = vshrl.u32 920167782, %v1525
      %v1538 = vor.u32 %v1536, %v1537
      %v1539 = vshll.u32 920167782, %v1524
      %v1540 = vshrl.u32 1326507024, %v1525
      %v1541 = vor.u32 %v1539, %v1540
      %vm1542 = vcmp.lt.s32.totalorder %v1523, 1
      %vm1543 = vcmp.lt.s32.totalorder %v1523, 2
      %vm1544 = vcmp.lt.s32.totalorder %v1523, 3
      %vm1545 = vcmp.lt.s32.totalorder %v1523, 4
      %v1546 = vsel %vm1542, %v1526, %v1529
      %v1547 = vsel %vm1545, %v1535, 2102212464
      %v1548 = vsel %vm1544, %v1532, %v1547
      %v1549 = vsel %vm1543, %v1546, %v1548
      %v1550 = vsel %vm1542, %v1529, %v1532
      %v1551 = vsel %vm1545, %v1538, 920167782
      %v1552 = vsel %vm1544, %v1535, %v1551
      %v1553 = vsel %vm1543, %v1550, %v1552
      %v1554 = vsel %vm1542, %v1532, %v1535
      %v1555 = vsel %vm1545, %v1541, 1326507024
      %v1556 = vsel %vm1544, %v1538, %v1555
      %v1557 = vsel %vm1543, %v1554, %v1556
      %v1558 = vshll.u32 %v1518, 8
      %v1559 = vmul.u32.u64.compose %v1558, %v1557
      %v1560 = vextract.low.u32 %v1559
      %v1561 = vextract.high.u32 %v1559
      %v1562 = vmul.u32.u64.compose %v1558, %v1553
      %v1563 = vextract.low.u32 %v1562
      %v1564 = vextract.high.u32 %v1562
      %v1565 = vmul.u32 %v1558, %v1549
      %v1566 = vadd.s32 %v1561, %v1563
      %vm1567 = vc.u32 %v1561, %v1563
      %v1568 = vadd.s32 %v1564, 1
      %v1569 = vsel %vm1567, %v1568, %v1564
      %v1570 = vadd.s32 %v1565, %v1569
      %v1571 = vadd.s32 %v1570, 536870912
      %v1572 = vshrl.u32 %v1571, 30
      %v1573 = vshll.u32 %v1572, 30
      %v1574 = vsub.s32 %v1570, %v1573
      %vm1575 = vcmp.lt.s32.totalorder %v1574, 0
      %v1576 = vsub.s32 0, %v1574
      %v1577 = vsel %vm1575, %v1576, %v1574
      %v1578 = vclz %v1577
      %v1579 = vsub.s32 %v1578, 2
      %vm1580 = vcmp.gt.s32.totalorder 0, %v1579
      %v1581 = vsel %vm1580, 0, %v1579
      %v1582 = vsub.s32 32, %v1581
      %v1583 = vshll.u32 %v1574, %v1581
      %v1584 = vshrl.u32 %v1566, %v1582
      %v1585 = vor.u32 %v1583, %v1584
      %v1586 = vsub.s32 4294967266, %v1581
      %v1587 = vadd.s32 %v1586, 127
      %v1588 = vshll.u32 %v1587, 23
      %v1589 = vor.u32 4788187, %v1588
      %v1590 = vand.u32 2147483647, %v1589
      %v1592 = vcvt.s32.f32 %v1585
      %v1593 = vmul.f32 %v1592, %v1590
      %v1594 = vxor.u32 %v1593, 2147483648
      %v1595 = vsel %vm1512, %v1594, %v1593
      %v1596 = vsub.s32 4, %v1572
      %v1597 = vsel %vm1512, %v1596, %v1572
      %v1598 = vsel %vm1511, %v1464, %v1595
      %v1599 = vsel %vm1511, 0, %v1597
      %v1600 = vcosq.f32.pop %v1598
      %v1601 = vsinq.f32.pop %v1598
      %vm1602 = vweird.f32 %v1464
      %v1603 = vadd.s32 %v1599, 3
      %v1604 = vand.u32 %v1603, 3
      %vm1605 = vcmp.lt.s32.totalorder %v1604, 2
      %vm1606 = vcmp.eq.s32.totalorder %v1604, 0
      %v1607 = vxor.u32 %v1601, 2147483648
      %v1608 = vsel %vm1606, %v1600, %v1607
      %vm1609 = vcmp.eq.s32.totalorder %v1604, 2
      %v1610 = vxor.u32 %v1600, 2147483648
      %v1611 = vsel %vm1609, %v1610, %v1601
      %v1612 = vsel %vm1605, %v1608, %v1611
      %v1613 = vsel %vm1602, nan, %v1612
      %v1614 = vand.u32 2147483647, %v1470
      %vm1615 = vcmp.le.f32.partialorder %v1614, 0.7853982
      %vm1616 = vcmp.lt.s32.totalorder %v1470, 0
      %v1617 = vand.u32 %v1470, 2139095040
      %v1618 = vshrl.u32 %v1617, 23
      %v1619 = vsub.s32 %v1618, 127
      %v1620 = vand.u32 2147483647, %v1470
      %v1621 = vand.u32 %v1620, 8388607
      %v1622 = vor.u32 %v1621, 8388608
      %v1623 = vsub.s32 0, %v1622
      %v1624 = vadd.s32 %v1619, 1
      %vm1625 = vcmp.gt.s32.totalorder %v1624, 0
      %v1626 = vsel %vm1625, %v1624, 0
      %v1627 = vshrl.u32 %v1626, 5
      %v1628 = vand.u32 %v1626, 31
      %v1629 = vsub.s32 32, %v1628
      %v1630 = vshrl.u32 683565275, %v1629
      %v1631 = vshll.u32 683565275, %v1628
      %v1632 = vshrl.u32 2475754826, %v1629
      %v1633 = vor.u32 %v1631, %v1632
      %v1634 = vshll.u32 2475754826, %v1628
      %v1635 = vshrl.u32 2131351028, %v1629
      %v1636 = vor.u32 %v1634, %v1635
      %v1637 = vshll.u32 2131351028, %v1628
      %v1638 = vshrl.u32 2102212464, %v1629
      %v1639 = vor.u32 %v1637, %v1638
      %v1640 = vshll.u32 2102212464, %v1628
      %v1641 = vshrl.u32 920167782, %v1629
      %v1642 = vor.u32 %v1640, %v1641
      %v1643 = vshll.u32 920167782, %v1628
      %v1644 = vshrl.u32 1326507024, %v1629
      %v1645 = vor.u32 %v1643, %v1644
      %vm1646 = vcmp.lt.s32.totalorder %v1627, 1
      %vm1647 = vcmp.lt.s32.totalorder %v1627, 2
      %vm1648 = vcmp.lt.s32.totalorder %v1627, 3
      %vm1649 = vcmp.lt.s32.totalorder %v1627, 4
      %v1650 = vsel %vm1646, %v1630, %v1633
      %v1651 = vsel %vm1649, %v1639, 2102212464
      %v1652 = vsel %vm1648, %v1636, %v1651
      %v1653 = vsel %vm1647, %v1650, %v1652
      %v1654 = vsel %vm1646, %v1633, %v1636
      %v1655 = vsel %vm1649, %v1642, 920167782
      %v1656 = vsel %vm1648, %v1639, %v1655
      %v1657 = vsel %vm1647, %v1654, %v1656
      %v1658 = vsel %vm1646, %v1636, %v1639
      %v1659 = vsel %vm1649, %v1645, 1326507024
      %v1660 = vsel %vm1648, %v1642, %v1659
      %v1661 = vsel %vm1647, %v1658, %v1660
      %v1662 = vshll.u32 %v1622, 8
      %v1663 = vmul.u32.u64.compose %v1662, %v1661
      %v1664 = vextract.low.u32 %v1663
      %v1665 = vextract.high.u32 %v1663
      %v1666 = vmul.u32.u64.compose %v1662, %v1657
      %v1667 = vextract.low.u32 %v1666
      %v1668 = vextract.high.u32 %v1666
      %v1669 = vmul.u32 %v1662, %v1653
      %v1670 = vadd.s32 %v1665, %v1667
      %vm1671 = vc.u32 %v1665, %v1667
      %v1672 = vadd.s32 %v1668, 1
      %v1673 = vsel %vm1671, %v1672, %v1668
      %v1674 = vadd.s32 %v1669, %v1673
      %v1675 = vadd.s32 %v1674, 536870912
      %v1676 = vshrl.u32 %v1675, 30
      %v1677 = vshll.u32 %v1676, 30
      %v1678 = vsub.s32 %v1674, %v1677
      %vm1679 = vcmp.lt.s32.totalorder %v1678, 0
      %v1680 = vsub.s32 0, %v1678
      %v1681 = vsel %vm1679, %v1680, %v1678
      %v1682 = vclz %v1681
      %v1683 = vsub.s32 %v1682, 2
      %vm1684 = vcmp.gt.s32.totalorder 0, %v1683
      %v1685 = vsel %vm1684, 0, %v1683
      %v1686 = vsub.s32 32, %v1685
      %v1687 = vshll.u32 %v1678, %v1685
      %v1688 = vshrl.u32 %v1670, %v1686
      %v1689 = vor.u32 %v1687, %v1688
      %v1690 = vsub.s32 4294967266, %v1685
      %v1691 = vadd.s32 %v1690, 127
      %v1692 = vshll.u32 %v1691, 23
      %v1693 = vor.u32 4788187, %v1692
      %v1694 = vand.u32 2147483647, %v1693
      %v1696 = vcvt.s32.f32 %v1689
      %v1697 = vmul.f32 %v1696, %v1694
      %v1698 = vxor.u32 %v1697, 2147483648
      %v1699 = vsel %vm1616, %v1698, %v1697
      %v1700 = vsub.s32 4, %v1676
      %v1701 = vsel %vm1616, %v1700, %v1676
      %v1702 = vsel %vm1615, %v1470, %v1699
      %v1703 = vsel %vm1615, 0, %v1701
      %v1704 = vcosq.f32.pop %v1702
      %v1705 = vsinq.f32.pop %v1702
      %vm1706 = vweird.f32 %v1470
      %v1707 = vadd.s32 %v1703, 3
      %v1708 = vand.u32 %v1707, 3
      %vm1709 = vcmp.lt.s32.totalorder %v1708, 2
      %vm1710 = vcmp.eq.s32.totalorder %v1708, 0
      %v1711 = vxor.u32 %v1705, 2147483648
      %v1712 = vsel %vm1710, %v1704, %v1711
      %vm1713 = vcmp.eq.s32.totalorder %v1708, 2
      %v1714 = vxor.u32 %v1704, 2147483648
      %v1715 = vsel %vm1713, %v1714, %v1705
      %v1716 = vsel %vm1709, %v1712, %v1715
      %v1717 = vsel %vm1706, nan, %v1716
      %v1718 = vand.u32 2147483647, %v1476
      %vm1719 = vcmp.le.f32.partialorder %v1718, 0.7853982
      %vm1720 = vcmp.lt.s32.totalorder %v1476, 0
      %v1721 = vand.u32 %v1476, 2139095040
      %v1722 = vshrl.u32 %v1721, 23
      %v1723 = vsub.s32 %v1722, 127
      %v1724 = vand.u32 2147483647, %v1476
      %v1725 = vand.u32 %v1724, 8388607
      %v1726 = vor.u32 %v1725, 8388608
      %v1727 = vsub.s32 0, %v1726
      %v1728 = vadd.s32 %v1723, 1
      %vm1729 = vcmp.gt.s32.totalorder %v1728, 0
      %v1730 = vsel %vm1729, %v1728, 0
      %v1731 = vshrl.u32 %v1730, 5
      %v1732 = vand.u32 %v1730, 31
      %v1733 = vsub.s32 32, %v1732
      %v1734 = vshrl.u32 683565275, %v1733
      %v1735 = vshll.u32 683565275, %v1732
      %v1736 = vshrl.u32 2475754826, %v1733
      %v1737 = vor.u32 %v1735, %v1736
      %v1738 = vshll.u32 2475754826, %v1732
      %v1739 = vshrl.u32 2131351028, %v1733
      %v1740 = vor.u32 %v1738, %v1739
      %v1741 = vshll.u32 2131351028, %v1732
      %v1742 = vshrl.u32 2102212464, %v1733
      %v1743 = vor.u32 %v1741, %v1742
      %v1744 = vshll.u32 2102212464, %v1732
      %v1745 = vshrl.u32 920167782, %v1733
      %v1746 = vor.u32 %v1744, %v1745
      %v1747 = vshll.u32 920167782, %v1732
      %v1748 = vshrl.u32 1326507024, %v1733
      %v1749 = vor.u32 %v1747, %v1748
      %vm1750 = vcmp.lt.s32.totalorder %v1731, 1
      %vm1751 = vcmp.lt.s32.totalorder %v1731, 2
      %vm1752 = vcmp.lt.s32.totalorder %v1731, 3
      %vm1753 = vcmp.lt.s32.totalorder %v1731, 4
      %v1754 = vsel %vm1750, %v1734, %v1737
      %v1755 = vsel %vm1753, %v1743, 2102212464
      %v1756 = vsel %vm1752, %v1740, %v1755
      %v1757 = vsel %vm1751, %v1754, %v1756
      %v1758 = vsel %vm1750, %v1737, %v1740
      %v1759 = vsel %vm1753, %v1746, 920167782
      %v1760 = vsel %vm1752, %v1743, %v1759
      %v1761 = vsel %vm1751, %v1758, %v1760
      %v1762 = vsel %vm1750, %v1740, %v1743
      %v1763 = vsel %vm1753, %v1749, 1326507024
      %v1764 = vsel %vm1752, %v1746, %v1763
      %v1765 = vsel %vm1751, %v1762, %v1764
      %v1766 = vshll.u32 %v1726, 8
      %v1767 = vmul.u32.u64.compose %v1766, %v1765
      %v1768 = vextract.low.u32 %v1767
      %v1769 = vextract.high.u32 %v1767
      %v1770 = vmul.u32.u64.compose %v1766, %v1761
      %v1771 = vextract.low.u32 %v1770
      %v1772 = vextract.high.u32 %v1770
      %v1773 = vmul.u32 %v1766, %v1757
      %v1774 = vadd.s32 %v1769, %v1771
      %vm1775 = vc.u32 %v1769, %v1771
      %v1776 = vadd.s32 %v1772, 1
      %v1777 = vsel %vm1775, %v1776, %v1772
      %v1778 = vadd.s32 %v1773, %v1777
      %v1779 = vadd.s32 %v1778, 536870912
      %v1780 = vshrl.u32 %v1779, 30
      %v1781 = vshll.u32 %v1780, 30
      %v1782 = vsub.s32 %v1778, %v1781
      %vm1783 = vcmp.lt.s32.totalorder %v1782, 0
      %v1784 = vsub.s32 0, %v1782
      %v1785 = vsel %vm1783, %v1784, %v1782
      %v1786 = vclz %v1785
      %v1787 = vsub.s32 %v1786, 2
      %vm1788 = vcmp.gt.s32.totalorder 0, %v1787
      %v1789 = vsel %vm1788, 0, %v1787
      %v1790 = vsub.s32 32, %v1789
      %v1791 = vshll.u32 %v1782, %v1789
      %v1792 = vshrl.u32 %v1774, %v1790
      %v1793 = vor.u32 %v1791, %v1792
      %v1794 = vsub.s32 4294967266, %v1789
      %v1795 = vadd.s32 %v1794, 127
      %v1796 = vshll.u32 %v1795, 23
      %v1797 = vor.u32 4788187, %v1796
      %v1798 = vand.u32 2147483647, %v1797
      %v1800 = vcvt.s32.f32 %v1793
      %v1801 = vmul.f32 %v1800, %v1798
      %v1802 = vxor.u32 %v1801, 2147483648
      %v1803 = vsel %vm1720, %v1802, %v1801
      %v1804 = vsub.s32 4, %v1780
      %v1805 = vsel %vm1720, %v1804, %v1780
      %v1806 = vsel %vm1719, %v1476, %v1803
      %v1807 = vsel %vm1719, 0, %v1805
      %v1808 = vcosq.f32.pop %v1806
      %v1809 = vsinq.f32.pop %v1806
      %vm1810 = vweird.f32 %v1476
      %v1811 = vadd.s32 %v1807, 3
      %v1812 = vand.u32 %v1811, 3
      %vm1813 = vcmp.lt.s32.totalorder %v1812, 2
      %vm1814 = vcmp.eq.s32.totalorder %v1812, 0
      %v1815 = vxor.u32 %v1809, 2147483648
      %v1816 = vsel %vm1814, %v1808, %v1815
      %vm1817 = vcmp.eq.s32.totalorder %v1812, 2
      %v1818 = vxor.u32 %v1808, 2147483648
      %v1819 = vsel %vm1817, %v1818, %v1809
      %v1820 = vsel %vm1813, %v1816, %v1819
      %v1821 = vsel %vm1810, nan, %v1820
      %v1822 = vand.u32 2147483647, %v1482
      %vm1823 = vcmp.le.f32.partialorder %v1822, 0.7853982
      %vm1824 = vcmp.lt.s32.totalorder %v1482, 0
      %v1825 = vand.u32 %v1482, 2139095040
      %v1826 = vshrl.u32 %v1825, 23
      %v1827 = vsub.s32 %v1826, 127
      %v1828 = vand.u32 2147483647, %v1482
      %v1829 = vand.u32 %v1828, 8388607
      %v1830 = vor.u32 %v1829, 8388608
      %v1831 = vsub.s32 0, %v1830
      %v1832 = vadd.s32 %v1827, 1
      %vm1833 = vcmp.gt.s32.totalorder %v1832, 0
      %v1834 = vsel %vm1833, %v1832, 0
      %v1835 = vshrl.u32 %v1834, 5
      %v1836 = vand.u32 %v1834, 31
      %v1837 = vsub.s32 32, %v1836
      %v1838 = vshrl.u32 683565275, %v1837
      %v1839 = vshll.u32 683565275, %v1836
      %v1840 = vshrl.u32 2475754826, %v1837
      %v1841 = vor.u32 %v1839, %v1840
      %v1842 = vshll.u32 2475754826, %v1836
      %v1843 = vshrl.u32 2131351028, %v1837
      %v1844 = vor.u32 %v1842, %v1843
      %v1845 = vshll.u32 2131351028, %v1836
      %v1846 = vshrl.u32 2102212464, %v1837
      %v1847 = vor.u32 %v1845, %v1846
      %v1848 = vshll.u32 2102212464, %v1836
      %v1849 = vshrl.u32 920167782, %v1837
      %v1850 = vor.u32 %v1848, %v1849
      %v1851 = vshll.u32 920167782, %v1836
      %v1852 = vshrl.u32 1326507024, %v1837
      %v1853 = vor.u32 %v1851, %v1852
      %vm1854 = vcmp.lt.s32.totalorder %v1835, 1
      %vm1855 = vcmp.lt.s32.totalorder %v1835, 2
      %vm1856 = vcmp.lt.s32.totalorder %v1835, 3
      %vm1857 = vcmp.lt.s32.totalorder %v1835, 4
      %v1858 = vsel %vm1854, %v1838, %v1841
      %v1859 = vsel %vm1857, %v1847, 2102212464
      %v1860 = vsel %vm1856, %v1844, %v1859
      %v1861 = vsel %vm1855, %v1858, %v1860
      %v1862 = vsel %vm1854, %v1841, %v1844
      %v1863 = vsel %vm1857, %v1850, 920167782
      %v1864 = vsel %vm1856, %v1847, %v1863
      %v1865 = vsel %vm1855, %v1862, %v1864
      %v1866 = vsel %vm1854, %v1844, %v1847
      %v1867 = vsel %vm1857, %v1853, 1326507024
      %v1868 = vsel %vm1856, %v1850, %v1867
      %v1869 = vsel %vm1855, %v1866, %v1868
      %v1870 = vshll.u32 %v1830, 8
      %v1871 = vmul.u32.u64.compose %v1870, %v1869
      %v1872 = vextract.low.u32 %v1871
      %v1873 = vextract.high.u32 %v1871
      %v1874 = vmul.u32.u64.compose %v1870, %v1865
      %v1875 = vextract.low.u32 %v1874
      %v1876 = vextract.high.u32 %v1874
      %v1877 = vmul.u32 %v1870, %v1861
      %v1878 = vadd.s32 %v1873, %v1875
      %vm1879 = vc.u32 %v1873, %v1875
      %v1880 = vadd.s32 %v1876, 1
      %v1881 = vsel %vm1879, %v1880, %v1876
      %v1882 = vadd.s32 %v1877, %v1881
      %v1883 = vadd.s32 %v1882, 536870912
      %v1884 = vshrl.u32 %v1883, 30
      %v1885 = vshll.u32 %v1884, 30
      %v1886 = vsub.s32 %v1882, %v1885
      %vm1887 = vcmp.lt.s32.totalorder %v1886, 0
      %v1888 = vsub.s32 0, %v1886
      %v1889 = vsel %vm1887, %v1888, %v1886
      %v1890 = vclz %v1889
      %v1891 = vsub.s32 %v1890, 2
      %vm1892 = vcmp.gt.s32.totalorder 0, %v1891
      %v1893 = vsel %vm1892, 0, %v1891
      %v1894 = vsub.s32 32, %v1893
      %v1895 = vshll.u32 %v1886, %v1893
      %v1896 = vshrl.u32 %v1878, %v1894
      %v1897 = vor.u32 %v1895, %v1896
      %v1898 = vsub.s32 4294967266, %v1893
      %v1899 = vadd.s32 %v1898, 127
      %v1900 = vshll.u32 %v1899, 23
      %v1901 = vor.u32 4788187, %v1900
      %v1902 = vand.u32 2147483647, %v1901
      %v1904 = vcvt.s32.f32 %v1897
      %v1905 = vmul.f32 %v1904, %v1902
      %v1906 = vxor.u32 %v1905, 2147483648
      %v1907 = vsel %vm1824, %v1906, %v1905
      %v1908 = vsub.s32 4, %v1884
      %v1909 = vsel %vm1824, %v1908, %v1884
      %v1910 = vsel %vm1823, %v1482, %v1907
      %v1911 = vsel %vm1823, 0, %v1909
      %v1912 = vcosq.f32.pop %v1910
      %v1913 = vsinq.f32.pop %v1910
      %vm1914 = vweird.f32 %v1482
      %v1915 = vadd.s32 %v1911, 3
      %v1916 = vand.u32 %v1915, 3
      %vm1917 = vcmp.lt.s32.totalorder %v1916, 2
      %vm1918 = vcmp.eq.s32.totalorder %v1916, 0
      %v1919 = vxor.u32 %v1913, 2147483648
      %v1920 = vsel %vm1918, %v1912, %v1919
      %vm1921 = vcmp.eq.s32.totalorder %v1916, 2
      %v1922 = vxor.u32 %v1912, 2147483648
      %v1923 = vsel %vm1921, %v1922, %v1913
      %v1924 = vsel %vm1917, %v1920, %v1923
      %v1925 = vsel %vm1914, nan, %v1924
      %v1926 = vand.u32 2147483647, %v1488
      %vm1927 = vcmp.le.f32.partialorder %v1926, 0.7853982
      %vm1928 = vcmp.lt.s32.totalorder %v1488, 0
      %v1929 = vand.u32 %v1488, 2139095040
      %v1930 = vshrl.u32 %v1929, 23
      %v1931 = vsub.s32 %v1930, 127
      %v1932 = vand.u32 2147483647, %v1488
      %v1933 = vand.u32 %v1932, 8388607
      %v1934 = vor.u32 %v1933, 8388608
      %v1935 = vsub.s32 0, %v1934
      %v1936 = vadd.s32 %v1931, 1
      %vm1937 = vcmp.gt.s32.totalorder %v1936, 0
      %v1938 = vsel %vm1937, %v1936, 0
      %v1939 = vshrl.u32 %v1938, 5
      %v1940 = vand.u32 %v1938, 31
      %v1941 = vsub.s32 32, %v1940
      %v1942 = vshrl.u32 683565275, %v1941
      %v1943 = vshll.u32 683565275, %v1940
      %v1944 = vshrl.u32 2475754826, %v1941
      %v1945 = vor.u32 %v1943, %v1944
      %v1946 = vshll.u32 2475754826, %v1940
      %v1947 = vshrl.u32 2131351028, %v1941
      %v1948 = vor.u32 %v1946, %v1947
      %v1949 = vshll.u32 2131351028, %v1940
      %v1950 = vshrl.u32 2102212464, %v1941
      %v1951 = vor.u32 %v1949, %v1950
      %v1952 = vshll.u32 2102212464, %v1940
      %v1953 = vshrl.u32 920167782, %v1941
      %v1954 = vor.u32 %v1952, %v1953
      %v1955 = vshll.u32 920167782, %v1940
      %v1956 = vshrl.u32 1326507024, %v1941
      %v1957 = vor.u32 %v1955, %v1956
      %vm1958 = vcmp.lt.s32.totalorder %v1939, 1
      %vm1959 = vcmp.lt.s32.totalorder %v1939, 2
      %vm1960 = vcmp.lt.s32.totalorder %v1939, 3
      %vm1961 = vcmp.lt.s32.totalorder %v1939, 4
      %v1962 = vsel %vm1958, %v1942, %v1945
      %v1963 = vsel %vm1961, %v1951, 2102212464
      %v1964 = vsel %vm1960, %v1948, %v1963
      %v1965 = vsel %vm1959, %v1962, %v1964
      %v1966 = vsel %vm1958, %v1945, %v1948
      %v1967 = vsel %vm1961, %v1954, 920167782
      %v1968 = vsel %vm1960, %v1951, %v1967
      %v1969 = vsel %vm1959, %v1966, %v1968
      %v1970 = vsel %vm1958, %v1948, %v1951
      %v1971 = vsel %vm1961, %v1957, 1326507024
      %v1972 = vsel %vm1960, %v1954, %v1971
      %v1973 = vsel %vm1959, %v1970, %v1972
      %v1974 = vshll.u32 %v1934, 8
      %v1975 = vmul.u32.u64.compose %v1974, %v1973
      %v1976 = vextract.low.u32 %v1975
      %v1977 = vextract.high.u32 %v1975
      %v1978 = vmul.u32.u64.compose %v1974, %v1969
      %v1979 = vextract.low.u32 %v1978
      %v1980 = vextract.high.u32 %v1978
      %v1981 = vmul.u32 %v1974, %v1965
      %v1982 = vadd.s32 %v1977, %v1979
      %vm1983 = vc.u32 %v1977, %v1979
      %v1984 = vadd.s32 %v1980, 1
      %v1985 = vsel %vm1983, %v1984, %v1980
      %v1986 = vadd.s32 %v1981, %v1985
      %v1987 = vadd.s32 %v1986, 536870912
      %v1988 = vshrl.u32 %v1987, 30
      %v1989 = vshll.u32 %v1988, 30
      %v1990 = vsub.s32 %v1986, %v1989
      %vm1991 = vcmp.lt.s32.totalorder %v1990, 0
      %v1992 = vsub.s32 0, %v1990
      %v1993 = vsel %vm1991, %v1992, %v1990
      %v1994 = vclz %v1993
      %v1995 = vsub.s32 %v1994, 2
      %vm1996 = vcmp.gt.s32.totalorder 0, %v1995
      %v1997 = vsel %vm1996, 0, %v1995
      %v1998 = vsub.s32 32, %v1997
      %v1999 = vshll.u32 %v1990, %v1997
      %v2000 = vshrl.u32 %v1982, %v1998
      %v2001 = vor.u32 %v1999, %v2000
      %v2002 = vsub.s32 4294967266, %v1997
      %v2003 = vadd.s32 %v2002, 127
      %v2004 = vshll.u32 %v2003, 23
      %v2005 = vor.u32 4788187, %v2004
      %v2006 = vand.u32 2147483647, %v2005
      %v2008 = vcvt.s32.f32 %v2001
      %v2009 = vmul.f32 %v2008, %v2006
      %v2010 = vxor.u32 %v2009, 2147483648
      %v2011 = vsel %vm1928, %v2010, %v2009
      %v2012 = vsub.s32 4, %v1988
      %v2013 = vsel %vm1928, %v2012, %v1988
      %v2014 = vsel %vm1927, %v1488, %v2011
      %v2015 = vsel %vm1927, 0, %v2013
      %v2016 = vcosq.f32.pop %v2014
      %v2017 = vsinq.f32.pop %v2014
      %vm2018 = vweird.f32 %v1488
      %v2019 = vadd.s32 %v2015, 3
      %v2020 = vand.u32 %v2019, 3
      %vm2021 = vcmp.lt.s32.totalorder %v2020, 2
      %vm2022 = vcmp.eq.s32.totalorder %v2020, 0
      %v2023 = vxor.u32 %v2017, 2147483648
      %v2024 = vsel %vm2022, %v2016, %v2023
      %vm2025 = vcmp.eq.s32.totalorder %v2020, 2
      %v2026 = vxor.u32 %v2016, 2147483648
      %v2027 = vsel %vm2025, %v2026, %v2017
      %v2028 = vsel %vm2021, %v2024, %v2027
      %v2029 = vsel %vm2018, nan, %v2028
      %v2030 = vand.u32 2147483647, %v1494
      %vm2031 = vcmp.le.f32.partialorder %v2030, 0.7853982
      %vm2032 = vcmp.lt.s32.totalorder %v1494, 0
      %v2033 = vand.u32 %v1494, 2139095040
      %v2034 = vshrl.u32 %v2033, 23
      %v2035 = vsub.s32 %v2034, 127
      %v2036 = vand.u32 2147483647, %v1494
      %v2037 = vand.u32 %v2036, 8388607
      %v2038 = vor.u32 %v2037, 8388608
      %v2039 = vsub.s32 0, %v2038
      %v2040 = vadd.s32 %v2035, 1
      %vm2041 = vcmp.gt.s32.totalorder %v2040, 0
      %v2042 = vsel %vm2041, %v2040, 0
      %v2043 = vshrl.u32 %v2042, 5
      %v2044 = vand.u32 %v2042, 31
      %v2045 = vsub.s32 32, %v2044
      %v2046 = vshrl.u32 683565275, %v2045
      %v2047 = vshll.u32 683565275, %v2044
      %v2048 = vshrl.u32 2475754826, %v2045
      %v2049 = vor.u32 %v2047, %v2048
      %v2050 = vshll.u32 2475754826, %v2044
      %v2051 = vshrl.u32 2131351028, %v2045
      %v2052 = vor.u32 %v2050, %v2051
      %v2053 = vshll.u32 2131351028, %v2044
      %v2054 = vshrl.u32 2102212464, %v2045
      %v2055 = vor.u32 %v2053, %v2054
      %v2056 = vshll.u32 2102212464, %v2044
      %v2057 = vshrl.u32 920167782, %v2045
      %v2058 = vor.u32 %v2056, %v2057
      %v2059 = vshll.u32 920167782, %v2044
      %v2060 = vshrl.u32 1326507024, %v2045
      %v2061 = vor.u32 %v2059, %v2060
      %vm2062 = vcmp.lt.s32.totalorder %v2043, 1
      %vm2063 = vcmp.lt.s32.totalorder %v2043, 2
      %vm2064 = vcmp.lt.s32.totalorder %v2043, 3
      %vm2065 = vcmp.lt.s32.totalorder %v2043, 4
      %v2066 = vsel %vm2062, %v2046, %v2049
      %v2067 = vsel %vm2065, %v2055, 2102212464
      %v2068 = vsel %vm2064, %v2052, %v2067
      %v2069 = vsel %vm2063, %v2066, %v2068
      %v2070 = vsel %vm2062, %v2049, %v2052
      %v2071 = vsel %vm2065, %v2058, 920167782
      %v2072 = vsel %vm2064, %v2055, %v2071
      %v2073 = vsel %vm2063, %v2070, %v2072
      %v2074 = vsel %vm2062, %v2052, %v2055
      %v2075 = vsel %vm2065, %v2061, 1326507024
      %v2076 = vsel %vm2064, %v2058, %v2075
      %v2077 = vsel %vm2063, %v2074, %v2076
      %v2078 = vshll.u32 %v2038, 8
      %v2079 = vmul.u32.u64.compose %v2078, %v2077
      %v2080 = vextract.low.u32 %v2079
      %v2081 = vextract.high.u32 %v2079
      %v2082 = vmul.u32.u64.compose %v2078, %v2073
      %v2083 = vextract.low.u32 %v2082
      %v2084 = vextract.high.u32 %v2082
      %v2085 = vmul.u32 %v2078, %v2069
      %v2086 = vadd.s32 %v2081, %v2083
      %vm2087 = vc.u32 %v2081, %v2083
      %v2088 = vadd.s32 %v2084, 1
      %v2089 = vsel %vm2087, %v2088, %v2084
      %v2090 = vadd.s32 %v2085, %v2089
      %v2091 = vadd.s32 %v2090, 536870912
      %v2092 = vshrl.u32 %v2091, 30
      %v2093 = vshll.u32 %v2092, 30
      %v2094 = vsub.s32 %v2090, %v2093
      %vm2095 = vcmp.lt.s32.totalorder %v2094, 0
      %v2096 = vsub.s32 0, %v2094
      %v2097 = vsel %vm2095, %v2096, %v2094
      %v2098 = vclz %v2097
      %v2099 = vsub.s32 %v2098, 2
      %vm2100 = vcmp.gt.s32.totalorder 0, %v2099
      %v2101 = vsel %vm2100, 0, %v2099
      %v2102 = vsub.s32 32, %v2101
      %v2103 = vshll.u32 %v2094, %v2101
      %v2104 = vshrl.u32 %v2086, %v2102
      %v2105 = vor.u32 %v2103, %v2104
      %v2106 = vsub.s32 4294967266, %v2101
      %v2107 = vadd.s32 %v2106, 127
      %v2108 = vshll.u32 %v2107, 23
      %v2109 = vor.u32 4788187, %v2108
      %v2110 = vand.u32 2147483647, %v2109
      %v2112 = vcvt.s32.f32 %v2105
      %v2113 = vmul.f32 %v2112, %v2110
      %v2114 = vxor.u32 %v2113, 2147483648
      %v2115 = vsel %vm2032, %v2114, %v2113
      %v2116 = vsub.s32 4, %v2092
      %v2117 = vsel %vm2032, %v2116, %v2092
      %v2118 = vsel %vm2031, %v1494, %v2115
      %v2119 = vsel %vm2031, 0, %v2117
      %v2120 = vcosq.f32.pop %v2118
      %v2121 = vsinq.f32.pop %v2118
      %vm2122 = vweird.f32 %v1494
      %v2123 = vadd.s32 %v2119, 3
      %v2124 = vand.u32 %v2123, 3
      %vm2125 = vcmp.lt.s32.totalorder %v2124, 2
      %vm2126 = vcmp.eq.s32.totalorder %v2124, 0
      %v2127 = vxor.u32 %v2121, 2147483648
      %v2128 = vsel %vm2126, %v2120, %v2127
      %vm2129 = vcmp.eq.s32.totalorder %v2124, 2
      %v2130 = vxor.u32 %v2120, 2147483648
      %v2131 = vsel %vm2129, %v2130, %v2121
      %v2132 = vsel %vm2125, %v2128, %v2131
      %v2133 = vsel %vm2122, nan, %v2132
      %v2134 = vand.u32 2147483647, %v1500
      %vm2135 = vcmp.le.f32.partialorder %v2134, 0.7853982
      %vm2136 = vcmp.lt.s32.totalorder %v1500, 0
      %v2137 = vand.u32 %v1500, 2139095040
      %v2138 = vshrl.u32 %v2137, 23
      %v2139 = vsub.s32 %v2138, 127
      %v2140 = vand.u32 2147483647, %v1500
      %v2141 = vand.u32 %v2140, 8388607
      %v2142 = vor.u32 %v2141, 8388608
      %v2143 = vsub.s32 0, %v2142
      %v2144 = vadd.s32 %v2139, 1
      %vm2145 = vcmp.gt.s32.totalorder %v2144, 0
      %v2146 = vsel %vm2145, %v2144, 0
      %v2147 = vshrl.u32 %v2146, 5
      %v2148 = vand.u32 %v2146, 31
      %v2149 = vsub.s32 32, %v2148
      %v2150 = vshrl.u32 683565275, %v2149
      %v2151 = vshll.u32 683565275, %v2148
      %v2152 = vshrl.u32 2475754826, %v2149
      %v2153 = vor.u32 %v2151, %v2152
      %v2154 = vshll.u32 2475754826, %v2148
      %v2155 = vshrl.u32 2131351028, %v2149
      %v2156 = vor.u32 %v2154, %v2155
      %v2157 = vshll.u32 2131351028, %v2148
      %v2158 = vshrl.u32 2102212464, %v2149
      %v2159 = vor.u32 %v2157, %v2158
      %v2160 = vshll.u32 2102212464, %v2148
      %v2161 = vshrl.u32 920167782, %v2149
      %v2162 = vor.u32 %v2160, %v2161
      %v2163 = vshll.u32 920167782, %v2148
      %v2164 = vshrl.u32 1326507024, %v2149
      %v2165 = vor.u32 %v2163, %v2164
      %vm2166 = vcmp.lt.s32.totalorder %v2147, 1
      %vm2167 = vcmp.lt.s32.totalorder %v2147, 2
      %vm2168 = vcmp.lt.s32.totalorder %v2147, 3
      %vm2169 = vcmp.lt.s32.totalorder %v2147, 4
      %v2170 = vsel %vm2166, %v2150, %v2153
      %v2171 = vsel %vm2169, %v2159, 2102212464
      %v2172 = vsel %vm2168, %v2156, %v2171
      %v2173 = vsel %vm2167, %v2170, %v2172
      %v2174 = vsel %vm2166, %v2153, %v2156
      %v2175 = vsel %vm2169, %v2162, 920167782
      %v2176 = vsel %vm2168, %v2159, %v2175
      %v2177 = vsel %vm2167, %v2174, %v2176
      %v2178 = vsel %vm2166, %v2156, %v2159
      %v2179 = vsel %vm2169, %v2165, 1326507024
      %v2180 = vsel %vm2168, %v2162, %v2179
      %v2181 = vsel %vm2167, %v2178, %v2180
      %v2182 = vshll.u32 %v2142, 8
      %v2183 = vmul.u32.u64.compose %v2182, %v2181
      %v2184 = vextract.low.u32 %v2183
      %v2185 = vextract.high.u32 %v2183
      %v2186 = vmul.u32.u64.compose %v2182, %v2177
      %v2187 = vextract.low.u32 %v2186
      %v2188 = vextract.high.u32 %v2186
      %v2189 = vmul.u32 %v2182, %v2173
      %v2190 = vadd.s32 %v2185, %v2187
      %vm2191 = vc.u32 %v2185, %v2187
      %v2192 = vadd.s32 %v2188, 1
      %v2193 = vsel %vm2191, %v2192, %v2188
      %v2194 = vadd.s32 %v2189, %v2193
      %v2195 = vadd.s32 %v2194, 536870912
      %v2196 = vshrl.u32 %v2195, 30
      %v2197 = vshll.u32 %v2196, 30
      %v2198 = vsub.s32 %v2194, %v2197
      %vm2199 = vcmp.lt.s32.totalorder %v2198, 0
      %v2200 = vsub.s32 0, %v2198
      %v2201 = vsel %vm2199, %v2200, %v2198
      %v2202 = vclz %v2201
      %v2203 = vsub.s32 %v2202, 2
      %vm2204 = vcmp.gt.s32.totalorder 0, %v2203
      %v2205 = vsel %vm2204, 0, %v2203
      %v2206 = vsub.s32 32, %v2205
      %v2207 = vshll.u32 %v2198, %v2205
      %v2208 = vshrl.u32 %v2190, %v2206
      %v2209 = vor.u32 %v2207, %v2208
      %v2210 = vsub.s32 4294967266, %v2205
      %v2211 = vadd.s32 %v2210, 127
      %v2212 = vshll.u32 %v2211, 23
      %v2213 = vor.u32 4788187, %v2212
      %v2214 = vand.u32 2147483647, %v2213
      %v2216 = vcvt.s32.f32 %v2209
      %v2217 = vmul.f32 %v2216, %v2214
      %v2218 = vxor.u32 %v2217, 2147483648
      %v2219 = vsel %vm2136, %v2218, %v2217
      %v2220 = vsub.s32 4, %v2196
      %v2221 = vsel %vm2136, %v2220, %v2196
      %v2222 = vsel %vm2135, %v1500, %v2219
      %v2223 = vsel %vm2135, 0, %v2221
      %v2224 = vcosq.f32.pop %v2222
      %v2225 = vsinq.f32.pop %v2222
      %vm2226 = vweird.f32 %v1500
      %v2227 = vadd.s32 %v2223, 3
      %v2228 = vand.u32 %v2227, 3
      %vm2229 = vcmp.lt.s32.totalorder %v2228, 2
      %vm2230 = vcmp.eq.s32.totalorder %v2228, 0
      %v2231 = vxor.u32 %v2225, 2147483648
      %v2232 = vsel %vm2230, %v2224, %v2231
      %vm2233 = vcmp.eq.s32.totalorder %v2228, 2
      %v2234 = vxor.u32 %v2224, 2147483648
      %v2235 = vsel %vm2233, %v2234, %v2225
      %v2236 = vsel %vm2229, %v2232, %v2235
      %v2237 = vsel %vm2226, nan, %v2236
      %v2238 = vand.u32 2147483647, %v1506
      %vm2239 = vcmp.le.f32.partialorder %v2238, 0.7853982
      %vm2240 = vcmp.lt.s32.totalorder %v1506, 0
      %v2241 = vand.u32 %v1506, 2139095040
      %v2242 = vshrl.u32 %v2241, 23
      %v2243 = vsub.s32 %v2242, 127
      %v2244 = vand.u32 2147483647, %v1506
      %v2245 = vand.u32 %v2244, 8388607
      %v2246 = vor.u32 %v2245, 8388608
      %v2247 = vsub.s32 0, %v2246
      %v2248 = vadd.s32 %v2243, 1
      %vm2249 = vcmp.gt.s32.totalorder %v2248, 0
      %v2250 = vsel %vm2249, %v2248, 0
      %v2251 = vshrl.u32 %v2250, 5
      %v2252 = vand.u32 %v2250, 31
      %v2253 = vsub.s32 32, %v2252
      %v2254 = vshrl.u32 683565275, %v2253
      %v2255 = vshll.u32 683565275, %v2252
      %v2256 = vshrl.u32 2475754826, %v2253
      %v2257 = vor.u32 %v2255, %v2256
      %v2258 = vshll.u32 2475754826, %v2252
      %v2259 = vshrl.u32 2131351028, %v2253
      %v2260 = vor.u32 %v2258, %v2259
      %v2261 = vshll.u32 2131351028, %v2252
      %v2262 = vshrl.u32 2102212464, %v2253
      %v2263 = vor.u32 %v2261, %v2262
      %v2264 = vshll.u32 2102212464, %v2252
      %v2265 = vshrl.u32 920167782, %v2253
      %v2266 = vor.u32 %v2264, %v2265
      %v2267 = vshll.u32 920167782, %v2252
      %v2268 = vshrl.u32 1326507024, %v2253
      %v2269 = vor.u32 %v2267, %v2268
      %vm2270 = vcmp.lt.s32.totalorder %v2251, 1
      %vm2271 = vcmp.lt.s32.totalorder %v2251, 2
      %vm2272 = vcmp.lt.s32.totalorder %v2251, 3
      %vm2273 = vcmp.lt.s32.totalorder %v2251, 4
      %v2274 = vsel %vm2270, %v2254, %v2257
      %v2275 = vsel %vm2273, %v2263, 2102212464
      %v2276 = vsel %vm2272, %v2260, %v2275
      %v2277 = vsel %vm2271, %v2274, %v2276
      %v2278 = vsel %vm2270, %v2257, %v2260
      %v2279 = vsel %vm2273, %v2266, 920167782
      %v2280 = vsel %vm2272, %v2263, %v2279
      %v2281 = vsel %vm2271, %v2278, %v2280
      %v2282 = vsel %vm2270, %v2260, %v2263
      %v2283 = vsel %vm2273, %v2269, 1326507024
      %v2284 = vsel %vm2272, %v2266, %v2283
      %v2285 = vsel %vm2271, %v2282, %v2284
      %v2286 = vshll.u32 %v2246, 8
      %v2287 = vmul.u32.u64.compose %v2286, %v2285
      %v2288 = vextract.low.u32 %v2287
      %v2289 = vextract.high.u32 %v2287
      %v2290 = vmul.u32.u64.compose %v2286, %v2281
      %v2291 = vextract.low.u32 %v2290
      %v2292 = vextract.high.u32 %v2290
      %v2293 = vmul.u32 %v2286, %v2277
      %v2294 = vadd.s32 %v2289, %v2291
      %vm2295 = vc.u32 %v2289, %v2291
      %v2296 = vadd.s32 %v2292, 1
      %v2297 = vsel %vm2295, %v2296, %v2292
      %v2298 = vadd.s32 %v2293, %v2297
      %v2299 = vadd.s32 %v2298, 536870912
      %v2300 = vshrl.u32 %v2299, 30
      %v2301 = vshll.u32 %v2300, 30
      %v2302 = vsub.s32 %v2298, %v2301
      %vm2303 = vcmp.lt.s32.totalorder %v2302, 0
      %v2304 = vsub.s32 0, %v2302
      %v2305 = vsel %vm2303, %v2304, %v2302
      %v2306 = vclz %v2305
      %v2307 = vsub.s32 %v2306, 2
      %vm2308 = vcmp.gt.s32.totalorder 0, %v2307
      %v2309 = vsel %vm2308, 0, %v2307
      %v2310 = vsub.s32 32, %v2309
      %v2311 = vshll.u32 %v2302, %v2309
      %v2312 = vshrl.u32 %v2294, %v2310
      %v2313 = vor.u32 %v2311, %v2312
      %v2314 = vsub.s32 4294967266, %v2309
      %v2315 = vadd.s32 %v2314, 127
      %v2316 = vshll.u32 %v2315, 23
      %v2317 = vor.u32 4788187, %v2316
      %v2318 = vand.u32 2147483647, %v2317
      %v2320 = vcvt.s32.f32 %v2313
      %v2321 = vmul.f32 %v2320, %v2318
      %v2322 = vxor.u32 %v2321, 2147483648
      %v2323 = vsel %vm2240, %v2322, %v2321
      %v2324 = vsub.s32 4, %v2300
      %v2325 = vsel %vm2240, %v2324, %v2300
      %v2326 = vsel %vm2239, %v1506, %v2323
      %v2327 = vsel %vm2239, 0, %v2325
      %v2328 = vcosq.f32.pop %v2326
      %v2329 = vsinq.f32.pop %v2326
      %vm2330 = vweird.f32 %v1506
      %v2331 = vadd.s32 %v2327, 3
      %v2332 = vand.u32 %v2331, 3
      %vm2333 = vcmp.lt.s32.totalorder %v2332, 2
      %vm2334 = vcmp.eq.s32.totalorder %v2332, 0
      %v2335 = vxor.u32 %v2329, 2147483648
      %v2336 = vsel %vm2334, %v2328, %v2335
      %vm2337 = vcmp.eq.s32.totalorder %v2332, 2
      %v2338 = vxor.u32 %v2328, 2147483648
      %v2339 = vsel %vm2337, %v2338, %v2329
      %v2340 = vsel %vm2333, %v2336, %v2339
      %v2341 = vsel %vm2330, nan, %v2340
      %v2342 = vld [vmem:[%s5] sm:$0xff]
      %v2343 = vld [vmem:[%s5 + $0x8] sm:$0xff]
      %v2344 = vld [vmem:[%s5 + $0x10] sm:$0xff]
      %v2345 = vld [vmem:[%s5 + $0x18] sm:$0xff]
      %v2346 = vld [vmem:[%s5 + $0x20] sm:$0xff]
      %v2347 = vld [vmem:[%s5 + $0x28] sm:$0xff]
      %v2348 = vld [vmem:[%s5 + $0x30] sm:$0xff]
      %v2349 = vld [vmem:[%s5 + $0x38] sm:$0xff]
      %v2350 = vld [vmem:[%s5 + $0x40] sm:$0xff]
      %v2351 = vld [vmem:[%s5 + $0x48] sm:$0xff]
      %v2352 = vld [vmem:[%s5 + $0x50] sm:$0xff]
      %v2353 = vld [vmem:[%s5 + $0x58] sm:$0xff]
      %v2354 = vld [vmem:[%s5 + $0x60] sm:$0xff]
      %v2355 = vld [vmem:[%s5 + $0x68] sm:$0xff]
      %v2356 = vld [vmem:[%s5 + $0x70] sm:$0xff]
      %v2357 = vld [vmem:[%s5 + $0x78] sm:$0xff]
      %v2358 = vld [vmem:[%s5 + $0x80] sm:$0xff]
      %v2359 = vld [vmem:[%s5 + $0x88] sm:$0xff]
      %v2360 = vld [vmem:[%s5 + $0x90] sm:$0xff]
      %v2361 = vld [vmem:[%s5 + $0x98] sm:$0xff]
      %v2362 = vld [vmem:[%s5 + $0xa0] sm:$0xff]
      %v2363 = vld [vmem:[%s5 + $0xa8] sm:$0xff]
      %v2364 = vld [vmem:[%s5 + $0xb0] sm:$0xff]
      %v2365 = vld [vmem:[%s5 + $0xb8] sm:$0xff]
      %v2366 = vld [vmem:[%s5 + $0xc0] sm:$0xff]
      %v2367 = vld [vmem:[%s5 + $0xc8] sm:$0xff]
      %v2368 = vld [vmem:[%s5 + $0xd0] sm:$0xff]
      %v2369 = vld [vmem:[%s5 + $0xd8] sm:$0xff]
      %v2370 = vld [vmem:[%s5 + $0xe0] sm:$0xff]
      %v2371 = vld [vmem:[%s5 + $0xe8] sm:$0xff]
      %v2372 = vld [vmem:[%s5 + $0xf0] sm:$0xff]
      %v2373 = vld [vmem:[%s5 + $0xf8] sm:$0xff]
      %v2374 = vld [vmem:[%s6] sm:$0x3]
      %v2376 = vlaneseq
      %v2377 = vshrl.u32 %v2376, 7
      %v2378 = vsub.s32 0, %v2377
      %v2379 = vrot.slane %v2374, %v2378
      %v2380 = vlaneseq
      %v2381 = vshrl.u32 %v2380, 7
      %v2382 = vsub.s32 1, %v2381
      %v2383 = vrot.slane %v2374, %v2382
      %2386 = vmatprep.subr.mxu0 %v2373
      %2387 = vmatpush1.msra.mxu0 %v2372
      %2388 = vmatprep.subr.mxu0 %v2371
      %2389 = vmatpush1.msra.mxu0 %v2370
      %2390 = vmatprep.subr.mxu0 %v2369
      %2391 = vmatpush1.msra.mxu0 %v2368
      %2392 = vmatprep.subr.mxu0 %v2367
      %2393 = vmatpush1.msra.mxu0 %v2366
      %2394 = vmatprep.subr.mxu0 %v2365
      %2395 = vmatpush1.msra.mxu0 %v2364
      %2396 = vmatprep.subr.mxu0 %v2363
      %2397 = vmatpush1.msra.mxu0 %v2362
      %2398 = vmatprep.subr.mxu0 %v2361
      %2399 = vmatpush1.msra.mxu0 %v2360
      %2400 = vmatprep.subr.mxu0 %v2359
      %2401 = vmatpush1.msra.mxu0 %v2358
      %2402 = vmatprep.subr.mxu0 %v2357
      %2403 = vmatpush1.msra.mxu0 %v2356
      %2404 = vmatprep.subr.mxu0 %v2355
      %2405 = vmatpush1.msra.mxu0 %v2354
      %2406 = vmatprep.subr.mxu0 %v2353
      %2407 = vmatpush1.msra.mxu0 %v2352
      %2408 = vmatprep.subr.mxu0 %v2351
      %2409 = vmatpush1.msra.mxu0 %v2350
      %2410 = vmatprep.subr.mxu0 %v2349
      %2411 = vmatpush1.msra.mxu0 %v2348
      %2412 = vmatprep.subr.mxu0 %v2347
      %2413 = vmatpush1.msra.mxu0 %v2346
      %2414 = vmatprep.subr.mxu0 %v2345
      %2415 = vmatpush1.msra.mxu0 %v2344
      %2416 = vmatprep.subr.mxu0 %v2343
      %2417 = vmatpush1.msra.mxu0 %v2342
      %2418 = vmatprep.subr.mxu0 0.0
      %2419 = vmatpush2.msra.mxu0 0.0
      %2420 = vmatprep.subr.mxu0 0.0
      %2421 = vmatpush2.msra.mxu0 0.0
      %2422 = vmatprep.subr.mxu0 0.0
      %2423 = vmatpush2.msra.mxu0 0.0
      %2424 = vmatprep.subr.mxu0 0.0
      %2425 = vmatpush2.msra.mxu0 0.0
      %2426 = vmatprep.subr.mxu0 0.0
      %2427 = vmatpush2.msra.mxu0 0.0
      %2428 = vmatprep.subr.mxu0 0.0
      %2429 = vmatpush2.msra.mxu0 0.0
      %2430 = vmatprep.subr.mxu0 0.0
      %2431 = vmatpush2.msra.mxu0 0.0
      %2432 = vmatprep.subr.mxu0 0.0
      %2433 = vmatpush2.msra.mxu0 0.0
      %2434 = vmatprep.subr.mxu0 0.0
      %2435 = vmatpush2.msra.mxu0 0.0
      %2436 = vmatprep.subr.mxu0 0.0
      %2437 = vmatpush2.msra.mxu0 0.0
      %2438 = vmatprep.subr.mxu0 0.0
      %2439 = vmatpush2.msra.mxu0 0.0
      %2440 = vmatprep.subr.mxu0 0.0
      %2441 = vmatpush2.msra.mxu0 0.0
      %2442 = vmatprep.subr.mxu0 0.0
      %2443 = vmatpush2.msra.mxu0 0.0
      %2444 = vmatprep.subr.mxu0 0.0
      %2445 = vmatpush2.msra.mxu0 0.0
      %2446 = vmatprep.subr.mxu0 0.0
      %2447 = vmatpush2.msra.mxu0 0.0
      %2448 = vmatprep.subr.mxu0 0.0
      %2449 = vmatpush2.msra.mxu0 0.0
      %2450 = vmatprep.mubr.f32.mxu0 0.0
      %2451 = vmatmul.mubr.f32.gmra.mxu0 %v1613
      %v2452 = vpop.f32.mrf.mxu0
      %v2453 = vadd.f32 %v2379, %v2452
      %v2454 = vpop.f32.mrf.mxu0
      %v2455 = vadd.f32 %v2383, %v2454
      %2456 = vmatprep.mubr.f32.mxu0 0.0
      %2457 = vmatmul.mubr.f32.gmra.mxu0 %v1717
      %v2458 = vpop.f32.mrf.mxu0
      %v2459 = vadd.f32 %v2379, %v2458
      %v2460 = vpop.f32.mrf.mxu0
      %v2461 = vadd.f32 %v2383, %v2460
      %2462 = vmatprep.mubr.f32.mxu0 0.0
      %2463 = vmatmul.mubr.f32.gmra.mxu0 %v1821
      %v2464 = vpop.f32.mrf.mxu0
      %v2465 = vadd.f32 %v2379, %v2464
      %v2466 = vpop.f32.mrf.mxu0
      %v2467 = vadd.f32 %v2383, %v2466
      %2468 = vmatprep.mubr.f32.mxu0 0.0
      %2469 = vmatmul.mubr.f32.gmra.mxu0 %v1925
      %v2470 = vpop.f32.mrf.mxu0
      %v2471 = vadd.f32 %v2379, %v2470
      %v2472 = vpop.f32.mrf.mxu0
      %v2473 = vadd.f32 %v2383, %v2472
      %2474 = vmatprep.mubr.f32.mxu0 0.0
      %2475 = vmatmul.mubr.f32.gmra.mxu0 %v2029
      %v2476 = vpop.f32.mrf.mxu0
      %v2477 = vadd.f32 %v2379, %v2476
      %v2478 = vpop.f32.mrf.mxu0
      %v2479 = vadd.f32 %v2383, %v2478
      %2480 = vmatprep.mubr.f32.mxu0 0.0
      %2481 = vmatmul.mubr.f32.gmra.mxu0 %v2133
      %v2482 = vpop.f32.mrf.mxu0
      %v2483 = vadd.f32 %v2379, %v2482
      %v2484 = vpop.f32.mrf.mxu0
      %v2485 = vadd.f32 %v2383, %v2484
      %2486 = vmatprep.mubr.f32.mxu0 0.0
      %2487 = vmatmul.mubr.f32.gmra.mxu0 %v2237
      %v2488 = vpop.f32.mrf.mxu0
      %v2489 = vadd.f32 %v2379, %v2488
      %v2490 = vpop.f32.mrf.mxu0
      %v2491 = vadd.f32 %v2383, %v2490
      %2492 = vmatprep.mubr.f32.mxu0 0.0
      %2493 = vmatmul.mubr.f32.gmra.mxu0 %v2341
      %v2494 = vpop.f32.mrf.mxu0
      %v2495 = vadd.f32 %v2379, %v2494
      %v2496 = vpop.f32.mrf.mxu0
      %v2497 = vadd.f32 %v2383, %v2496
      %2498 = vdwg.mxu0
      %v2499 = vand.u32 2147483647, %v2453
      %vm2500 = vcmp.le.f32.partialorder %v2499, 0.7853982
      %vm2501 = vcmp.lt.s32.totalorder %v2453, 0
      %v2502 = vand.u32 %v2453, 2139095040
      %v2503 = vshrl.u32 %v2502, 23
      %v2504 = vsub.s32 %v2503, 127
      %v2505 = vand.u32 2147483647, %v2453
      %v2506 = vand.u32 %v2505, 8388607
      %v2507 = vor.u32 %v2506, 8388608
      %v2508 = vsub.s32 0, %v2507
      %v2509 = vadd.s32 %v2504, 1
      %vm2510 = vcmp.gt.s32.totalorder %v2509, 0
      %v2511 = vsel %vm2510, %v2509, 0
      %v2512 = vshrl.u32 %v2511, 5
      %v2513 = vand.u32 %v2511, 31
      %v2514 = vsub.s32 32, %v2513
      %v2515 = vshrl.u32 683565275, %v2514
      %v2516 = vshll.u32 683565275, %v2513
      %v2517 = vshrl.u32 2475754826, %v2514
      %v2518 = vor.u32 %v2516, %v2517
      %v2519 = vshll.u32 2475754826, %v2513
      %v2520 = vshrl.u32 2131351028, %v2514
      %v2521 = vor.u32 %v2519, %v2520
      %v2522 = vshll.u32 2131351028, %v2513
      %v2523 = vshrl.u32 2102212464, %v2514
      %v2524 = vor.u32 %v2522, %v2523
      %v2525 = vshll.u32 2102212464, %v2513
      %v2526 = vshrl.u32 920167782, %v2514
      %v2527 = vor.u32 %v2525, %v2526
      %v2528 = vshll.u32 920167782, %v2513
      %v2529 = vshrl.u32 1326507024, %v2514
      %v2530 = vor.u32 %v2528, %v2529
      %vm2531 = vcmp.lt.s32.totalorder %v2512, 1
      %vm2532 = vcmp.lt.s32.totalorder %v2512, 2
      %vm2533 = vcmp.lt.s32.totalorder %v2512, 3
      %vm2534 = vcmp.lt.s32.totalorder %v2512, 4
      %v2535 = vsel %vm2531, %v2515, %v2518
      %v2536 = vsel %vm2534, %v2524, 2102212464
      %v2537 = vsel %vm2533, %v2521, %v2536
      %v2538 = vsel %vm2532, %v2535, %v2537
      %v2539 = vsel %vm2531, %v2518, %v2521
      %v2540 = vsel %vm2534, %v2527, 920167782
      %v2541 = vsel %vm2533, %v2524, %v2540
      %v2542 = vsel %vm2532, %v2539, %v2541
      %v2543 = vsel %vm2531, %v2521, %v2524
      %v2544 = vsel %vm2534, %v2530, 1326507024
      %v2545 = vsel %vm2533, %v2527, %v2544
      %v2546 = vsel %vm2532, %v2543, %v2545
      %v2547 = vshll.u32 %v2507, 8
      %v2548 = vmul.u32.u64.compose %v2547, %v2546
      %v2549 = vextract.low.u32 %v2548
      %v2550 = vextract.high.u32 %v2548
      %v2551 = vmul.u32.u64.compose %v2547, %v2542
      %v2552 = vextract.low.u32 %v2551
      %v2553 = vextract.high.u32 %v2551
      %v2554 = vmul.u32 %v2547, %v2538
      %v2555 = vadd.s32 %v2550, %v2552
      %vm2556 = vc.u32 %v2550, %v2552
      %v2557 = vadd.s32 %v2553, 1
      %v2558 = vsel %vm2556, %v2557, %v2553
      %v2559 = vadd.s32 %v2554, %v2558
      %v2560 = vadd.s32 %v2559, 536870912
      %v2561 = vshrl.u32 %v2560, 30
      %v2562 = vshll.u32 %v2561, 30
      %v2563 = vsub.s32 %v2559, %v2562
      %vm2564 = vcmp.lt.s32.totalorder %v2563, 0
      %v2565 = vsub.s32 0, %v2563
      %v2566 = vsel %vm2564, %v2565, %v2563
      %v2567 = vclz %v2566
      %v2568 = vsub.s32 %v2567, 2
      %vm2569 = vcmp.gt.s32.totalorder 0, %v2568
      %v2570 = vsel %vm2569, 0, %v2568
      %v2571 = vsub.s32 32, %v2570
      %v2572 = vshll.u32 %v2563, %v2570
      %v2573 = vshrl.u32 %v2555, %v2571
      %v2574 = vor.u32 %v2572, %v2573
      %v2575 = vsub.s32 4294967266, %v2570
      %v2576 = vadd.s32 %v2575, 127
      %v2577 = vshll.u32 %v2576, 23
      %v2578 = vor.u32 4788187, %v2577
      %v2579 = vand.u32 2147483647, %v2578
      %v2581 = vcvt.s32.f32 %v2574
      %v2582 = vmul.f32 %v2581, %v2579
      %v2583 = vxor.u32 %v2582, 2147483648
      %v2584 = vsel %vm2501, %v2583, %v2582
      %v2585 = vsub.s32 4, %v2561
      %v2586 = vsel %vm2501, %v2585, %v2561
      %v2587 = vsel %vm2500, %v2453, %v2584
      %v2588 = vsel %vm2500, 0, %v2586
      %v2589 = vcosq.f32.pop %v2587
      %v2590 = vsinq.f32.pop %v2587
      %vm2591 = vweird.f32 %v2453
      %v2592 = vadd.s32 %v2588, 3
      %v2593 = vand.u32 %v2592, 3
      %vm2594 = vcmp.lt.s32.totalorder %v2593, 2
      %vm2595 = vcmp.eq.s32.totalorder %v2593, 0
      %v2596 = vxor.u32 %v2590, 2147483648
      %v2597 = vsel %vm2595, %v2589, %v2596
      %vm2598 = vcmp.eq.s32.totalorder %v2593, 2
      %v2599 = vxor.u32 %v2589, 2147483648
      %v2600 = vsel %vm2598, %v2599, %v2590
      %v2601 = vsel %vm2594, %v2597, %v2600
      %v2602 = vsel %vm2591, nan, %v2601
      %v2603 = vand.u32 2147483647, %v2459
      %vm2604 = vcmp.le.f32.partialorder %v2603, 0.7853982
      %vm2605 = vcmp.lt.s32.totalorder %v2459, 0
      %v2606 = vand.u32 %v2459, 2139095040
      %v2607 = vshrl.u32 %v2606, 23
      %v2608 = vsub.s32 %v2607, 127
      %v2609 = vand.u32 2147483647, %v2459
      %v2610 = vand.u32 %v2609, 8388607
      %v2611 = vor.u32 %v2610, 8388608
      %v2612 = vsub.s32 0, %v2611
      %v2613 = vadd.s32 %v2608, 1
      %vm2614 = vcmp.gt.s32.totalorder %v2613, 0
      %v2615 = vsel %vm2614, %v2613, 0
      %v2616 = vshrl.u32 %v2615, 5
      %v2617 = vand.u32 %v2615, 31
      %v2618 = vsub.s32 32, %v2617
      %v2619 = vshrl.u32 683565275, %v2618
      %v2620 = vshll.u32 683565275, %v2617
      %v2621 = vshrl.u32 2475754826, %v2618
      %v2622 = vor.u32 %v2620, %v2621
      %v2623 = vshll.u32 2475754826, %v2617
      %v2624 = vshrl.u32 2131351028, %v2618
      %v2625 = vor.u32 %v2623, %v2624
      %v2626 = vshll.u32 2131351028, %v2617
      %v2627 = vshrl.u32 2102212464, %v2618
      %v2628 = vor.u32 %v2626, %v2627
      %v2629 = vshll.u32 2102212464, %v2617
      %v2630 = vshrl.u32 920167782, %v2618
      %v2631 = vor.u32 %v2629, %v2630
      %v2632 = vshll.u32 920167782, %v2617
      %v2633 = vshrl.u32 1326507024, %v2618
      %v2634 = vor.u32 %v2632, %v2633
      %vm2635 = vcmp.lt.s32.totalorder %v2616, 1
      %vm2636 = vcmp.lt.s32.totalorder %v2616, 2
      %vm2637 = vcmp.lt.s32.totalorder %v2616, 3
      %vm2638 = vcmp.lt.s32.totalorder %v2616, 4
      %v2639 = vsel %vm2635, %v2619, %v2622
      %v2640 = vsel %vm2638, %v2628, 2102212464
      %v2641 = vsel %vm2637, %v2625, %v2640
      %v2642 = vsel %vm2636, %v2639, %v2641
      %v2643 = vsel %vm2635, %v2622, %v2625
      %v2644 = vsel %vm2638, %v2631, 920167782
      %v2645 = vsel %vm2637, %v2628, %v2644
      %v2646 = vsel %vm2636, %v2643, %v2645
      %v2647 = vsel %vm2635, %v2625, %v2628
      %v2648 = vsel %vm2638, %v2634, 1326507024
      %v2649 = vsel %vm2637, %v2631, %v2648
      %v2650 = vsel %vm2636, %v2647, %v2649
      %v2651 = vshll.u32 %v2611, 8
      %v2652 = vmul.u32.u64.compose %v2651, %v2650
      %v2653 = vextract.low.u32 %v2652
      %v2654 = vextract.high.u32 %v2652
      %v2655 = vmul.u32.u64.compose %v2651, %v2646
      %v2656 = vextract.low.u32 %v2655
      %v2657 = vextract.high.u32 %v2655
      %v2658 = vmul.u32 %v2651, %v2642
      %v2659 = vadd.s32 %v2654, %v2656
      %vm2660 = vc.u32 %v2654, %v2656
      %v2661 = vadd.s32 %v2657, 1
      %v2662 = vsel %vm2660, %v2661, %v2657
      %v2663 = vadd.s32 %v2658, %v2662
      %v2664 = vadd.s32 %v2663, 536870912
      %v2665 = vshrl.u32 %v2664, 30
      %v2666 = vshll.u32 %v2665, 30
      %v2667 = vsub.s32 %v2663, %v2666
      %vm2668 = vcmp.lt.s32.totalorder %v2667, 0
      %v2669 = vsub.s32 0, %v2667
      %v2670 = vsel %vm2668, %v2669, %v2667
      %v2671 = vclz %v2670
      %v2672 = vsub.s32 %v2671, 2
      %vm2673 = vcmp.gt.s32.totalorder 0, %v2672
      %v2674 = vsel %vm2673, 0, %v2672
      %v2675 = vsub.s32 32, %v2674
      %v2676 = vshll.u32 %v2667, %v2674
      %v2677 = vshrl.u32 %v2659, %v2675
      %v2678 = vor.u32 %v2676, %v2677
      %v2679 = vsub.s32 4294967266, %v2674
      %v2680 = vadd.s32 %v2679, 127
      %v2681 = vshll.u32 %v2680, 23
      %v2682 = vor.u32 4788187, %v2681
      %v2683 = vand.u32 2147483647, %v2682
      %v2685 = vcvt.s32.f32 %v2678
      %v2686 = vmul.f32 %v2685, %v2683
      %v2687 = vxor.u32 %v2686, 2147483648
      %v2688 = vsel %vm2605, %v2687, %v2686
      %v2689 = vsub.s32 4, %v2665
      %v2690 = vsel %vm2605, %v2689, %v2665
      %v2691 = vsel %vm2604, %v2459, %v2688
      %v2692 = vsel %vm2604, 0, %v2690
      %v2693 = vcosq.f32.pop %v2691
      %v2694 = vsinq.f32.pop %v2691
      %vm2695 = vweird.f32 %v2459
      %v2696 = vadd.s32 %v2692, 3
      %v2697 = vand.u32 %v2696, 3
      %vm2698 = vcmp.lt.s32.totalorder %v2697, 2
      %vm2699 = vcmp.eq.s32.totalorder %v2697, 0
      %v2700 = vxor.u32 %v2694, 2147483648
      %v2701 = vsel %vm2699, %v2693, %v2700
      %vm2702 = vcmp.eq.s32.totalorder %v2697, 2
      %v2703 = vxor.u32 %v2693, 2147483648
      %v2704 = vsel %vm2702, %v2703, %v2694
      %v2705 = vsel %vm2698, %v2701, %v2704
      %v2706 = vsel %vm2695, nan, %v2705
      %v2707 = vand.u32 2147483647, %v2465
      %vm2708 = vcmp.le.f32.partialorder %v2707, 0.7853982
      %vm2709 = vcmp.lt.s32.totalorder %v2465, 0
      %v2710 = vand.u32 %v2465, 2139095040
      %v2711 = vshrl.u32 %v2710, 23
      %v2712 = vsub.s32 %v2711, 127
      %v2713 = vand.u32 2147483647, %v2465
      %v2714 = vand.u32 %v2713, 8388607
      %v2715 = vor.u32 %v2714, 8388608
      %v2716 = vsub.s32 0, %v2715
      %v2717 = vadd.s32 %v2712, 1
      %vm2718 = vcmp.gt.s32.totalorder %v2717, 0
      %v2719 = vsel %vm2718, %v2717, 0
      %v2720 = vshrl.u32 %v2719, 5
      %v2721 = vand.u32 %v2719, 31
      %v2722 = vsub.s32 32, %v2721
      %v2723 = vshrl.u32 683565275, %v2722
      %v2724 = vshll.u32 683565275, %v2721
      %v2725 = vshrl.u32 2475754826, %v2722
      %v2726 = vor.u32 %v2724, %v2725
      %v2727 = vshll.u32 2475754826, %v2721
      %v2728 = vshrl.u32 2131351028, %v2722
      %v2729 = vor.u32 %v2727, %v2728
      %v2730 = vshll.u32 2131351028, %v2721
      %v2731 = vshrl.u32 2102212464, %v2722
      %v2732 = vor.u32 %v2730, %v2731
      %v2733 = vshll.u32 2102212464, %v2721
      %v2734 = vshrl.u32 920167782, %v2722
      %v2735 = vor.u32 %v2733, %v2734
      %v2736 = vshll.u32 920167782, %v2721
      %v2737 = vshrl.u32 1326507024, %v2722
      %v2738 = vor.u32 %v2736, %v2737
      %vm2739 = vcmp.lt.s32.totalorder %v2720, 1
      %vm2740 = vcmp.lt.s32.totalorder %v2720, 2
      %vm2741 = vcmp.lt.s32.totalorder %v2720, 3
      %vm2742 = vcmp.lt.s32.totalorder %v2720, 4
      %v2743 = vsel %vm2739, %v2723, %v2726
      %v2744 = vsel %vm2742, %v2732, 2102212464
      %v2745 = vsel %vm2741, %v2729, %v2744
      %v2746 = vsel %vm2740, %v2743, %v2745
      %v2747 = vsel %vm2739, %v2726, %v2729
      %v2748 = vsel %vm2742, %v2735, 920167782
      %v2749 = vsel %vm2741, %v2732, %v2748
      %v2750 = vsel %vm2740, %v2747, %v2749
      %v2751 = vsel %vm2739, %v2729, %v2732
      %v2752 = vsel %vm2742, %v2738, 1326507024
      %v2753 = vsel %vm2741, %v2735, %v2752
      %v2754 = vsel %vm2740, %v2751, %v2753
      %v2755 = vshll.u32 %v2715, 8
      %v2756 = vmul.u32.u64.compose %v2755, %v2754
      %v2757 = vextract.low.u32 %v2756
      %v2758 = vextract.high.u32 %v2756
      %v2759 = vmul.u32.u64.compose %v2755, %v2750
      %v2760 = vextract.low.u32 %v2759
      %v2761 = vextract.high.u32 %v2759
      %v2762 = vmul.u32 %v2755, %v2746
      %v2763 = vadd.s32 %v2758, %v2760
      %vm2764 = vc.u32 %v2758, %v2760
      %v2765 = vadd.s32 %v2761, 1
      %v2766 = vsel %vm2764, %v2765, %v2761
      %v2767 = vadd.s32 %v2762, %v2766
      %v2768 = vadd.s32 %v2767, 536870912
      %v2769 = vshrl.u32 %v2768, 30
      %v2770 = vshll.u32 %v2769, 30
      %v2771 = vsub.s32 %v2767, %v2770
      %vm2772 = vcmp.lt.s32.totalorder %v2771, 0
      %v2773 = vsub.s32 0, %v2771
      %v2774 = vsel %vm2772, %v2773, %v2771
      %v2775 = vclz %v2774
      %v2776 = vsub.s32 %v2775, 2
      %vm2777 = vcmp.gt.s32.totalorder 0, %v2776
      %v2778 = vsel %vm2777, 0, %v2776
      %v2779 = vsub.s32 32, %v2778
      %v2780 = vshll.u32 %v2771, %v2778
      %v2781 = vshrl.u32 %v2763, %v2779
      %v2782 = vor.u32 %v2780, %v2781
      %v2783 = vsub.s32 4294967266, %v2778
      %v2784 = vadd.s32 %v2783, 127
      %v2785 = vshll.u32 %v2784, 23
      %v2786 = vor.u32 4788187, %v2785
      %v2787 = vand.u32 2147483647, %v2786
      %v2789 = vcvt.s32.f32 %v2782
      %v2790 = vmul.f32 %v2789, %v2787
      %v2791 = vxor.u32 %v2790, 2147483648
      %v2792 = vsel %vm2709, %v2791, %v2790
      %v2793 = vsub.s32 4, %v2769
      %v2794 = vsel %vm2709, %v2793, %v2769
      %v2795 = vsel %vm2708, %v2465, %v2792
      %v2796 = vsel %vm2708, 0, %v2794
      %v2797 = vcosq.f32.pop %v2795
      %v2798 = vsinq.f32.pop %v2795
      %vm2799 = vweird.f32 %v2465
      %v2800 = vadd.s32 %v2796, 3
      %v2801 = vand.u32 %v2800, 3
      %vm2802 = vcmp.lt.s32.totalorder %v2801, 2
      %vm2803 = vcmp.eq.s32.totalorder %v2801, 0
      %v2804 = vxor.u32 %v2798, 2147483648
      %v2805 = vsel %vm2803, %v2797, %v2804
      %vm2806 = vcmp.eq.s32.totalorder %v2801, 2
      %v2807 = vxor.u32 %v2797, 2147483648
      %v2808 = vsel %vm2806, %v2807, %v2798
      %v2809 = vsel %vm2802, %v2805, %v2808
      %v2810 = vsel %vm2799, nan, %v2809
      %v2811 = vand.u32 2147483647, %v2471
      %vm2812 = vcmp.le.f32.partialorder %v2811, 0.7853982
      %vm2813 = vcmp.lt.s32.totalorder %v2471, 0
      %v2814 = vand.u32 %v2471, 2139095040
      %v2815 = vshrl.u32 %v2814, 23
      %v2816 = vsub.s32 %v2815, 127
      %v2817 = vand.u32 2147483647, %v2471
      %v2818 = vand.u32 %v2817, 8388607
      %v2819 = vor.u32 %v2818, 8388608
      %v2820 = vsub.s32 0, %v2819
      %v2821 = vadd.s32 %v2816, 1
      %vm2822 = vcmp.gt.s32.totalorder %v2821, 0
      %v2823 = vsel %vm2822, %v2821, 0
      %v2824 = vshrl.u32 %v2823, 5
      %v2825 = vand.u32 %v2823, 31
      %v2826 = vsub.s32 32, %v2825
      %v2827 = vshrl.u32 683565275, %v2826
      %v2828 = vshll.u32 683565275, %v2825
      %v2829 = vshrl.u32 2475754826, %v2826
      %v2830 = vor.u32 %v2828, %v2829
      %v2831 = vshll.u32 2475754826, %v2825
      %v2832 = vshrl.u32 2131351028, %v2826
      %v2833 = vor.u32 %v2831, %v2832
      %v2834 = vshll.u32 2131351028, %v2825
      %v2835 = vshrl.u32 2102212464, %v2826
      %v2836 = vor.u32 %v2834, %v2835
      %v2837 = vshll.u32 2102212464, %v2825
      %v2838 = vshrl.u32 920167782, %v2826
      %v2839 = vor.u32 %v2837, %v2838
      %v2840 = vshll.u32 920167782, %v2825
      %v2841 = vshrl.u32 1326507024, %v2826
      %v2842 = vor.u32 %v2840, %v2841
      %vm2843 = vcmp.lt.s32.totalorder %v2824, 1
      %vm2844 = vcmp.lt.s32.totalorder %v2824, 2
      %vm2845 = vcmp.lt.s32.totalorder %v2824, 3
      %vm2846 = vcmp.lt.s32.totalorder %v2824, 4
      %v2847 = vsel %vm2843, %v2827, %v2830
      %v2848 = vsel %vm2846, %v2836, 2102212464
      %v2849 = vsel %vm2845, %v2833, %v2848
      %v2850 = vsel %vm2844, %v2847, %v2849
      %v2851 = vsel %vm2843, %v2830, %v2833
      %v2852 = vsel %vm2846, %v2839, 920167782
      %v2853 = vsel %vm2845, %v2836, %v2852
      %v2854 = vsel %vm2844, %v2851, %v2853
      %v2855 = vsel %vm2843, %v2833, %v2836
      %v2856 = vsel %vm2846, %v2842, 1326507024
      %v2857 = vsel %vm2845, %v2839, %v2856
      %v2858 = vsel %vm2844, %v2855, %v2857
      %v2859 = vshll.u32 %v2819, 8
      %v2860 = vmul.u32.u64.compose %v2859, %v2858
      %v2861 = vextract.low.u32 %v2860
      %v2862 = vextract.high.u32 %v2860
      %v2863 = vmul.u32.u64.compose %v2859, %v2854
      %v2864 = vextract.low.u32 %v2863
      %v2865 = vextract.high.u32 %v2863
      %v2866 = vmul.u32 %v2859, %v2850
      %v2867 = vadd.s32 %v2862, %v2864
      %vm2868 = vc.u32 %v2862, %v2864
      %v2869 = vadd.s32 %v2865, 1
      %v2870 = vsel %vm2868, %v2869, %v2865
      %v2871 = vadd.s32 %v2866, %v2870
      %v2872 = vadd.s32 %v2871, 536870912
      %v2873 = vshrl.u32 %v2872, 30
      %v2874 = vshll.u32 %v2873, 30
      %v2875 = vsub.s32 %v2871, %v2874
      %vm2876 = vcmp.lt.s32.totalorder %v2875, 0
      %v2877 = vsub.s32 0, %v2875
      %v2878 = vsel %vm2876, %v2877, %v2875
      %v2879 = vclz %v2878
      %v2880 = vsub.s32 %v2879, 2
      %vm2881 = vcmp.gt.s32.totalorder 0, %v2880
      %v2882 = vsel %vm2881, 0, %v2880
      %v2883 = vsub.s32 32, %v2882
      %v2884 = vshll.u32 %v2875, %v2882
      %v2885 = vshrl.u32 %v2867, %v2883
      %v2886 = vor.u32 %v2884, %v2885
      %v2887 = vsub.s32 4294967266, %v2882
      %v2888 = vadd.s32 %v2887, 127
      %v2889 = vshll.u32 %v2888, 23
      %v2890 = vor.u32 4788187, %v2889
      %v2891 = vand.u32 2147483647, %v2890
      %v2893 = vcvt.s32.f32 %v2886
      %v2894 = vmul.f32 %v2893, %v2891
      %v2895 = vxor.u32 %v2894, 2147483648
      %v2896 = vsel %vm2813, %v2895, %v2894
      %v2897 = vsub.s32 4, %v2873
      %v2898 = vsel %vm2813, %v2897, %v2873
      %v2899 = vsel %vm2812, %v2471, %v2896
      %v2900 = vsel %vm2812, 0, %v2898
      %v2901 = vcosq.f32.pop %v2899
      %v2902 = vsinq.f32.pop %v2899
      %vm2903 = vweird.f32 %v2471
      %v2904 = vadd.s32 %v2900, 3
      %v2905 = vand.u32 %v2904, 3
      %vm2906 = vcmp.lt.s32.totalorder %v2905, 2
      %vm2907 = vcmp.eq.s32.totalorder %v2905, 0
      %v2908 = vxor.u32 %v2902, 2147483648
      %v2909 = vsel %vm2907, %v2901, %v2908
      %vm2910 = vcmp.eq.s32.totalorder %v2905, 2
      %v2911 = vxor.u32 %v2901, 2147483648
      %v2912 = vsel %vm2910, %v2911, %v2902
      %v2913 = vsel %vm2906, %v2909, %v2912
      %v2914 = vsel %vm2903, nan, %v2913
      %v2915 = vand.u32 2147483647, %v2477
      %vm2916 = vcmp.le.f32.partialorder %v2915, 0.7853982
      %vm2917 = vcmp.lt.s32.totalorder %v2477, 0
      %v2918 = vand.u32 %v2477, 2139095040
      %v2919 = vshrl.u32 %v2918, 23
      %v2920 = vsub.s32 %v2919, 127
      %v2921 = vand.u32 2147483647, %v2477
      %v2922 = vand.u32 %v2921, 8388607
      %v2923 = vor.u32 %v2922, 8388608
      %v2924 = vsub.s32 0, %v2923
      %v2925 = vadd.s32 %v2920, 1
      %vm2926 = vcmp.gt.s32.totalorder %v2925, 0
      %v2927 = vsel %vm2926, %v2925, 0
      %v2928 = vshrl.u32 %v2927, 5
      %v2929 = vand.u32 %v2927, 31
      %v2930 = vsub.s32 32, %v2929
      %v2931 = vshrl.u32 683565275, %v2930
      %v2932 = vshll.u32 683565275, %v2929
      %v2933 = vshrl.u32 2475754826, %v2930
      %v2934 = vor.u32 %v2932, %v2933
      %v2935 = vshll.u32 2475754826, %v2929
      %v2936 = vshrl.u32 2131351028, %v2930
      %v2937 = vor.u32 %v2935, %v2936
      %v2938 = vshll.u32 2131351028, %v2929
      %v2939 = vshrl.u32 2102212464, %v2930
      %v2940 = vor.u32 %v2938, %v2939
      %v2941 = vshll.u32 2102212464, %v2929
      %v2942 = vshrl.u32 920167782, %v2930
      %v2943 = vor.u32 %v2941, %v2942
      %v2944 = vshll.u32 920167782, %v2929
      %v2945 = vshrl.u32 1326507024, %v2930
      %v2946 = vor.u32 %v2944, %v2945
      %vm2947 = vcmp.lt.s32.totalorder %v2928, 1
      %vm2948 = vcmp.lt.s32.totalorder %v2928, 2
      %vm2949 = vcmp.lt.s32.totalorder %v2928, 3
      %vm2950 = vcmp.lt.s32.totalorder %v2928, 4
      %v2951 = vsel %vm2947, %v2931, %v2934
      %v2952 = vsel %vm2950, %v2940, 2102212464
      %v2953 = vsel %vm2949, %v2937, %v2952
      %v2954 = vsel %vm2948, %v2951, %v2953
      %v2955 = vsel %vm2947, %v2934, %v2937
      %v2956 = vsel %vm2950, %v2943, 920167782
      %v2957 = vsel %vm2949, %v2940, %v2956
      %v2958 = vsel %vm2948, %v2955, %v2957
      %v2959 = vsel %vm2947, %v2937, %v2940
      %v2960 = vsel %vm2950, %v2946, 1326507024
      %v2961 = vsel %vm2949, %v2943, %v2960
      %v2962 = vsel %vm2948, %v2959, %v2961
      %v2963 = vshll.u32 %v2923, 8
      %v2964 = vmul.u32.u64.compose %v2963, %v2962
      %v2965 = vextract.low.u32 %v2964
      %v2966 = vextract.high.u32 %v2964
      %v2967 = vmul.u32.u64.compose %v2963, %v2958
      %v2968 = vextract.low.u32 %v2967
      %v2969 = vextract.high.u32 %v2967
      %v2970 = vmul.u32 %v2963, %v2954
      %v2971 = vadd.s32 %v2966, %v2968
      %vm2972 = vc.u32 %v2966, %v2968
      %v2973 = vadd.s32 %v2969, 1
      %v2974 = vsel %vm2972, %v2973, %v2969
      %v2975 = vadd.s32 %v2970, %v2974
      %v2976 = vadd.s32 %v2975, 536870912
      %v2977 = vshrl.u32 %v2976, 30
      %v2978 = vshll.u32 %v2977, 30
      %v2979 = vsub.s32 %v2975, %v2978
      %vm2980 = vcmp.lt.s32.totalorder %v2979, 0
      %v2981 = vsub.s32 0, %v2979
      %v2982 = vsel %vm2980, %v2981, %v2979
      %v2983 = vclz %v2982
      %v2984 = vsub.s32 %v2983, 2
      %vm2985 = vcmp.gt.s32.totalorder 0, %v2984
      %v2986 = vsel %vm2985, 0, %v2984
      %v2987 = vsub.s32 32, %v2986
      %v2988 = vshll.u32 %v2979, %v2986
      %v2989 = vshrl.u32 %v2971, %v2987
      %v2990 = vor.u32 %v2988, %v2989
      %v2991 = vsub.s32 4294967266, %v2986
      %v2992 = vadd.s32 %v2991, 127
      %v2993 = vshll.u32 %v2992, 23
      %v2994 = vor.u32 4788187, %v2993
      %v2995 = vand.u32 2147483647, %v2994
      %v2997 = vcvt.s32.f32 %v2990
      %v2998 = vmul.f32 %v2997, %v2995
      %v2999 = vxor.u32 %v2998, 2147483648
      %v3000 = vsel %vm2917, %v2999, %v2998
      %v3001 = vsub.s32 4, %v2977
      %v3002 = vsel %vm2917, %v3001, %v2977
      %v3003 = vsel %vm2916, %v2477, %v3000
      %v3004 = vsel %vm2916, 0, %v3002
      %v3005 = vcosq.f32.pop %v3003
      %v3006 = vsinq.f32.pop %v3003
      %vm3007 = vweird.f32 %v2477
      %v3008 = vadd.s32 %v3004, 3
      %v3009 = vand.u32 %v3008, 3
      %vm3010 = vcmp.lt.s32.totalorder %v3009, 2
      %vm3011 = vcmp.eq.s32.totalorder %v3009, 0
      %v3012 = vxor.u32 %v3006, 2147483648
      %v3013 = vsel %vm3011, %v3005, %v3012
      %vm3014 = vcmp.eq.s32.totalorder %v3009, 2
      %v3015 = vxor.u32 %v3005, 2147483648
      %v3016 = vsel %vm3014, %v3015, %v3006
      %v3017 = vsel %vm3010, %v3013, %v3016
      %v3018 = vsel %vm3007, nan, %v3017
      %v3019 = vand.u32 2147483647, %v2483
      %vm3020 = vcmp.le.f32.partialorder %v3019, 0.7853982
      %vm3021 = vcmp.lt.s32.totalorder %v2483, 0
      %v3022 = vand.u32 %v2483, 2139095040
      %v3023 = vshrl.u32 %v3022, 23
      %v3024 = vsub.s32 %v3023, 127
      %v3025 = vand.u32 2147483647, %v2483
      %v3026 = vand.u32 %v3025, 8388607
      %v3027 = vor.u32 %v3026, 8388608
      %v3028 = vsub.s32 0, %v3027
      %v3029 = vadd.s32 %v3024, 1
      %vm3030 = vcmp.gt.s32.totalorder %v3029, 0
      %v3031 = vsel %vm3030, %v3029, 0
      %v3032 = vshrl.u32 %v3031, 5
      %v3033 = vand.u32 %v3031, 31
      %v3034 = vsub.s32 32, %v3033
      %v3035 = vshrl.u32 683565275, %v3034
      %v3036 = vshll.u32 683565275, %v3033
      %v3037 = vshrl.u32 2475754826, %v3034
      %v3038 = vor.u32 %v3036, %v3037
      %v3039 = vshll.u32 2475754826, %v3033
      %v3040 = vshrl.u32 2131351028, %v3034
      %v3041 = vor.u32 %v3039, %v3040
      %v3042 = vshll.u32 2131351028, %v3033
      %v3043 = vshrl.u32 2102212464, %v3034
      %v3044 = vor.u32 %v3042, %v3043
      %v3045 = vshll.u32 2102212464, %v3033
      %v3046 = vshrl.u32 920167782, %v3034
      %v3047 = vor.u32 %v3045, %v3046
      %v3048 = vshll.u32 920167782, %v3033
      %v3049 = vshrl.u32 1326507024, %v3034
      %v3050 = vor.u32 %v3048, %v3049
      %vm3051 = vcmp.lt.s32.totalorder %v3032, 1
      %vm3052 = vcmp.lt.s32.totalorder %v3032, 2
      %vm3053 = vcmp.lt.s32.totalorder %v3032, 3
      %vm3054 = vcmp.lt.s32.totalorder %v3032, 4
      %v3055 = vsel %vm3051, %v3035, %v3038
      %v3056 = vsel %vm3054, %v3044, 2102212464
      %v3057 = vsel %vm3053, %v3041, %v3056
      %v3058 = vsel %vm3052, %v3055, %v3057
      %v3059 = vsel %vm3051, %v3038, %v3041
      %v3060 = vsel %vm3054, %v3047, 920167782
      %v3061 = vsel %vm3053, %v3044, %v3060
      %v3062 = vsel %vm3052, %v3059, %v3061
      %v3063 = vsel %vm3051, %v3041, %v3044
      %v3064 = vsel %vm3054, %v3050, 1326507024
      %v3065 = vsel %vm3053, %v3047, %v3064
      %v3066 = vsel %vm3052, %v3063, %v3065
      %v3067 = vshll.u32 %v3027, 8
      %v3068 = vmul.u32.u64.compose %v3067, %v3066
      %v3069 = vextract.low.u32 %v3068
      %v3070 = vextract.high.u32 %v3068
      %v3071 = vmul.u32.u64.compose %v3067, %v3062
      %v3072 = vextract.low.u32 %v3071
      %v3073 = vextract.high.u32 %v3071
      %v3074 = vmul.u32 %v3067, %v3058
      %v3075 = vadd.s32 %v3070, %v3072
      %vm3076 = vc.u32 %v3070, %v3072
      %v3077 = vadd.s32 %v3073, 1
      %v3078 = vsel %vm3076, %v3077, %v3073
      %v3079 = vadd.s32 %v3074, %v3078
      %v3080 = vadd.s32 %v3079, 536870912
      %v3081 = vshrl.u32 %v3080, 30
      %v3082 = vshll.u32 %v3081, 30
      %v3083 = vsub.s32 %v3079, %v3082
      %vm3084 = vcmp.lt.s32.totalorder %v3083, 0
      %v3085 = vsub.s32 0, %v3083
      %v3086 = vsel %vm3084, %v3085, %v3083
      %v3087 = vclz %v3086
      %v3088 = vsub.s32 %v3087, 2
      %vm3089 = vcmp.gt.s32.totalorder 0, %v3088
      %v3090 = vsel %vm3089, 0, %v3088
      %v3091 = vsub.s32 32, %v3090
      %v3092 = vshll.u32 %v3083, %v3090
      %v3093 = vshrl.u32 %v3075, %v3091
      %v3094 = vor.u32 %v3092, %v3093
      %v3095 = vsub.s32 4294967266, %v3090
      %v3096 = vadd.s32 %v3095, 127
      %v3097 = vshll.u32 %v3096, 23
      %v3098 = vor.u32 4788187, %v3097
      %v3099 = vand.u32 2147483647, %v3098
      %v3101 = vcvt.s32.f32 %v3094
      %v3102 = vmul.f32 %v3101, %v3099
      %v3103 = vxor.u32 %v3102, 2147483648
      %v3104 = vsel %vm3021, %v3103, %v3102
      %v3105 = vsub.s32 4, %v3081
      %v3106 = vsel %vm3021, %v3105, %v3081
      %v3107 = vsel %vm3020, %v2483, %v3104
      %v3108 = vsel %vm3020, 0, %v3106
      %v3109 = vcosq.f32.pop %v3107
      %v3110 = vsinq.f32.pop %v3107
      %vm3111 = vweird.f32 %v2483
      %v3112 = vadd.s32 %v3108, 3
      %v3113 = vand.u32 %v3112, 3
      %vm3114 = vcmp.lt.s32.totalorder %v3113, 2
      %vm3115 = vcmp.eq.s32.totalorder %v3113, 0
      %v3116 = vxor.u32 %v3110, 2147483648
      %v3117 = vsel %vm3115, %v3109, %v3116
      %vm3118 = vcmp.eq.s32.totalorder %v3113, 2
      %v3119 = vxor.u32 %v3109, 2147483648
      %v3120 = vsel %vm3118, %v3119, %v3110
      %v3121 = vsel %vm3114, %v3117, %v3120
      %v3122 = vsel %vm3111, nan, %v3121
      %v3123 = vand.u32 2147483647, %v2489
      %vm3124 = vcmp.le.f32.partialorder %v3123, 0.7853982
      %vm3125 = vcmp.lt.s32.totalorder %v2489, 0
      %v3126 = vand.u32 %v2489, 2139095040
      %v3127 = vshrl.u32 %v3126, 23
      %v3128 = vsub.s32 %v3127, 127
      %v3129 = vand.u32 2147483647, %v2489
      %v3130 = vand.u32 %v3129, 8388607
      %v3131 = vor.u32 %v3130, 8388608
      %v3132 = vsub.s32 0, %v3131
      %v3133 = vadd.s32 %v3128, 1
      %vm3134 = vcmp.gt.s32.totalorder %v3133, 0
      %v3135 = vsel %vm3134, %v3133, 0
      %v3136 = vshrl.u32 %v3135, 5
      %v3137 = vand.u32 %v3135, 31
      %v3138 = vsub.s32 32, %v3137
      %v3139 = vshrl.u32 683565275, %v3138
      %v3140 = vshll.u32 683565275, %v3137
      %v3141 = vshrl.u32 2475754826, %v3138
      %v3142 = vor.u32 %v3140, %v3141
      %v3143 = vshll.u32 2475754826, %v3137
      %v3144 = vshrl.u32 2131351028, %v3138
      %v3145 = vor.u32 %v3143, %v3144
      %v3146 = vshll.u32 2131351028, %v3137
      %v3147 = vshrl.u32 2102212464, %v3138
      %v3148 = vor.u32 %v3146, %v3147
      %v3149 = vshll.u32 2102212464, %v3137
      %v3150 = vshrl.u32 920167782, %v3138
      %v3151 = vor.u32 %v3149, %v3150
      %v3152 = vshll.u32 920167782, %v3137
      %v3153 = vshrl.u32 1326507024, %v3138
      %v3154 = vor.u32 %v3152, %v3153
      %vm3155 = vcmp.lt.s32.totalorder %v3136, 1
      %vm3156 = vcmp.lt.s32.totalorder %v3136, 2
      %vm3157 = vcmp.lt.s32.totalorder %v3136, 3
      %vm3158 = vcmp.lt.s32.totalorder %v3136, 4
      %v3159 = vsel %vm3155, %v3139, %v3142
      %v3160 = vsel %vm3158, %v3148, 2102212464
      %v3161 = vsel %vm3157, %v3145, %v3160
      %v3162 = vsel %vm3156, %v3159, %v3161
      %v3163 = vsel %vm3155, %v3142, %v3145
      %v3164 = vsel %vm3158, %v3151, 920167782
      %v3165 = vsel %vm3157, %v3148, %v3164
      %v3166 = vsel %vm3156, %v3163, %v3165
      %v3167 = vsel %vm3155, %v3145, %v3148
      %v3168 = vsel %vm3158, %v3154, 1326507024
      %v3169 = vsel %vm3157, %v3151, %v3168
      %v3170 = vsel %vm3156, %v3167, %v3169
      %v3171 = vshll.u32 %v3131, 8
      %v3172 = vmul.u32.u64.compose %v3171, %v3170
      %v3173 = vextract.low.u32 %v3172
      %v3174 = vextract.high.u32 %v3172
      %v3175 = vmul.u32.u64.compose %v3171, %v3166
      %v3176 = vextract.low.u32 %v3175
      %v3177 = vextract.high.u32 %v3175
      %v3178 = vmul.u32 %v3171, %v3162
      %v3179 = vadd.s32 %v3174, %v3176
      %vm3180 = vc.u32 %v3174, %v3176
      %v3181 = vadd.s32 %v3177, 1
      %v3182 = vsel %vm3180, %v3181, %v3177
      %v3183 = vadd.s32 %v3178, %v3182
      %v3184 = vadd.s32 %v3183, 536870912
      %v3185 = vshrl.u32 %v3184, 30
      %v3186 = vshll.u32 %v3185, 30
      %v3187 = vsub.s32 %v3183, %v3186
      %vm3188 = vcmp.lt.s32.totalorder %v3187, 0
      %v3189 = vsub.s32 0, %v3187
      %v3190 = vsel %vm3188, %v3189, %v3187
      %v3191 = vclz %v3190
      %v3192 = vsub.s32 %v3191, 2
      %vm3193 = vcmp.gt.s32.totalorder 0, %v3192
      %v3194 = vsel %vm3193, 0, %v3192
      %v3195 = vsub.s32 32, %v3194
      %v3196 = vshll.u32 %v3187, %v3194
      %v3197 = vshrl.u32 %v3179, %v3195
      %v3198 = vor.u32 %v3196, %v3197
      %v3199 = vsub.s32 4294967266, %v3194
      %v3200 = vadd.s32 %v3199, 127
      %v3201 = vshll.u32 %v3200, 23
      %v3202 = vor.u32 4788187, %v3201
      %v3203 = vand.u32 2147483647, %v3202
      %v3205 = vcvt.s32.f32 %v3198
      %v3206 = vmul.f32 %v3205, %v3203
      %v3207 = vxor.u32 %v3206, 2147483648
      %v3208 = vsel %vm3125, %v3207, %v3206
      %v3209 = vsub.s32 4, %v3185
      %v3210 = vsel %vm3125, %v3209, %v3185
      %v3211 = vsel %vm3124, %v2489, %v3208
      %v3212 = vsel %vm3124, 0, %v3210
      %v3213 = vcosq.f32.pop %v3211
      %v3214 = vsinq.f32.pop %v3211
      %vm3215 = vweird.f32 %v2489
      %v3216 = vadd.s32 %v3212, 3
      %v3217 = vand.u32 %v3216, 3
      %vm3218 = vcmp.lt.s32.totalorder %v3217, 2
      %vm3219 = vcmp.eq.s32.totalorder %v3217, 0
      %v3220 = vxor.u32 %v3214, 2147483648
      %v3221 = vsel %vm3219, %v3213, %v3220
      %vm3222 = vcmp.eq.s32.totalorder %v3217, 2
      %v3223 = vxor.u32 %v3213, 2147483648
      %v3224 = vsel %vm3222, %v3223, %v3214
      %v3225 = vsel %vm3218, %v3221, %v3224
      %v3226 = vsel %vm3215, nan, %v3225
      %v3227 = vand.u32 2147483647, %v2495
      %vm3228 = vcmp.le.f32.partialorder %v3227, 0.7853982
      %vm3229 = vcmp.lt.s32.totalorder %v2495, 0
      %v3230 = vand.u32 %v2495, 2139095040
      %v3231 = vshrl.u32 %v3230, 23
      %v3232 = vsub.s32 %v3231, 127
      %v3233 = vand.u32 2147483647, %v2495
      %v3234 = vand.u32 %v3233, 8388607
      %v3235 = vor.u32 %v3234, 8388608
      %v3236 = vsub.s32 0, %v3235
      %v3237 = vadd.s32 %v3232, 1
      %vm3238 = vcmp.gt.s32.totalorder %v3237, 0
      %v3239 = vsel %vm3238, %v3237, 0
      %v3240 = vshrl.u32 %v3239, 5
      %v3241 = vand.u32 %v3239, 31
      %v3242 = vsub.s32 32, %v3241
      %v3243 = vshrl.u32 683565275, %v3242
      %v3244 = vshll.u32 683565275, %v3241
      %v3245 = vshrl.u32 2475754826, %v3242
      %v3246 = vor.u32 %v3244, %v3245
      %v3247 = vshll.u32 2475754826, %v3241
      %v3248 = vshrl.u32 2131351028, %v3242
      %v3249 = vor.u32 %v3247, %v3248
      %v3250 = vshll.u32 2131351028, %v3241
      %v3251 = vshrl.u32 2102212464, %v3242
      %v3252 = vor.u32 %v3250, %v3251
      %v3253 = vshll.u32 2102212464, %v3241
      %v3254 = vshrl.u32 920167782, %v3242
      %v3255 = vor.u32 %v3253, %v3254
      %v3256 = vshll.u32 920167782, %v3241
      %v3257 = vshrl.u32 1326507024, %v3242
      %v3258 = vor.u32 %v3256, %v3257
      %vm3259 = vcmp.lt.s32.totalorder %v3240, 1
      %vm3260 = vcmp.lt.s32.totalorder %v3240, 2
      %vm3261 = vcmp.lt.s32.totalorder %v3240, 3
      %vm3262 = vcmp.lt.s32.totalorder %v3240, 4
      %v3263 = vsel %vm3259, %v3243, %v3246
      %v3264 = vsel %vm3262, %v3252, 2102212464
      %v3265 = vsel %vm3261, %v3249, %v3264
      %v3266 = vsel %vm3260, %v3263, %v3265
      %v3267 = vsel %vm3259, %v3246, %v3249
      %v3268 = vsel %vm3262, %v3255, 920167782
      %v3269 = vsel %vm3261, %v3252, %v3268
      %v3270 = vsel %vm3260, %v3267, %v3269
      %v3271 = vsel %vm3259, %v3249, %v3252
      %v3272 = vsel %vm3262, %v3258, 1326507024
      %v3273 = vsel %vm3261, %v3255, %v3272
      %v3274 = vsel %vm3260, %v3271, %v3273
      %v3275 = vshll.u32 %v3235, 8
      %v3276 = vmul.u32.u64.compose %v3275, %v3274
      %v3277 = vextract.low.u32 %v3276
      %v3278 = vextract.high.u32 %v3276
      %v3279 = vmul.u32.u64.compose %v3275, %v3270
      %v3280 = vextract.low.u32 %v3279
      %v3281 = vextract.high.u32 %v3279
      %v3282 = vmul.u32 %v3275, %v3266
      %v3283 = vadd.s32 %v3278, %v3280
      %vm3284 = vc.u32 %v3278, %v3280
      %v3285 = vadd.s32 %v3281, 1
      %v3286 = vsel %vm3284, %v3285, %v3281
      %v3287 = vadd.s32 %v3282, %v3286
      %v3288 = vadd.s32 %v3287, 536870912
      %v3289 = vshrl.u32 %v3288, 30
      %v3290 = vshll.u32 %v3289, 30
      %v3291 = vsub.s32 %v3287, %v3290
      %vm3292 = vcmp.lt.s32.totalorder %v3291, 0
      %v3293 = vsub.s32 0, %v3291
      %v3294 = vsel %vm3292, %v3293, %v3291
      %v3295 = vclz %v3294
      %v3296 = vsub.s32 %v3295, 2
      %vm3297 = vcmp.gt.s32.totalorder 0, %v3296
      %v3298 = vsel %vm3297, 0, %v3296
      %v3299 = vsub.s32 32, %v3298
      %v3300 = vshll.u32 %v3291, %v3298
      %v3301 = vshrl.u32 %v3283, %v3299
      %v3302 = vor.u32 %v3300, %v3301
      %v3303 = vsub.s32 4294967266, %v3298
      %v3304 = vadd.s32 %v3303, 127
      %v3305 = vshll.u32 %v3304, 23
      %v3306 = vor.u32 4788187, %v3305
      %v3307 = vand.u32 2147483647, %v3306
      %v3309 = vcvt.s32.f32 %v3302
      %v3310 = vmul.f32 %v3309, %v3307
      %v3311 = vxor.u32 %v3310, 2147483648
      %v3312 = vsel %vm3229, %v3311, %v3310
      %v3313 = vsub.s32 4, %v3289
      %v3314 = vsel %vm3229, %v3313, %v3289
      %v3315 = vsel %vm3228, %v2495, %v3312
      %v3316 = vsel %vm3228, 0, %v3314
      %v3317 = vcosq.f32.pop %v3315
      %v3318 = vsinq.f32.pop %v3315
      %vm3319 = vweird.f32 %v2495
      %v3320 = vadd.s32 %v3316, 3
      %v3321 = vand.u32 %v3320, 3
      %vm3322 = vcmp.lt.s32.totalorder %v3321, 2
      %vm3323 = vcmp.eq.s32.totalorder %v3321, 0
      %v3324 = vxor.u32 %v3318, 2147483648
      %v3325 = vsel %vm3323, %v3317, %v3324
      %vm3326 = vcmp.eq.s32.totalorder %v3321, 2
      %v3327 = vxor.u32 %v3317, 2147483648
      %v3328 = vsel %vm3326, %v3327, %v3318
      %v3329 = vsel %vm3322, %v3325, %v3328
      %v3330 = vsel %vm3319, nan, %v3329
      %v3331 = vld [vmem:[%s7] sm:$0xff]
      %v3332 = vld [vmem:[%s7 + $0x8] sm:$0xff]
      %v3333 = vld [vmem:[%s7 + $0x10] sm:$0xff]
      %v3334 = vld [vmem:[%s7 + $0x18] sm:$0xff]
      %v3335 = vld [vmem:[%s7 + $0x20] sm:$0xff]
      %v3336 = vld [vmem:[%s7 + $0x28] sm:$0xff]
      %v3337 = vld [vmem:[%s7 + $0x30] sm:$0xff]
      %v3338 = vld [vmem:[%s7 + $0x38] sm:$0xff]
      %v3339 = vld [vmem:[%s7 + $0x40] sm:$0xff]
      %v3340 = vld [vmem:[%s7 + $0x48] sm:$0xff]
      %v3341 = vld [vmem:[%s7 + $0x50] sm:$0xff]
      %v3342 = vld [vmem:[%s7 + $0x58] sm:$0xff]
      %v3343 = vld [vmem:[%s7 + $0x60] sm:$0xff]
      %v3344 = vld [vmem:[%s7 + $0x68] sm:$0xff]
      %v3345 = vld [vmem:[%s7 + $0x70] sm:$0xff]
      %v3346 = vld [vmem:[%s7 + $0x78] sm:$0xff]
      %v3347 = vld [vmem:[%s7 + $0x80] sm:$0xff]
      %v3348 = vld [vmem:[%s7 + $0x88] sm:$0xff]
      %v3349 = vld [vmem:[%s7 + $0x90] sm:$0xff]
      %v3350 = vld [vmem:[%s7 + $0x98] sm:$0xff]
      %v3351 = vld [vmem:[%s7 + $0xa0] sm:$0xff]
      %v3352 = vld [vmem:[%s7 + $0xa8] sm:$0xff]
      %v3353 = vld [vmem:[%s7 + $0xb0] sm:$0xff]
      %v3354 = vld [vmem:[%s7 + $0xb8] sm:$0xff]
      %v3355 = vld [vmem:[%s7 + $0xc0] sm:$0xff]
      %v3356 = vld [vmem:[%s7 + $0xc8] sm:$0xff]
      %v3357 = vld [vmem:[%s7 + $0xd0] sm:$0xff]
      %v3358 = vld [vmem:[%s7 + $0xd8] sm:$0xff]
      %v3359 = vld [vmem:[%s7 + $0xe0] sm:$0xff]
      %v3360 = vld [vmem:[%s7 + $0xe8] sm:$0xff]
      %v3361 = vld [vmem:[%s7 + $0xf0] sm:$0xff]
      %v3362 = vld [vmem:[%s7 + $0xf8] sm:$0xff]
      %v3363 = vld [vmem:[%s8] sm:$0x3]
      %v3365 = vlaneseq
      %v3366 = vshrl.u32 %v3365, 7
      %v3367 = vsub.s32 0, %v3366
      %v3368 = vrot.slane %v3363, %v3367
      %v3369 = vlaneseq
      %v3370 = vshrl.u32 %v3369, 7
      %v3371 = vsub.s32 1, %v3370
      %v3372 = vrot.slane %v3363, %v3371
      %3375 = vmatprep.subr.mxu0 %v3362
      %3376 = vmatpush1.msra.mxu0 %v3361
      %3377 = vmatprep.subr.mxu0 %v3360
      %3378 = vmatpush1.msra.mxu0 %v3359
      %3379 = vmatprep.subr.mxu0 %v3358
      %3380 = vmatpush1.msra.mxu0 %v3357
      %3381 = vmatprep.subr.mxu0 %v3356
      %3382 = vmatpush1.msra.mxu0 %v3355
      %3383 = vmatprep.subr.mxu0 %v3354
      %3384 = vmatpush1.msra.mxu0 %v3353
      %3385 = vmatprep.subr.mxu0 %v3352
      %3386 = vmatpush1.msra.mxu0 %v3351
      %3387 = vmatprep.subr.mxu0 %v3350
      %3388 = vmatpush1.msra.mxu0 %v3349
      %3389 = vmatprep.subr.mxu0 %v3348
      %3390 = vmatpush1.msra.mxu0 %v3347
      %3391 = vmatprep.subr.mxu0 %v3346
      %3392 = vmatpush1.msra.mxu0 %v3345
      %3393 = vmatprep.subr.mxu0 %v3344
      %3394 = vmatpush1.msra.mxu0 %v3343
      %3395 = vmatprep.subr.mxu0 %v3342
      %3396 = vmatpush1.msra.mxu0 %v3341
      %3397 = vmatprep.subr.mxu0 %v3340
      %3398 = vmatpush1.msra.mxu0 %v3339
      %3399 = vmatprep.subr.mxu0 %v3338
      %3400 = vmatpush1.msra.mxu0 %v3337
      %3401 = vmatprep.subr.mxu0 %v3336
      %3402 = vmatpush1.msra.mxu0 %v3335
      %3403 = vmatprep.subr.mxu0 %v3334
      %3404 = vmatpush1.msra.mxu0 %v3333
      %3405 = vmatprep.subr.mxu0 %v3332
      %3406 = vmatpush1.msra.mxu0 %v3331
      %3407 = vmatprep.subr.mxu0 0.0
      %3408 = vmatpush2.msra.mxu0 0.0
      %3409 = vmatprep.subr.mxu0 0.0
      %3410 = vmatpush2.msra.mxu0 0.0
      %3411 = vmatprep.subr.mxu0 0.0
      %3412 = vmatpush2.msra.mxu0 0.0
      %3413 = vmatprep.subr.mxu0 0.0
      %3414 = vmatpush2.msra.mxu0 0.0
      %3415 = vmatprep.subr.mxu0 0.0
      %3416 = vmatpush2.msra.mxu0 0.0
      %3417 = vmatprep.subr.mxu0 0.0
      %3418 = vmatpush2.msra.mxu0 0.0
      %3419 = vmatprep.subr.mxu0 0.0
      %3420 = vmatpush2.msra.mxu0 0.0
      %3421 = vmatprep.subr.mxu0 0.0
      %3422 = vmatpush2.msra.mxu0 0.0
      %3423 = vmatprep.subr.mxu0 0.0
      %3424 = vmatpush2.msra.mxu0 0.0
      %3425 = vmatprep.subr.mxu0 0.0
      %3426 = vmatpush2.msra.mxu0 0.0
      %3427 = vmatprep.subr.mxu0 0.0
      %3428 = vmatpush2.msra.mxu0 0.0
      %3429 = vmatprep.subr.mxu0 0.0
      %3430 = vmatpush2.msra.mxu0 0.0
      %3431 = vmatprep.subr.mxu0 0.0
      %3432 = vmatpush2.msra.mxu0 0.0
      %3433 = vmatprep.subr.mxu0 0.0
      %3434 = vmatpush2.msra.mxu0 0.0
      %3435 = vmatprep.subr.mxu0 0.0
      %3436 = vmatpush2.msra.mxu0 0.0
      %3437 = vmatprep.subr.mxu0 0.0
      %3438 = vmatpush2.msra.mxu0 0.0
      %3439 = vmatprep.mubr.f32.mxu0 0.0
      %3440 = vmatmul.mubr.f32.gmra.mxu0 %v2602
      %v3441 = vpop.f32.mrf.mxu0
      %v3442 = vadd.f32 %v3368, %v3441
      %v3443 = vpop.f32.mrf.mxu0
      %v3444 = vadd.f32 %v3372, %v3443
      %3445 = vmatprep.mubr.f32.mxu0 0.0
      %3446 = vmatmul.mubr.f32.gmra.mxu0 %v2706
      %v3447 = vpop.f32.mrf.mxu0
      %v3448 = vadd.f32 %v3368, %v3447
      %v3449 = vpop.f32.mrf.mxu0
      %v3450 = vadd.f32 %v3372, %v3449
      %3451 = vmatprep.mubr.f32.mxu0 0.0
      %3452 = vmatmul.mubr.f32.gmra.mxu0 %v2810
      %v3453 = vpop.f32.mrf.mxu0
      %v3454 = vadd.f32 %v3368, %v3453
      %v3455 = vpop.f32.mrf.mxu0
      %v3456 = vadd.f32 %v3372, %v3455
      %3457 = vmatprep.mubr.f32.mxu0 0.0
      %3458 = vmatmul.mubr.f32.gmra.mxu0 %v2914
      %v3459 = vpop.f32.mrf.mxu0
      %v3460 = vadd.f32 %v3368, %v3459
      %v3461 = vpop.f32.mrf.mxu0
      %v3462 = vadd.f32 %v3372, %v3461
      %3463 = vmatprep.mubr.f32.mxu0 0.0
      %3464 = vmatmul.mubr.f32.gmra.mxu0 %v3018
      %v3465 = vpop.f32.mrf.mxu0
      %v3466 = vadd.f32 %v3368, %v3465
      %v3467 = vpop.f32.mrf.mxu0
      %v3468 = vadd.f32 %v3372, %v3467
      %3469 = vmatprep.mubr.f32.mxu0 0.0
      %3470 = vmatmul.mubr.f32.gmra.mxu0 %v3122
      %v3471 = vpop.f32.mrf.mxu0
      %v3472 = vadd.f32 %v3368, %v3471
      %v3473 = vpop.f32.mrf.mxu0
      %v3474 = vadd.f32 %v3372, %v3473
      %3475 = vmatprep.mubr.f32.mxu0 0.0
      %3476 = vmatmul.mubr.f32.gmra.mxu0 %v3226
      %v3477 = vpop.f32.mrf.mxu0
      %v3478 = vadd.f32 %v3368, %v3477
      %v3479 = vpop.f32.mrf.mxu0
      %v3480 = vadd.f32 %v3372, %v3479
      %3481 = vmatprep.mubr.f32.mxu0 0.0
      %3482 = vmatmul.mubr.f32.gmra.mxu0 %v3330
      %v3483 = vpop.f32.mrf.mxu0
      %v3484 = vadd.f32 %v3368, %v3483
      %v3485 = vpop.f32.mrf.mxu0
      %v3486 = vadd.f32 %v3372, %v3485
      %3487 = vdwg.mxu0
      %v3488 = vand.u32 2147483647, %v3442
      %vm3489 = vcmp.le.f32.partialorder %v3488, 0.7853982
      %vm3490 = vcmp.lt.s32.totalorder %v3442, 0
      %v3491 = vand.u32 %v3442, 2139095040
      %v3492 = vshrl.u32 %v3491, 23
      %v3493 = vsub.s32 %v3492, 127
      %v3494 = vand.u32 2147483647, %v3442
      %v3495 = vand.u32 %v3494, 8388607
      %v3496 = vor.u32 %v3495, 8388608
      %v3497 = vsub.s32 0, %v3496
      %v3498 = vadd.s32 %v3493, 1
      %vm3499 = vcmp.gt.s32.totalorder %v3498, 0
      %v3500 = vsel %vm3499, %v3498, 0
      %v3501 = vshrl.u32 %v3500, 5
      %v3502 = vand.u32 %v3500, 31
      %v3503 = vsub.s32 32, %v3502
      %v3504 = vshrl.u32 683565275, %v3503
      %v3505 = vshll.u32 683565275, %v3502
      %v3506 = vshrl.u32 2475754826, %v3503
      %v3507 = vor.u32 %v3505, %v3506
      %v3508 = vshll.u32 2475754826, %v3502
      %v3509 = vshrl.u32 2131351028, %v3503
      %v3510 = vor.u32 %v3508, %v3509
      %v3511 = vshll.u32 2131351028, %v3502
      %v3512 = vshrl.u32 2102212464, %v3503
      %v3513 = vor.u32 %v3511, %v3512
      %v3514 = vshll.u32 2102212464, %v3502
      %v3515 = vshrl.u32 920167782, %v3503
      %v3516 = vor.u32 %v3514, %v3515
      %v3517 = vshll.u32 920167782, %v3502
      %v3518 = vshrl.u32 1326507024, %v3503
      %v3519 = vor.u32 %v3517, %v3518
      %vm3520 = vcmp.lt.s32.totalorder %v3501, 1
      %vm3521 = vcmp.lt.s32.totalorder %v3501, 2
      %vm3522 = vcmp.lt.s32.totalorder %v3501, 3
      %vm3523 = vcmp.lt.s32.totalorder %v3501, 4
      %v3524 = vsel %vm3520, %v3504, %v3507
      %v3525 = vsel %vm3523, %v3513, 2102212464
      %v3526 = vsel %vm3522, %v3510, %v3525
      %v3527 = vsel %vm3521, %v3524, %v3526
      %v3528 = vsel %vm3520, %v3507, %v3510
      %v3529 = vsel %vm3523, %v3516, 920167782
      %v3530 = vsel %vm3522, %v3513, %v3529
      %v3531 = vsel %vm3521, %v3528, %v3530
      %v3532 = vsel %vm3520, %v3510, %v3513
      %v3533 = vsel %vm3523, %v3519, 1326507024
      %v3534 = vsel %vm3522, %v3516, %v3533
      %v3535 = vsel %vm3521, %v3532, %v3534
      %v3536 = vshll.u32 %v3496, 8
      %v3537 = vmul.u32.u64.compose %v3536, %v3535
      %v3538 = vextract.low.u32 %v3537
      %v3539 = vextract.high.u32 %v3537
      %v3540 = vmul.u32.u64.compose %v3536, %v3531
      %v3541 = vextract.low.u32 %v3540
      %v3542 = vextract.high.u32 %v3540
      %v3543 = vmul.u32 %v3536, %v3527
      %v3544 = vadd.s32 %v3539, %v3541
      %vm3545 = vc.u32 %v3539, %v3541
      %v3546 = vadd.s32 %v3542, 1
      %v3547 = vsel %vm3545, %v3546, %v3542
      %v3548 = vadd.s32 %v3543, %v3547
      %v3549 = vadd.s32 %v3548, 536870912
      %v3550 = vshrl.u32 %v3549, 30
      %v3551 = vshll.u32 %v3550, 30
      %v3552 = vsub.s32 %v3548, %v3551
      %vm3553 = vcmp.lt.s32.totalorder %v3552, 0
      %v3554 = vsub.s32 0, %v3552
      %v3555 = vsel %vm3553, %v3554, %v3552
      %v3556 = vclz %v3555
      %v3557 = vsub.s32 %v3556, 2
      %vm3558 = vcmp.gt.s32.totalorder 0, %v3557
      %v3559 = vsel %vm3558, 0, %v3557
      %v3560 = vsub.s32 32, %v3559
      %v3561 = vshll.u32 %v3552, %v3559
      %v3562 = vshrl.u32 %v3544, %v3560
      %v3563 = vor.u32 %v3561, %v3562
      %v3564 = vsub.s32 4294967266, %v3559
      %v3565 = vadd.s32 %v3564, 127
      %v3566 = vshll.u32 %v3565, 23
      %v3567 = vor.u32 4788187, %v3566
      %v3568 = vand.u32 2147483647, %v3567
      %v3570 = vcvt.s32.f32 %v3563
      %v3571 = vmul.f32 %v3570, %v3568
      %v3572 = vxor.u32 %v3571, 2147483648
      %v3573 = vsel %vm3490, %v3572, %v3571
      %v3574 = vsub.s32 4, %v3550
      %v3575 = vsel %vm3490, %v3574, %v3550
      %v3576 = vsel %vm3489, %v3442, %v3573
      %v3577 = vsel %vm3489, 0, %v3575
      %v3578 = vcosq.f32.pop %v3576
      %v3579 = vsinq.f32.pop %v3576
      %vm3580 = vweird.f32 %v3442
      %v3581 = vadd.s32 %v3577, 3
      %v3582 = vand.u32 %v3581, 3
      %vm3583 = vcmp.lt.s32.totalorder %v3582, 2
      %vm3584 = vcmp.eq.s32.totalorder %v3582, 0
      %v3585 = vxor.u32 %v3579, 2147483648
      %v3586 = vsel %vm3584, %v3578, %v3585
      %vm3587 = vcmp.eq.s32.totalorder %v3582, 2
      %v3588 = vxor.u32 %v3578, 2147483648
      %v3589 = vsel %vm3587, %v3588, %v3579
      %v3590 = vsel %vm3583, %v3586, %v3589
      %v3591 = vsel %vm3580, nan, %v3590
      %v3592 = vand.u32 2147483647, %v3448
      %vm3593 = vcmp.le.f32.partialorder %v3592, 0.7853982
      %vm3594 = vcmp.lt.s32.totalorder %v3448, 0
      %v3595 = vand.u32 %v3448, 2139095040
      %v3596 = vshrl.u32 %v3595, 23
      %v3597 = vsub.s32 %v3596, 127
      %v3598 = vand.u32 2147483647, %v3448
      %v3599 = vand.u32 %v3598, 8388607
      %v3600 = vor.u32 %v3599, 8388608
      %v3601 = vsub.s32 0, %v3600
      %v3602 = vadd.s32 %v3597, 1
      %vm3603 = vcmp.gt.s32.totalorder %v3602, 0
      %v3604 = vsel %vm3603, %v3602, 0
      %v3605 = vshrl.u32 %v3604, 5
      %v3606 = vand.u32 %v3604, 31
      %v3607 = vsub.s32 32, %v3606
      %v3608 = vshrl.u32 683565275, %v3607
      %v3609 = vshll.u32 683565275, %v3606
      %v3610 = vshrl.u32 2475754826, %v3607
      %v3611 = vor.u32 %v3609, %v3610
      %v3612 = vshll.u32 2475754826, %v3606
      %v3613 = vshrl.u32 2131351028, %v3607
      %v3614 = vor.u32 %v3612, %v3613
      %v3615 = vshll.u32 2131351028, %v3606
      %v3616 = vshrl.u32 2102212464, %v3607
      %v3617 = vor.u32 %v3615, %v3616
      %v3618 = vshll.u32 2102212464, %v3606
      %v3619 = vshrl.u32 920167782, %v3607
      %v3620 = vor.u32 %v3618, %v3619
      %v3621 = vshll.u32 920167782, %v3606
      %v3622 = vshrl.u32 1326507024, %v3607
      %v3623 = vor.u32 %v3621, %v3622
      %vm3624 = vcmp.lt.s32.totalorder %v3605, 1
      %vm3625 = vcmp.lt.s32.totalorder %v3605, 2
      %vm3626 = vcmp.lt.s32.totalorder %v3605, 3
      %vm3627 = vcmp.lt.s32.totalorder %v3605, 4
      %v3628 = vsel %vm3624, %v3608, %v3611
      %v3629 = vsel %vm3627, %v3617, 2102212464
      %v3630 = vsel %vm3626, %v3614, %v3629
      %v3631 = vsel %vm3625, %v3628, %v3630
      %v3632 = vsel %vm3624, %v3611, %v3614
      %v3633 = vsel %vm3627, %v3620, 920167782
      %v3634 = vsel %vm3626, %v3617, %v3633
      %v3635 = vsel %vm3625, %v3632, %v3634
      %v3636 = vsel %vm3624, %v3614, %v3617
      %v3637 = vsel %vm3627, %v3623, 1326507024
      %v3638 = vsel %vm3626, %v3620, %v3637
      %v3639 = vsel %vm3625, %v3636, %v3638
      %v3640 = vshll.u32 %v3600, 8
      %v3641 = vmul.u32.u64.compose %v3640, %v3639
      %v3642 = vextract.low.u32 %v3641
      %v3643 = vextract.high.u32 %v3641
      %v3644 = vmul.u32.u64.compose %v3640, %v3635
      %v3645 = vextract.low.u32 %v3644
      %v3646 = vextract.high.u32 %v3644
      %v3647 = vmul.u32 %v3640, %v3631
      %v3648 = vadd.s32 %v3643, %v3645
      %vm3649 = vc.u32 %v3643, %v3645
      %v3650 = vadd.s32 %v3646, 1
      %v3651 = vsel %vm3649, %v3650, %v3646
      %v3652 = vadd.s32 %v3647, %v3651
      %v3653 = vadd.s32 %v3652, 536870912
      %v3654 = vshrl.u32 %v3653, 30
      %v3655 = vshll.u32 %v3654, 30
      %v3656 = vsub.s32 %v3652, %v3655
      %vm3657 = vcmp.lt.s32.totalorder %v3656, 0
      %v3658 = vsub.s32 0, %v3656
      %v3659 = vsel %vm3657, %v3658, %v3656
      %v3660 = vclz %v3659
      %v3661 = vsub.s32 %v3660, 2
      %vm3662 = vcmp.gt.s32.totalorder 0, %v3661
      %v3663 = vsel %vm3662, 0, %v3661
      %v3664 = vsub.s32 32, %v3663
      %v3665 = vshll.u32 %v3656, %v3663
      %v3666 = vshrl.u32 %v3648, %v3664
      %v3667 = vor.u32 %v3665, %v3666
      %v3668 = vsub.s32 4294967266, %v3663
      %v3669 = vadd.s32 %v3668, 127
      %v3670 = vshll.u32 %v3669, 23
      %v3671 = vor.u32 4788187, %v3670
      %v3672 = vand.u32 2147483647, %v3671
      %v3674 = vcvt.s32.f32 %v3667
      %v3675 = vmul.f32 %v3674, %v3672
      %v3676 = vxor.u32 %v3675, 2147483648
      %v3677 = vsel %vm3594, %v3676, %v3675
      %v3678 = vsub.s32 4, %v3654
      %v3679 = vsel %vm3594, %v3678, %v3654
      %v3680 = vsel %vm3593, %v3448, %v3677
      %v3681 = vsel %vm3593, 0, %v3679
      %v3682 = vcosq.f32.pop %v3680
      %v3683 = vsinq.f32.pop %v3680
      %vm3684 = vweird.f32 %v3448
      %v3685 = vadd.s32 %v3681, 3
      %v3686 = vand.u32 %v3685, 3
      %vm3687 = vcmp.lt.s32.totalorder %v3686, 2
      %vm3688 = vcmp.eq.s32.totalorder %v3686, 0
      %v3689 = vxor.u32 %v3683, 2147483648
      %v3690 = vsel %vm3688, %v3682, %v3689
      %vm3691 = vcmp.eq.s32.totalorder %v3686, 2
      %v3692 = vxor.u32 %v3682, 2147483648
      %v3693 = vsel %vm3691, %v3692, %v3683
      %v3694 = vsel %vm3687, %v3690, %v3693
      %v3695 = vsel %vm3684, nan, %v3694
      %v3696 = vand.u32 2147483647, %v3454
      %vm3697 = vcmp.le.f32.partialorder %v3696, 0.7853982
      %vm3698 = vcmp.lt.s32.totalorder %v3454, 0
      %v3699 = vand.u32 %v3454, 2139095040
      %v3700 = vshrl.u32 %v3699, 23
      %v3701 = vsub.s32 %v3700, 127
      %v3702 = vand.u32 2147483647, %v3454
      %v3703 = vand.u32 %v3702, 8388607
      %v3704 = vor.u32 %v3703, 8388608
      %v3705 = vsub.s32 0, %v3704
      %v3706 = vadd.s32 %v3701, 1
      %vm3707 = vcmp.gt.s32.totalorder %v3706, 0
      %v3708 = vsel %vm3707, %v3706, 0
      %v3709 = vshrl.u32 %v3708, 5
      %v3710 = vand.u32 %v3708, 31
      %v3711 = vsub.s32 32, %v3710
      %v3712 = vshrl.u32 683565275, %v3711
      %v3713 = vshll.u32 683565275, %v3710
      %v3714 = vshrl.u32 2475754826, %v3711
      %v3715 = vor.u32 %v3713, %v3714
      %v3716 = vshll.u32 2475754826, %v3710
      %v3717 = vshrl.u32 2131351028, %v3711
      %v3718 = vor.u32 %v3716, %v3717
      %v3719 = vshll.u32 2131351028, %v3710
      %v3720 = vshrl.u32 2102212464, %v3711
      %v3721 = vor.u32 %v3719, %v3720
      %v3722 = vshll.u32 2102212464, %v3710
      %v3723 = vshrl.u32 920167782, %v3711
      %v3724 = vor.u32 %v3722, %v3723
      %v3725 = vshll.u32 920167782, %v3710
      %v3726 = vshrl.u32 1326507024, %v3711
      %v3727 = vor.u32 %v3725, %v3726
      %vm3728 = vcmp.lt.s32.totalorder %v3709, 1
      %vm3729 = vcmp.lt.s32.totalorder %v3709, 2
      %vm3730 = vcmp.lt.s32.totalorder %v3709, 3
      %vm3731 = vcmp.lt.s32.totalorder %v3709, 4
      %v3732 = vsel %vm3728, %v3712, %v3715
      %v3733 = vsel %vm3731, %v3721, 2102212464
      %v3734 = vsel %vm3730, %v3718, %v3733
      %v3735 = vsel %vm3729, %v3732, %v3734
      %v3736 = vsel %vm3728, %v3715, %v3718
      %v3737 = vsel %vm3731, %v3724, 920167782
      %v3738 = vsel %vm3730, %v3721, %v3737
      %v3739 = vsel %vm3729, %v3736, %v3738
      %v3740 = vsel %vm3728, %v3718, %v3721
      %v3741 = vsel %vm3731, %v3727, 1326507024
      %v3742 = vsel %vm3730, %v3724, %v3741
      %v3743 = vsel %vm3729, %v3740, %v3742
      %v3744 = vshll.u32 %v3704, 8
      %v3745 = vmul.u32.u64.compose %v3744, %v3743
      %v3746 = vextract.low.u32 %v3745
      %v3747 = vextract.high.u32 %v3745
      %v3748 = vmul.u32.u64.compose %v3744, %v3739
      %v3749 = vextract.low.u32 %v3748
      %v3750 = vextract.high.u32 %v3748
      %v3751 = vmul.u32 %v3744, %v3735
      %v3752 = vadd.s32 %v3747, %v3749
      %vm3753 = vc.u32 %v3747, %v3749
      %v3754 = vadd.s32 %v3750, 1
      %v3755 = vsel %vm3753, %v3754, %v3750
      %v3756 = vadd.s32 %v3751, %v3755
      %v3757 = vadd.s32 %v3756, 536870912
      %v3758 = vshrl.u32 %v3757, 30
      %v3759 = vshll.u32 %v3758, 30
      %v3760 = vsub.s32 %v3756, %v3759
      %vm3761 = vcmp.lt.s32.totalorder %v3760, 0
      %v3762 = vsub.s32 0, %v3760
      %v3763 = vsel %vm3761, %v3762, %v3760
      %v3764 = vclz %v3763
      %v3765 = vsub.s32 %v3764, 2
      %vm3766 = vcmp.gt.s32.totalorder 0, %v3765
      %v3767 = vsel %vm3766, 0, %v3765
      %v3768 = vsub.s32 32, %v3767
      %v3769 = vshll.u32 %v3760, %v3767
      %v3770 = vshrl.u32 %v3752, %v3768
      %v3771 = vor.u32 %v3769, %v3770
      %v3772 = vsub.s32 4294967266, %v3767
      %v3773 = vadd.s32 %v3772, 127
      %v3774 = vshll.u32 %v3773, 23
      %v3775 = vor.u32 4788187, %v3774
      %v3776 = vand.u32 2147483647, %v3775
      %v3778 = vcvt.s32.f32 %v3771
      %v3779 = vmul.f32 %v3778, %v3776
      %v3780 = vxor.u32 %v3779, 2147483648
      %v3781 = vsel %vm3698, %v3780, %v3779
      %v3782 = vsub.s32 4, %v3758
      %v3783 = vsel %vm3698, %v3782, %v3758
      %v3784 = vsel %vm3697, %v3454, %v3781
      %v3785 = vsel %vm3697, 0, %v3783
      %v3786 = vcosq.f32.pop %v3784
      %v3787 = vsinq.f32.pop %v3784
      %vm3788 = vweird.f32 %v3454
      %v3789 = vadd.s32 %v3785, 3
      %v3790 = vand.u32 %v3789, 3
      %vm3791 = vcmp.lt.s32.totalorder %v3790, 2
      %vm3792 = vcmp.eq.s32.totalorder %v3790, 0
      %v3793 = vxor.u32 %v3787, 2147483648
      %v3794 = vsel %vm3792, %v3786, %v3793
      %vm3795 = vcmp.eq.s32.totalorder %v3790, 2
      %v3796 = vxor.u32 %v3786, 2147483648
      %v3797 = vsel %vm3795, %v3796, %v3787
      %v3798 = vsel %vm3791, %v3794, %v3797
      %v3799 = vsel %vm3788, nan, %v3798
      %v3800 = vand.u32 2147483647, %v3460
      %vm3801 = vcmp.le.f32.partialorder %v3800, 0.7853982
      %vm3802 = vcmp.lt.s32.totalorder %v3460, 0
      %v3803 = vand.u32 %v3460, 2139095040
      %v3804 = vshrl.u32 %v3803, 23
      %v3805 = vsub.s32 %v3804, 127
      %v3806 = vand.u32 2147483647, %v3460
      %v3807 = vand.u32 %v3806, 8388607
      %v3808 = vor.u32 %v3807, 8388608
      %v3809 = vsub.s32 0, %v3808
      %v3810 = vadd.s32 %v3805, 1
      %vm3811 = vcmp.gt.s32.totalorder %v3810, 0
      %v3812 = vsel %vm3811, %v3810, 0
      %v3813 = vshrl.u32 %v3812, 5
      %v3814 = vand.u32 %v3812, 31
      %v3815 = vsub.s32 32, %v3814
      %v3816 = vshrl.u32 683565275, %v3815
      %v3817 = vshll.u32 683565275, %v3814
      %v3818 = vshrl.u32 2475754826, %v3815
      %v3819 = vor.u32 %v3817, %v3818
      %v3820 = vshll.u32 2475754826, %v3814
      %v3821 = vshrl.u32 2131351028, %v3815
      %v3822 = vor.u32 %v3820, %v3821
      %v3823 = vshll.u32 2131351028, %v3814
      %v3824 = vshrl.u32 2102212464, %v3815
      %v3825 = vor.u32 %v3823, %v3824
      %v3826 = vshll.u32 2102212464, %v3814
      %v3827 = vshrl.u32 920167782, %v3815
      %v3828 = vor.u32 %v3826, %v3827
      %v3829 = vshll.u32 920167782, %v3814
      %v3830 = vshrl.u32 1326507024, %v3815
      %v3831 = vor.u32 %v3829, %v3830
      %vm3832 = vcmp.lt.s32.totalorder %v3813, 1
      %vm3833 = vcmp.lt.s32.totalorder %v3813, 2
      %vm3834 = vcmp.lt.s32.totalorder %v3813, 3
      %vm3835 = vcmp.lt.s32.totalorder %v3813, 4
      %v3836 = vsel %vm3832, %v3816, %v3819
      %v3837 = vsel %vm3835, %v3825, 2102212464
      %v3838 = vsel %vm3834, %v3822, %v3837
      %v3839 = vsel %vm3833, %v3836, %v3838
      %v3840 = vsel %vm3832, %v3819, %v3822
      %v3841 = vsel %vm3835, %v3828, 920167782
      %v3842 = vsel %vm3834, %v3825, %v3841
      %v3843 = vsel %vm3833, %v3840, %v3842
      %v3844 = vsel %vm3832, %v3822, %v3825
      %v3845 = vsel %vm3835, %v3831, 1326507024
      %v3846 = vsel %vm3834, %v3828, %v3845
      %v3847 = vsel %vm3833, %v3844, %v3846
      %v3848 = vshll.u32 %v3808, 8
      %v3849 = vmul.u32.u64.compose %v3848, %v3847
      %v3850 = vextract.low.u32 %v3849
      %v3851 = vextract.high.u32 %v3849
      %v3852 = vmul.u32.u64.compose %v3848, %v3843
      %v3853 = vextract.low.u32 %v3852
      %v3854 = vextract.high.u32 %v3852
      %v3855 = vmul.u32 %v3848, %v3839
      %v3856 = vadd.s32 %v3851, %v3853
      %vm3857 = vc.u32 %v3851, %v3853
      %v3858 = vadd.s32 %v3854, 1
      %v3859 = vsel %vm3857, %v3858, %v3854
      %v3860 = vadd.s32 %v3855, %v3859
      %v3861 = vadd.s32 %v3860, 536870912
      %v3862 = vshrl.u32 %v3861, 30
      %v3863 = vshll.u32 %v3862, 30
      %v3864 = vsub.s32 %v3860, %v3863
      %vm3865 = vcmp.lt.s32.totalorder %v3864, 0
      %v3866 = vsub.s32 0, %v3864
      %v3867 = vsel %vm3865, %v3866, %v3864
      %v3868 = vclz %v3867
      %v3869 = vsub.s32 %v3868, 2
      %vm3870 = vcmp.gt.s32.totalorder 0, %v3869
      %v3871 = vsel %vm3870, 0, %v3869
      %v3872 = vsub.s32 32, %v3871
      %v3873 = vshll.u32 %v3864, %v3871
      %v3874 = vshrl.u32 %v3856, %v3872
      %v3875 = vor.u32 %v3873, %v3874
      %v3876 = vsub.s32 4294967266, %v3871
      %v3877 = vadd.s32 %v3876, 127
      %v3878 = vshll.u32 %v3877, 23
      %v3879 = vor.u32 4788187, %v3878
      %v3880 = vand.u32 2147483647, %v3879
      %v3882 = vcvt.s32.f32 %v3875
      %v3883 = vmul.f32 %v3882, %v3880
      %v3884 = vxor.u32 %v3883, 2147483648
      %v3885 = vsel %vm3802, %v3884, %v3883
      %v3886 = vsub.s32 4, %v3862
      %v3887 = vsel %vm3802, %v3886, %v3862
      %v3888 = vsel %vm3801, %v3460, %v3885
      %v3889 = vsel %vm3801, 0, %v3887
      %v3890 = vcosq.f32.pop %v3888
      %v3891 = vsinq.f32.pop %v3888
      %vm3892 = vweird.f32 %v3460
      %v3893 = vadd.s32 %v3889, 3
      %v3894 = vand.u32 %v3893, 3
      %vm3895 = vcmp.lt.s32.totalorder %v3894, 2
      %vm3896 = vcmp.eq.s32.totalorder %v3894, 0
      %v3897 = vxor.u32 %v3891, 2147483648
      %v3898 = vsel %vm3896, %v3890, %v3897
      %vm3899 = vcmp.eq.s32.totalorder %v3894, 2
      %v3900 = vxor.u32 %v3890, 2147483648
      %v3901 = vsel %vm3899, %v3900, %v3891
      %v3902 = vsel %vm3895, %v3898, %v3901
      %v3903 = vsel %vm3892, nan, %v3902
      %v3904 = vand.u32 2147483647, %v3466
      %vm3905 = vcmp.le.f32.partialorder %v3904, 0.7853982
      %vm3906 = vcmp.lt.s32.totalorder %v3466, 0
      %v3907 = vand.u32 %v3466, 2139095040
      %v3908 = vshrl.u32 %v3907, 23
      %v3909 = vsub.s32 %v3908, 127
      %v3910 = vand.u32 2147483647, %v3466
      %v3911 = vand.u32 %v3910, 8388607
      %v3912 = vor.u32 %v3911, 8388608
      %v3913 = vsub.s32 0, %v3912
      %v3914 = vadd.s32 %v3909, 1
      %vm3915 = vcmp.gt.s32.totalorder %v3914, 0
      %v3916 = vsel %vm3915, %v3914, 0
      %v3917 = vshrl.u32 %v3916, 5
      %v3918 = vand.u32 %v3916, 31
      %v3919 = vsub.s32 32, %v3918
      %v3920 = vshrl.u32 683565275, %v3919
      %v3921 = vshll.u32 683565275, %v3918
      %v3922 = vshrl.u32 2475754826, %v3919
      %v3923 = vor.u32 %v3921, %v3922
      %v3924 = vshll.u32 2475754826, %v3918
      %v3925 = vshrl.u32 2131351028, %v3919
      %v3926 = vor.u32 %v3924, %v3925
      %v3927 = vshll.u32 2131351028, %v3918
      %v3928 = vshrl.u32 2102212464, %v3919
      %v3929 = vor.u32 %v3927, %v3928
      %v3930 = vshll.u32 2102212464, %v3918
      %v3931 = vshrl.u32 920167782, %v3919
      %v3932 = vor.u32 %v3930, %v3931
      %v3933 = vshll.u32 920167782, %v3918
      %v3934 = vshrl.u32 1326507024, %v3919
      %v3935 = vor.u32 %v3933, %v3934
      %vm3936 = vcmp.lt.s32.totalorder %v3917, 1
      %vm3937 = vcmp.lt.s32.totalorder %v3917, 2
      %vm3938 = vcmp.lt.s32.totalorder %v3917, 3
      %vm3939 = vcmp.lt.s32.totalorder %v3917, 4
      %v3940 = vsel %vm3936, %v3920, %v3923
      %v3941 = vsel %vm3939, %v3929, 2102212464
      %v3942 = vsel %vm3938, %v3926, %v3941
      %v3943 = vsel %vm3937, %v3940, %v3942
      %v3944 = vsel %vm3936, %v3923, %v3926
      %v3945 = vsel %vm3939, %v3932, 920167782
      %v3946 = vsel %vm3938, %v3929, %v3945
      %v3947 = vsel %vm3937, %v3944, %v3946
      %v3948 = vsel %vm3936, %v3926, %v3929
      %v3949 = vsel %vm3939, %v3935, 1326507024
      %v3950 = vsel %vm3938, %v3932, %v3949
      %v3951 = vsel %vm3937, %v3948, %v3950
      %v3952 = vshll.u32 %v3912, 8
      %v3953 = vmul.u32.u64.compose %v3952, %v3951
      %v3954 = vextract.low.u32 %v3953
      %v3955 = vextract.high.u32 %v3953
      %v3956 = vmul.u32.u64.compose %v3952, %v3947
      %v3957 = vextract.low.u32 %v3956
      %v3958 = vextract.high.u32 %v3956
      %v3959 = vmul.u32 %v3952, %v3943
      %v3960 = vadd.s32 %v3955, %v3957
      %vm3961 = vc.u32 %v3955, %v3957
      %v3962 = vadd.s32 %v3958, 1
      %v3963 = vsel %vm3961, %v3962, %v3958
      %v3964 = vadd.s32 %v3959, %v3963
      %v3965 = vadd.s32 %v3964, 536870912
      %v3966 = vshrl.u32 %v3965, 30
      %v3967 = vshll.u32 %v3966, 30
      %v3968 = vsub.s32 %v3964, %v3967
      %vm3969 = vcmp.lt.s32.totalorder %v3968, 0
      %v3970 = vsub.s32 0, %v3968
      %v3971 = vsel %vm3969, %v3970, %v3968
      %v3972 = vclz %v3971
      %v3973 = vsub.s32 %v3972, 2
      %vm3974 = vcmp.gt.s32.totalorder 0, %v3973
      %v3975 = vsel %vm3974, 0, %v3973
      %v3976 = vsub.s32 32, %v3975
      %v3977 = vshll.u32 %v3968, %v3975
      %v3978 = vshrl.u32 %v3960, %v3976
      %v3979 = vor.u32 %v3977, %v3978
      %v3980 = vsub.s32 4294967266, %v3975
      %v3981 = vadd.s32 %v3980, 127
      %v3982 = vshll.u32 %v3981, 23
      %v3983 = vor.u32 4788187, %v3982
      %v3984 = vand.u32 2147483647, %v3983
      %v3986 = vcvt.s32.f32 %v3979
      %v3987 = vmul.f32 %v3986, %v3984
      %v3988 = vxor.u32 %v3987, 2147483648
      %v3989 = vsel %vm3906, %v3988, %v3987
      %v3990 = vsub.s32 4, %v3966
      %v3991 = vsel %vm3906, %v3990, %v3966
      %v3992 = vsel %vm3905, %v3466, %v3989
      %v3993 = vsel %vm3905, 0, %v3991
      %v3994 = vcosq.f32.pop %v3992
      %v3995 = vsinq.f32.pop %v3992
      %vm3996 = vweird.f32 %v3466
      %v3997 = vadd.s32 %v3993, 3
      %v3998 = vand.u32 %v3997, 3
      %vm3999 = vcmp.lt.s32.totalorder %v3998, 2
      %vm4000 = vcmp.eq.s32.totalorder %v3998, 0
      %v4001 = vxor.u32 %v3995, 2147483648
      %v4002 = vsel %vm4000, %v3994, %v4001
      %vm4003 = vcmp.eq.s32.totalorder %v3998, 2
      %v4004 = vxor.u32 %v3994, 2147483648
      %v4005 = vsel %vm4003, %v4004, %v3995
      %v4006 = vsel %vm3999, %v4002, %v4005
      %v4007 = vsel %vm3996, nan, %v4006
      %v4008 = vand.u32 2147483647, %v3472
      %vm4009 = vcmp.le.f32.partialorder %v4008, 0.7853982
      %vm4010 = vcmp.lt.s32.totalorder %v3472, 0
      %v4011 = vand.u32 %v3472, 2139095040
      %v4012 = vshrl.u32 %v4011, 23
      %v4013 = vsub.s32 %v4012, 127
      %v4014 = vand.u32 2147483647, %v3472
      %v4015 = vand.u32 %v4014, 8388607
      %v4016 = vor.u32 %v4015, 8388608
      %v4017 = vsub.s32 0, %v4016
      %v4018 = vadd.s32 %v4013, 1
      %vm4019 = vcmp.gt.s32.totalorder %v4018, 0
      %v4020 = vsel %vm4019, %v4018, 0
      %v4021 = vshrl.u32 %v4020, 5
      %v4022 = vand.u32 %v4020, 31
      %v4023 = vsub.s32 32, %v4022
      %v4024 = vshrl.u32 683565275, %v4023
      %v4025 = vshll.u32 683565275, %v4022
      %v4026 = vshrl.u32 2475754826, %v4023
      %v4027 = vor.u32 %v4025, %v4026
      %v4028 = vshll.u32 2475754826, %v4022
      %v4029 = vshrl.u32 2131351028, %v4023
      %v4030 = vor.u32 %v4028, %v4029
      %v4031 = vshll.u32 2131351028, %v4022
      %v4032 = vshrl.u32 2102212464, %v4023
      %v4033 = vor.u32 %v4031, %v4032
      %v4034 = vshll.u32 2102212464, %v4022
      %v4035 = vshrl.u32 920167782, %v4023
      %v4036 = vor.u32 %v4034, %v4035
      %v4037 = vshll.u32 920167782, %v4022
      %v4038 = vshrl.u32 1326507024, %v4023
      %v4039 = vor.u32 %v4037, %v4038
      %vm4040 = vcmp.lt.s32.totalorder %v4021, 1
      %vm4041 = vcmp.lt.s32.totalorder %v4021, 2
      %vm4042 = vcmp.lt.s32.totalorder %v4021, 3
      %vm4043 = vcmp.lt.s32.totalorder %v4021, 4
      %v4044 = vsel %vm4040, %v4024, %v4027
      %v4045 = vsel %vm4043, %v4033, 2102212464
      %v4046 = vsel %vm4042, %v4030, %v4045
      %v4047 = vsel %vm4041, %v4044, %v4046
      %v4048 = vsel %vm4040, %v4027, %v4030
      %v4049 = vsel %vm4043, %v4036, 920167782
      %v4050 = vsel %vm4042, %v4033, %v4049
      %v4051 = vsel %vm4041, %v4048, %v4050
      %v4052 = vsel %vm4040, %v4030, %v4033
      %v4053 = vsel %vm4043, %v4039, 1326507024
      %v4054 = vsel %vm4042, %v4036, %v4053
      %v4055 = vsel %vm4041, %v4052, %v4054
      %v4056 = vshll.u32 %v4016, 8
      %v4057 = vmul.u32.u64.compose %v4056, %v4055
      %v4058 = vextract.low.u32 %v4057
      %v4059 = vextract.high.u32 %v4057
      %v4060 = vmul.u32.u64.compose %v4056, %v4051
      %v4061 = vextract.low.u32 %v4060
      %v4062 = vextract.high.u32 %v4060
      %v4063 = vmul.u32 %v4056, %v4047
      %v4064 = vadd.s32 %v4059, %v4061
      %vm4065 = vc.u32 %v4059, %v4061
      %v4066 = vadd.s32 %v4062, 1
      %v4067 = vsel %vm4065, %v4066, %v4062
      %v4068 = vadd.s32 %v4063, %v4067
      %v4069 = vadd.s32 %v4068, 536870912
      %v4070 = vshrl.u32 %v4069, 30
      %v4071 = vshll.u32 %v4070, 30
      %v4072 = vsub.s32 %v4068, %v4071
      %vm4073 = vcmp.lt.s32.totalorder %v4072, 0
      %v4074 = vsub.s32 0, %v4072
      %v4075 = vsel %vm4073, %v4074, %v4072
      %v4076 = vclz %v4075
      %v4077 = vsub.s32 %v4076, 2
      %vm4078 = vcmp.gt.s32.totalorder 0, %v4077
      %v4079 = vsel %vm4078, 0, %v4077
      %v4080 = vsub.s32 32, %v4079
      %v4081 = vshll.u32 %v4072, %v4079
      %v4082 = vshrl.u32 %v4064, %v4080
      %v4083 = vor.u32 %v4081, %v4082
      %v4084 = vsub.s32 4294967266, %v4079
      %v4085 = vadd.s32 %v4084, 127
      %v4086 = vshll.u32 %v4085, 23
      %v4087 = vor.u32 4788187, %v4086
      %v4088 = vand.u32 2147483647, %v4087
      %v4090 = vcvt.s32.f32 %v4083
      %v4091 = vmul.f32 %v4090, %v4088
      %v4092 = vxor.u32 %v4091, 2147483648
      %v4093 = vsel %vm4010, %v4092, %v4091
      %v4094 = vsub.s32 4, %v4070
      %v4095 = vsel %vm4010, %v4094, %v4070
      %v4096 = vsel %vm4009, %v3472, %v4093
      %v4097 = vsel %vm4009, 0, %v4095
      %v4098 = vcosq.f32.pop %v4096
      %v4099 = vsinq.f32.pop %v4096
      %vm4100 = vweird.f32 %v3472
      %v4101 = vadd.s32 %v4097, 3
      %v4102 = vand.u32 %v4101, 3
      %vm4103 = vcmp.lt.s32.totalorder %v4102, 2
      %vm4104 = vcmp.eq.s32.totalorder %v4102, 0
      %v4105 = vxor.u32 %v4099, 2147483648
      %v4106 = vsel %vm4104, %v4098, %v4105
      %vm4107 = vcmp.eq.s32.totalorder %v4102, 2
      %v4108 = vxor.u32 %v4098, 2147483648
      %v4109 = vsel %vm4107, %v4108, %v4099
      %v4110 = vsel %vm4103, %v4106, %v4109
      %v4111 = vsel %vm4100, nan, %v4110
      %v4112 = vand.u32 2147483647, %v3478
      %vm4113 = vcmp.le.f32.partialorder %v4112, 0.7853982
      %vm4114 = vcmp.lt.s32.totalorder %v3478, 0
      %v4115 = vand.u32 %v3478, 2139095040
      %v4116 = vshrl.u32 %v4115, 23
      %v4117 = vsub.s32 %v4116, 127
      %v4118 = vand.u32 2147483647, %v3478
      %v4119 = vand.u32 %v4118, 8388607
      %v4120 = vor.u32 %v4119, 8388608
      %v4121 = vsub.s32 0, %v4120
      %v4122 = vadd.s32 %v4117, 1
      %vm4123 = vcmp.gt.s32.totalorder %v4122, 0
      %v4124 = vsel %vm4123, %v4122, 0
      %v4125 = vshrl.u32 %v4124, 5
      %v4126 = vand.u32 %v4124, 31
      %v4127 = vsub.s32 32, %v4126
      %v4128 = vshrl.u32 683565275, %v4127
      %v4129 = vshll.u32 683565275, %v4126
      %v4130 = vshrl.u32 2475754826, %v4127
      %v4131 = vor.u32 %v4129, %v4130
      %v4132 = vshll.u32 2475754826, %v4126
      %v4133 = vshrl.u32 2131351028, %v4127
      %v4134 = vor.u32 %v4132, %v4133
      %v4135 = vshll.u32 2131351028, %v4126
      %v4136 = vshrl.u32 2102212464, %v4127
      %v4137 = vor.u32 %v4135, %v4136
      %v4138 = vshll.u32 2102212464, %v4126
      %v4139 = vshrl.u32 920167782, %v4127
      %v4140 = vor.u32 %v4138, %v4139
      %v4141 = vshll.u32 920167782, %v4126
      %v4142 = vshrl.u32 1326507024, %v4127
      %v4143 = vor.u32 %v4141, %v4142
      %vm4144 = vcmp.lt.s32.totalorder %v4125, 1
      %vm4145 = vcmp.lt.s32.totalorder %v4125, 2
      %vm4146 = vcmp.lt.s32.totalorder %v4125, 3
      %vm4147 = vcmp.lt.s32.totalorder %v4125, 4
      %v4148 = vsel %vm4144, %v4128, %v4131
      %v4149 = vsel %vm4147, %v4137, 2102212464
      %v4150 = vsel %vm4146, %v4134, %v4149
      %v4151 = vsel %vm4145, %v4148, %v4150
      %v4152 = vsel %vm4144, %v4131, %v4134
      %v4153 = vsel %vm4147, %v4140, 920167782
      %v4154 = vsel %vm4146, %v4137, %v4153
      %v4155 = vsel %vm4145, %v4152, %v4154
      %v4156 = vsel %vm4144, %v4134, %v4137
      %v4157 = vsel %vm4147, %v4143, 1326507024
      %v4158 = vsel %vm4146, %v4140, %v4157
      %v4159 = vsel %vm4145, %v4156, %v4158
      %v4160 = vshll.u32 %v4120, 8
      %v4161 = vmul.u32.u64.compose %v4160, %v4159
      %v4162 = vextract.low.u32 %v4161
      %v4163 = vextract.high.u32 %v4161
      %v4164 = vmul.u32.u64.compose %v4160, %v4155
      %v4165 = vextract.low.u32 %v4164
      %v4166 = vextract.high.u32 %v4164
      %v4167 = vmul.u32 %v4160, %v4151
      %v4168 = vadd.s32 %v4163, %v4165
      %vm4169 = vc.u32 %v4163, %v4165
      %v4170 = vadd.s32 %v4166, 1
      %v4171 = vsel %vm4169, %v4170, %v4166
      %v4172 = vadd.s32 %v4167, %v4171
      %v4173 = vadd.s32 %v4172, 536870912
      %v4174 = vshrl.u32 %v4173, 30
      %v4175 = vshll.u32 %v4174, 30
      %v4176 = vsub.s32 %v4172, %v4175
      %vm4177 = vcmp.lt.s32.totalorder %v4176, 0
      %v4178 = vsub.s32 0, %v4176
      %v4179 = vsel %vm4177, %v4178, %v4176
      %v4180 = vclz %v4179
      %v4181 = vsub.s32 %v4180, 2
      %vm4182 = vcmp.gt.s32.totalorder 0, %v4181
      %v4183 = vsel %vm4182, 0, %v4181
      %v4184 = vsub.s32 32, %v4183
      %v4185 = vshll.u32 %v4176, %v4183
      %v4186 = vshrl.u32 %v4168, %v4184
      %v4187 = vor.u32 %v4185, %v4186
      %v4188 = vsub.s32 4294967266, %v4183
      %v4189 = vadd.s32 %v4188, 127
      %v4190 = vshll.u32 %v4189, 23
      %v4191 = vor.u32 4788187, %v4190
      %v4192 = vand.u32 2147483647, %v4191
      %v4194 = vcvt.s32.f32 %v4187
      %v4195 = vmul.f32 %v4194, %v4192
      %v4196 = vxor.u32 %v4195, 2147483648
      %v4197 = vsel %vm4114, %v4196, %v4195
      %v4198 = vsub.s32 4, %v4174
      %v4199 = vsel %vm4114, %v4198, %v4174
      %v4200 = vsel %vm4113, %v3478, %v4197
      %v4201 = vsel %vm4113, 0, %v4199
      %v4202 = vcosq.f32.pop %v4200
      %v4203 = vsinq.f32.pop %v4200
      %vm4204 = vweird.f32 %v3478
      %v4205 = vadd.s32 %v4201, 3
      %v4206 = vand.u32 %v4205, 3
      %vm4207 = vcmp.lt.s32.totalorder %v4206, 2
      %vm4208 = vcmp.eq.s32.totalorder %v4206, 0
      %v4209 = vxor.u32 %v4203, 2147483648
      %v4210 = vsel %vm4208, %v4202, %v4209
      %vm4211 = vcmp.eq.s32.totalorder %v4206, 2
      %v4212 = vxor.u32 %v4202, 2147483648
      %v4213 = vsel %vm4211, %v4212, %v4203
      %v4214 = vsel %vm4207, %v4210, %v4213
      %v4215 = vsel %vm4204, nan, %v4214
      %v4216 = vand.u32 2147483647, %v3484
      %vm4217 = vcmp.le.f32.partialorder %v4216, 0.7853982
      %vm4218 = vcmp.lt.s32.totalorder %v3484, 0
      %v4219 = vand.u32 %v3484, 2139095040
      %v4220 = vshrl.u32 %v4219, 23
      %v4221 = vsub.s32 %v4220, 127
      %v4222 = vand.u32 2147483647, %v3484
      %v4223 = vand.u32 %v4222, 8388607
      %v4224 = vor.u32 %v4223, 8388608
      %v4225 = vsub.s32 0, %v4224
      %v4226 = vadd.s32 %v4221, 1
      %vm4227 = vcmp.gt.s32.totalorder %v4226, 0
      %v4228 = vsel %vm4227, %v4226, 0
      %v4229 = vshrl.u32 %v4228, 5
      %v4230 = vand.u32 %v4228, 31
      %v4231 = vsub.s32 32, %v4230
      %v4232 = vshrl.u32 683565275, %v4231
      %v4233 = vshll.u32 683565275, %v4230
      %v4234 = vshrl.u32 2475754826, %v4231
      %v4235 = vor.u32 %v4233, %v4234
      %v4236 = vshll.u32 2475754826, %v4230
      %v4237 = vshrl.u32 2131351028, %v4231
      %v4238 = vor.u32 %v4236, %v4237
      %v4239 = vshll.u32 2131351028, %v4230
      %v4240 = vshrl.u32 2102212464, %v4231
      %v4241 = vor.u32 %v4239, %v4240
      %v4242 = vshll.u32 2102212464, %v4230
      %v4243 = vshrl.u32 920167782, %v4231
      %v4244 = vor.u32 %v4242, %v4243
      %v4245 = vshll.u32 920167782, %v4230
      %v4246 = vshrl.u32 1326507024, %v4231
      %v4247 = vor.u32 %v4245, %v4246
      %vm4248 = vcmp.lt.s32.totalorder %v4229, 1
      %vm4249 = vcmp.lt.s32.totalorder %v4229, 2
      %vm4250 = vcmp.lt.s32.totalorder %v4229, 3
      %vm4251 = vcmp.lt.s32.totalorder %v4229, 4
      %v4252 = vsel %vm4248, %v4232, %v4235
      %v4253 = vsel %vm4251, %v4241, 2102212464
      %v4254 = vsel %vm4250, %v4238, %v4253
      %v4255 = vsel %vm4249, %v4252, %v4254
      %v4256 = vsel %vm4248, %v4235, %v4238
      %v4257 = vsel %vm4251, %v4244, 920167782
      %v4258 = vsel %vm4250, %v4241, %v4257
      %v4259 = vsel %vm4249, %v4256, %v4258
      %v4260 = vsel %vm4248, %v4238, %v4241
      %v4261 = vsel %vm4251, %v4247, 1326507024
      %v4262 = vsel %vm4250, %v4244, %v4261
      %v4263 = vsel %vm4249, %v4260, %v4262
      %v4264 = vshll.u32 %v4224, 8
      %v4265 = vmul.u32.u64.compose %v4264, %v4263
      %v4266 = vextract.low.u32 %v4265
      %v4267 = vextract.high.u32 %v4265
      %v4268 = vmul.u32.u64.compose %v4264, %v4259
      %v4269 = vextract.low.u32 %v4268
      %v4270 = vextract.high.u32 %v4268
      %v4271 = vmul.u32 %v4264, %v4255
      %v4272 = vadd.s32 %v4267, %v4269
      %vm4273 = vc.u32 %v4267, %v4269
      %v4274 = vadd.s32 %v4270, 1
      %v4275 = vsel %vm4273, %v4274, %v4270
      %v4276 = vadd.s32 %v4271, %v4275
      %v4277 = vadd.s32 %v4276, 536870912
      %v4278 = vshrl.u32 %v4277, 30
      %v4279 = vshll.u32 %v4278, 30
      %v4280 = vsub.s32 %v4276, %v4279
      %vm4281 = vcmp.lt.s32.totalorder %v4280, 0
      %v4282 = vsub.s32 0, %v4280
      %v4283 = vsel %vm4281, %v4282, %v4280
      %v4284 = vclz %v4283
      %v4285 = vsub.s32 %v4284, 2
      %vm4286 = vcmp.gt.s32.totalorder 0, %v4285
      %v4287 = vsel %vm4286, 0, %v4285
      %v4288 = vsub.s32 32, %v4287
      %v4289 = vshll.u32 %v4280, %v4287
      %v4290 = vshrl.u32 %v4272, %v4288
      %v4291 = vor.u32 %v4289, %v4290
      %v4292 = vsub.s32 4294967266, %v4287
      %v4293 = vadd.s32 %v4292, 127
      %v4294 = vshll.u32 %v4293, 23
      %v4295 = vor.u32 4788187, %v4294
      %v4296 = vand.u32 2147483647, %v4295
      %v4298 = vcvt.s32.f32 %v4291
      %v4299 = vmul.f32 %v4298, %v4296
      %v4300 = vxor.u32 %v4299, 2147483648
      %v4301 = vsel %vm4218, %v4300, %v4299
      %v4302 = vsub.s32 4, %v4278
      %v4303 = vsel %vm4218, %v4302, %v4278
      %v4304 = vsel %vm4217, %v3484, %v4301
      %v4305 = vsel %vm4217, 0, %v4303
      %v4306 = vcosq.f32.pop %v4304
      %v4307 = vsinq.f32.pop %v4304
      %vm4308 = vweird.f32 %v3484
      %v4309 = vadd.s32 %v4305, 3
      %v4310 = vand.u32 %v4309, 3
      %vm4311 = vcmp.lt.s32.totalorder %v4310, 2
      %vm4312 = vcmp.eq.s32.totalorder %v4310, 0
      %v4313 = vxor.u32 %v4307, 2147483648
      %v4314 = vsel %vm4312, %v4306, %v4313
      %vm4315 = vcmp.eq.s32.totalorder %v4310, 2
      %v4316 = vxor.u32 %v4306, 2147483648
      %v4317 = vsel %vm4315, %v4316, %v4307
      %v4318 = vsel %vm4311, %v4314, %v4317
      %v4319 = vsel %vm4308, nan, %v4318
      %v4320 = vadd.f32 %v1466, %v2455
      %v4321 = vadd.f32 %v1472, %v2461
      %v4322 = vadd.f32 %v1478, %v2467
      %v4323 = vadd.f32 %v1484, %v2473
      %v4324 = vadd.f32 %v1490, %v2479
      %v4325 = vadd.f32 %v1496, %v2485
      %v4326 = vadd.f32 %v1502, %v2491
      %v4327 = vadd.f32 %v1508, %v2497
      %v4328 = vadd.f32 %v4320, %v3444
      %v4329 = vadd.f32 %v4321, %v3450
      %v4330 = vadd.f32 %v4322, %v3456
      %v4331 = vadd.f32 %v4323, %v3462
      %v4332 = vadd.f32 %v4324, %v3468
      %v4333 = vadd.f32 %v4325, %v3474
      %v4334 = vadd.f32 %v4326, %v3480
      %v4335 = vadd.f32 %v4327, %v3486
      %v4336 = vld [vmem:[%s9] sm:$0x1]
      %v4338 = vlaneseq
      %v4339 = vshrl.u32 %v4338, 7
      %v4340 = vsub.s32 0, %v4339
      %v4341 = vrot.slane %v4336, %v4340
      %v4343 = vmul.f32 %v3591, %v4341
      %v4344 = vmul.f32 %v3695, %v4341
      %v4345 = vmul.f32 %v3799, %v4341
      %v4346 = vmul.f32 %v3903, %v4341
      %v4347 = vmul.f32 %v4007, %v4341
      %v4348 = vmul.f32 %v4111, %v4341
      %v4349 = vmul.f32 %v4215, %v4341
      %v4350 = vmul.f32 %v4319, %v4341
      %4351 = vadd.xlane.f32.xlu0 %v4343
      %v4352 = vpop.xlane.xlu0 %4351
      %4353 = vadd.xlane.f32.xlu0 %v4344
      %v4354 = vpop.xlane.xlu0 %4353
      %4355 = vadd.xlane.f32.xlu0 %v4345
      %v4356 = vpop.xlane.xlu0 %4355
      %4357 = vadd.xlane.f32.xlu0 %v4346
      %v4358 = vpop.xlane.xlu0 %4357
      %4359 = vadd.xlane.f32.xlu0 %v4347
      %v4360 = vpop.xlane.xlu0 %4359
      %4361 = vadd.xlane.f32.xlu0 %v4348
      %v4362 = vpop.xlane.xlu0 %4361
      %4363 = vadd.xlane.f32.xlu0 %v4349
      %v4364 = vpop.xlane.xlu0 %4363
      %4365 = vadd.xlane.f32.xlu0 %v4350
      %v4366 = vpop.xlane.xlu0 %4365
      %v4367 = vld [vmem:[#allocation2] sm:$0x1]
      %v4369 = vlaneseq
      %v4370 = vshrl.u32 %v4369, 7
      %v4371 = vsub.s32 0, %v4370
      %v4372 = vrot.slane %v4367, %v4371
      %v4374 = vadd.f32 %v4352, %v4372
      %v4375 = vadd.f32 %v4354, %v4372
      %v4376 = vadd.f32 %v4356, %v4372
      %v4377 = vadd.f32 %v4358, %v4372
      %v4378 = vadd.f32 %v4360, %v4372
      %v4379 = vadd.f32 %v4362, %v4372
      %v4380 = vadd.f32 %v4364, %v4372
      %v4381 = vadd.f32 %v4366, %v4372
      %v4382 = vlaneseq
      %v4383 = vand.u32 %v4382, 127
      %vm4384 = vcmp.eq.s32.totalorder %v4383, 3
      %4386 = vset.pattern.permute.xlu0 0
      %4387 = vperm.xlu0 %4386, %v4374
      %v4388 = vpop.permute.xlu0 %4387
      %4391 = vset.pattern.permute.xlu0 0
      %4392 = vperm.xlu0 %4391, %v4375
      %v4393 = vpop.permute.xlu0 %4392
      %4396 = vset.pattern.permute.xlu0 0
      %4397 = vperm.xlu0 %4396, %v4376
      %v4398 = vpop.permute.xlu0 %4397
      %4401 = vset.pattern.permute.xlu0 0
      %4402 = vperm.xlu0 %4401, %v4377
      %v4403 = vpop.permute.xlu0 %4402
      %4406 = vset.pattern.permute.xlu0 0
      %4407 = vperm.xlu0 %4406, %v4378
      %v4408 = vpop.permute.xlu0 %4407
      %4411 = vset.pattern.permute.xlu0 0
      %4412 = vperm.xlu0 %4411, %v4379
      %v4413 = vpop.permute.xlu0 %4412
      %4416 = vset.pattern.permute.xlu0 0
      %4417 = vperm.xlu0 %4416, %v4380
      %v4418 = vpop.permute.xlu0 %4417
      %4421 = vset.pattern.permute.xlu0 0
      %4422 = vperm.xlu0 %4421, %v4381
      %v4423 = vpop.permute.xlu0 %4422
      %v4425 = vsel %vm4384, %v4388, %v4328
      %v4426 = vsel %vm4384, %v4393, %v4329
      %v4427 = vsel %vm4384, %v4398, %v4330
      %v4428 = vsel %vm4384, %v4403, %v4331
      %v4429 = vsel %vm4384, %v4408, %v4332
      %v4430 = vsel %vm4384, %v4413, %v4333
      %v4431 = vsel %vm4384, %v4418, %v4334
      %v4432 = vsel %vm4384, %v4423, %v4335
      %vm4433 = vcmask 31744
      %4434 = vst.msk [vmem:[%s390] sm:$0xff] %vm4433, %v4425
      %4435 = vst.msk [vmem:[%s390 + $0x8] sm:$0xff] %vm4433, %v4426
      %4436 = vst.msk [vmem:[%s390 + $0x10] sm:$0xff] %vm4433, %v4427
      %4437 = vst.msk [vmem:[%s390 + $0x18] sm:$0xff] %vm4433, %v4428
      %4438 = vst.msk [vmem:[%s390 + $0x20] sm:$0xff] %vm4433, %v4429
      %4439 = vst.msk [vmem:[%s390 + $0x28] sm:$0xff] %vm4433, %v4430
      %4440 = vst.msk [vmem:[%s390 + $0x30] sm:$0xff] %vm4433, %v4431
      %4441 = vst.msk [vmem:[%s390 + $0x38] sm:$0xff] %vm4433, %v4432
      %s4442 = smul.u32 8, %s24
      %p4443 = scmp.lt.s32.totalorder %s4442, 15
      %s4444 = scalar_select %p4443, %s4442, 15
      %s4445 = smul.addr %s4444, 8
      %s4446 = scalar_lea.vmem %s11, %s4445
      // Predicated region
      $region65: #{_run_pallas.1} parent=63 // pred_check
        %p4447 = pneg %p278
      $region66: #{_run_pallas.1} parent=63 // pred_check_branch
        %4449 = sbr.rel (%p4447) target = $region68
      $region67: #{_run_pallas.1} parent=63 // pred_region
        %s4450 = smul.u32 8, %s24
      $region68: #{_run_pallas.1} parent=63 // pred_fallthru
        _
    $region64: #{_run_pallas.1} parent=5 // pred_fallthru
      _
    %p4451 = scmp.le.s32.totalorder 2, %s19
    // Predicated region
    $region69: #{_run_pallas.1} parent=5 // pred_check
      %p4452 = pneg %p4451
    $region70: #{_run_pallas.1} parent=5 // pred_check_branch
      %4454 = sbr.rel (%p4452) target = $region72
    $region71: #{_run_pallas.1} parent=5 // pred_region
      %s4455 = ssub.s32 %s19, 2
      // Predicated region
      $region73: #{_run_pallas.1} parent=71 // pred_check
        %p4456 = pneg %p284
      $region74: #{_run_pallas.1} parent=71 // pred_check_branch
        %4458 = sbr.rel (%p4456) target = $region76
      $region75: #{_run_pallas.1} parent=71 // pred_region
        %s4459 = smul.u32 8, %s25
        %p4460 = scmp.lt.s32.totalorder %s4459, 15
        %s4461 = scalar_select %p4460, %s4459, 15
        %s4462 = smul.addr %s4461, 8
        %s4463 = scalar_lea.vmem %s11, %s4462
      $region76: #{_run_pallas.1} parent=71 // pred_fallthru
        _
    $region72: #{_run_pallas.1} parent=5 // pred_fallthru
      _
  $region6: #{_run_pallas.1} parent=0 // loop_footer
    %s23 = sadd.s32 1, %s19
  $region7: #{_run_pallas.1} parent=0 // loop_footer_branch
    %18 = sbr.rel target = $region3
  $region8: #{_run_pallas.1} parent=0 // loop_exit
    _

</llo_original>
